<compile_context>
chip_gen: v6e
topology: v6e:2x2x1
jax: 0.10.0
libtpu: 0.0.40
codegen_flags: <defaults>
</compile_context>

<pallas_src>
import jax
import jax.numpy as jnp
import numpy as np
from jax.experimental import pallas as pl
from jax.experimental.pallas import tpu as pltpu

# ---------------- model config (small, consistent with the module) ----------
N_EMBD      = 32
NUM_HEADS   = 4
HEAD_SIZE   = 8            # NUM_HEADS * HEAD_SIZE == N_EMBD (needed by proj)
BLOCK_SIZE  = 8            # T
N_MEMORY    = 16           # M
BATCH_SIZE  = 2
LQ_ADD      = 1e-6
DECAY       = 0.01
N_POS_TABLE = 16           # rows in block_sqr_pos_embedding_table
MT          = N_MEMORY + BLOCK_SIZE
NHB         = NUM_HEADS * BATCH_SIZE
WSLAB_ROWS  = 40                                  # >= N_EMBD + 1, multiple of 8
OUT_ROWS    = BATCH_SIZE * BLOCK_SIZE + NHB       # 16 (proj) + 8 (rank) = 24
LANES       = 128


# ---------------------------- fused Pallas kernel ----------------------------
def _fused_kernel(mpe_ref, x_ref, w_ref, rank_ref, out_ref):
    # mpe_ref : (NHB*M, E)  memory + positional embedding, row = (h*B+b)*M + m
    # x_ref   : (B*T, E)    input block, row = b*T + t
    # w_ref   : (40, 128)   packed weights: [0:E,0:3E]=[Kall|Qall|Vall],
    #                       [0:E,3E:4E]=Wp, [E,0:E]=bp
    # rank_ref: (NHB, M)    current memory_rank, row = h*B+b
    # out_ref : (24, 128)   packed: rows 0:16 cols 0:E = proj out,
    #                       rows 16:24 cols 0:M = new rank, [0,E] = total loss
    H, M, T, E = HEAD_SIZE, N_MEMORY, BLOCK_SIZE, N_EMBD
    B, NH = BATCH_SIZE, NUM_HEADS
    f32 = jnp.float32
    scale = float(MT) ** (-0.5)

    wqkv = w_ref[0:E, 0:3 * E]            # (32, 96)  [K_all | Q_all | V_all]
    wp   = w_ref[0:E, 3 * E:4 * E]        # (32, 32)
    bp   = w_ref[E:E + 1, 0:E]            # (1, 32)

    # Two MXU passes produce K/Q/V for every row of every (head, batch).
    kqv_mem = jnp.dot(mpe_ref[...], wqkv, preferred_element_type=f32)  # (128, 96)
    kqv_x   = jnp.dot(x_ref[...],   wqkv, preferred_element_type=f32)  # (16, 96)

    loss = jnp.zeros((1, 1), f32)
    row_ids = jax.lax.broadcasted_iota(jnp.int32, (NHB, M), 0)          # (8, 16)
    delta_acc = jnp.zeros((NHB, M), f32)                                # rank deltas
    proj_acc = [jnp.zeros((T, E), f32) for _ in range(B)]               # projected out

    for h in range(NH):
        wp_blk = wp[h * H:(h + 1) * H, :]                               # (8, 32)
        for b in range(B):
            row = h * B + b
            mem_sl = kqv_mem[row * M:(row + 1) * M, :]                  # (16, 96)
            x_sl   = kqv_x[b * T:(b + 1) * T, :]                        # (8, 96)

            k_mem = mem_sl[:, h * H:(h + 1) * H]                        # (16, 8)
            v_mem = mem_sl[:, 2 * E + h * H:2 * E + (h + 1) * H]        # (16, 8)
            k_x   = x_sl[:, h * H:(h + 1) * H]                          # (8, 8)
            q     = x_sl[:, E + h * H:E + (h + 1) * H]                  # (8, 8)
            v_x   = x_sl[:, 2 * E + h * H:2 * E + (h + 1) * H]          # (8, 8)

            wei_m = jax.lax.dot_general(q, k_mem, (((1,), (1,)), ((), ())),
                                        preferred_element_type=f32) * scale   # (8, 16)
            wei_x = jax.lax.dot_general(q, k_x, (((1,), (1,)), ((), ())),
                                        preferred_element_type=f32) * scale   # (8, 8)
            wei_m = wei_m * wei_m
            wei_x = wei_x * wei_x
            row_max = jnp.maximum(jnp.max(wei_m, axis=-1, keepdims=True),
                                  jnp.max(wei_x, axis=-1, keepdims=True))      # (8, 1)
            # exact divide (matches reference; NaNs identically on an all-zero row)
            inv = 1.0 / row_max
            wei_m = wei_m * inv
            wei_x = wei_x * inv

            head_out = (jnp.dot(wei_m, v_mem, preferred_element_type=f32)
                        + jnp.dot(wei_x, v_x, preferred_element_type=f32))      # (8, 8)
            # projection folded in: cat(heads) @ Wp == sum_h head_h @ Wp[hH:(h+1)H]
            proj_acc[b] = proj_acc[b] + jnp.dot(head_out, wp_blk,
                                                preferred_element_type=f32)     # (8, 32)

            loss = loss + (jnp.sum(jnp.log(wei_m + LQ_ADD), keepdims=True)
                           + jnp.sum(jnp.log(wei_x + LQ_ADD), keepdims=True))

            memsum  = jnp.sum(wei_m, axis=0, keepdims=True)                     # (1, M)
            meanwei = (jnp.sum(wei_m, keepdims=True)
                       + jnp.sum(wei_x, keepdims=True)) * (1.0 / MT)            # (1, 1)
            delta = memsum / meanwei - 1.0 - DECAY                              # (1, M)
            # one-hot row placement in registers (dense store once at the end)
            delta_acc = delta_acc + jnp.where(row_ids == row, 1.0, 0.0) * delta

    # single packed writeback: proj output, new rank, total loss
    proj = jnp.concatenate(proj_acc, axis=0) + bp                       # (16, 32)
    out_ref[0:B * T, 0:E] = proj
    out_ref[B * T:B * T + NHB, 0:M] = rank_ref[...] + delta_acc
    out_ref[0:1, E:E + 1] = loss


# ------------------------ one-time parameter packing -------------------------
def prepare_params(raw):
    """Hoisted out of the per-step path: pack [Wk|Wq|Wv], Wp, bp into a single
    lane-dense (40, 128) slab (one input DMA instead of three)."""
    nh, E, H = raw['wk'].shape
    k_all = jnp.transpose(raw['wk'], (1, 0, 2)).reshape(E, nh * H)
    q_all = jnp.transpose(raw['wq'], (1, 0, 2)).reshape(E, nh * H)
    v_all = jnp.transpose(raw['wv'], (1, 0, 2)).reshape(E, nh * H)
    wqkv = jnp.concatenate([k_all, q_all, v_all], axis=-1)              # (E, 3E)
    wslab = jnp.zeros((WSLAB_ROWS, LANES), jnp.float32)
    wslab = wslab.at[0:E, 0:3 * E].set(wqkv)
    wslab = wslab.at[0:E, 3 * E:4 * E].set(raw['wp'])
    wslab = wslab.at[E:E + 1, 0:E].set(raw['bp'].reshape(1, E))
    params = dict(raw)
    params['wslab'] = wslab
    return params


# ------------------------------ forward wrapper -------------------------------
def ltm_multihead_forward(params, state, block_pos_list, x):
    nh, E, H, M = NUM_HEADS, N_EMBD, HEAD_SIZE, N_MEMORY
    B, T, _ = x.shape

    memory, dist, rank = state['memory'], state['dist'], state['rank']

    # reset works whose block_pos == 0 (memory + block distance only)
    reset = (block_pos_list == 0)
    memory = jnp.where(reset[None, :, None, None], 0.0, memory)
    dist = jnp.where(reset[None, :, None], 0, dist) + 1

    # positional embedding lookup (glue)
    # TODO(synk): the log2 + table gather + reset could be folded into the
    # kernel (pass memory/dist/emb_table) to remove this XLA fusion launch.
    m_pos_ix = jnp.log2(dist.astype(jnp.float32)).astype(jnp.int32)     # (nh, B, M)
    m_pos_emb = params['emb_table'][m_pos_ix]                           # (nh, B, M, E)
    mpe = (memory + m_pos_emb).reshape(nh * B * M, E)

    packed = pl.pallas_call(
        _fused_kernel,
        grid=(1,),
        in_specs=[
            pl.BlockSpec((nh * B * M, E),    lambda i: (0, 0)),   # mpe
            pl.BlockSpec((B * T, E),         lambda i: (0, 0)),   # x
            pl.BlockSpec((WSLAB_ROWS, LANES), lambda i: (0, 0)),  # packed weights
            pl.BlockSpec((nh * B, M),        lambda i: (0, 0)),   # rank
        ],
        out_specs=pl.BlockSpec((OUT_ROWS, LANES), lambda i: (0, 0)),
        out_shape=jax.ShapeDtypeStruct((OUT_ROWS, LANES), jnp.float32),
        compiler_params=pltpu.CompilerParams(
            dimension_semantics=("arbitrary",)),
    )(mpe, x.reshape(B * T, E), params['wslab'], rank.reshape(nh * B, M))

    out = packed[0:B * T, 0:E].reshape(B, T, E)
    total_query_loss = packed[0, E]
    rank_new = packed[B * T:B * T + nh * B, 0:M].reshape(nh, B, M)

    # ---- LTMHead memory-update side effects (plain JAX glue: sort/scatter) ----
    # TODO(synk): the (NHB,16) descending sort + memory-row replacement could be
    # implemented in-kernel (bitonic compare/select network); kept in JAX here.
    order = jnp.argsort(-rank_new, axis=-1)                             # descending
    mem_sorted = jnp.take_along_axis(memory, order[..., None], axis=2)
    dist_sorted = jnp.take_along_axis(dist, order, axis=2)
    rank_sorted = jnp.take_along_axis(rank_new, order, axis=2)
    rs = min(T, M)
    new_memory = mem_sorted.at[:, :, M - rs:, :].set(
        jnp.broadcast_to(x[None, :, T - rs:, :], (nh, B, rs, E)))
    new_dist = dist_sorted.at[:, :, M - rs:].set(0)
    new_rank = rank_sorted.at[:, :, M - rs:].set(1.0)
    new_state = {'memory': new_memory, 'dist': new_dist, 'rank': new_rank}

    return out, total_query_loss, new_state


# ------------------------ pure-JAX reference (for checking) ------------------
def reference_multihead(params, state, block_pos_list, x):
    nh, E, H = params['wk'].shape
    B, T, _ = x.shape
    M = N_MEMORY
    P = jax.lax.Precision.HIGHEST

    memory = jnp.where((block_pos_list == 0)[None, :, None, None], 0.0, state['memory'])
    dist = jnp.where((block_pos_list == 0)[None, :, None], 0, state['dist']) + 1
    rank = state['rank']

    m_pos_ix = jnp.log2(dist.astype(jnp.float32)).astype(jnp.int32)
    m_pos_emb = params['emb_table'][m_pos_ix]
    X = jnp.concatenate(
        [memory + m_pos_emb, jnp.broadcast_to(x[None], (nh, B, T, E))], axis=2)

    outs, total_loss = [], 0.0
    new_mem, new_dist, new_rank = [], [], []
    for h in range(nh):
        k = jnp.matmul(X[h], params['wk'][h], precision=P)
        q = jnp.matmul(x, params['wq'][h], precision=P)
        v = jnp.matmul(X[h], params['wv'][h], precision=P)
        wei = jnp.matmul(q, jnp.swapaxes(k, -1, -2), precision=P) * (M + T) ** (-0.5)
        wei = wei * wei
        wei = wei / jnp.max(wei, axis=2, keepdims=True)
        mean_wei = wei.sum(axis=1).mean(axis=1)
        rank_h = rank[h] + wei[:, :, :M].sum(axis=1) / mean_wei[:, None] - 1.0 - DECAY
        order = jnp.argsort(-rank_h, axis=1)
        mem_s = jnp.take_along_axis(memory[h], order[..., None], axis=1)
        dist_s = jnp.take_along_axis(dist[h], order, axis=1)
        rank_s = jnp.take_along_axis(rank_h, order, axis=1)
        rs = min(T, M)
        new_mem.append(mem_s.at[:, M - rs:, :].set(x[:, T - rs:, :]))
        new_dist.append(dist_s.at[:, M - rs:].set(0))
        new_rank.append(rank_s.at[:, M - rs:].set(1.0))
        total_loss = total_loss + jnp.sum(jnp.log(wei + LQ_ADD))
        outs.append(jnp.matmul(wei, v, precision=P))
    out = jnp.matmul(jnp.concatenate(outs, axis=-1), params['wp'], precision=P) + params['bp']
    new_state = {'memory': jnp.stack(new_mem), 'dist': jnp.stack(new_dist),
                 'rank': jnp.stack(new_rank)}
    return out, total_loss, new_state


# --------------------------------- main ---------------------------------------
if __name__ == "__main__":
    key = jax.random.PRNGKey(0)
    k_wk, k_wq, k_wv, k_wp, k_bp, k_emb, k_x1, k_x2 = jax.random.split(key, 8)

    raw_params = {
        'wk': 0.1 * jax.random.normal(k_wk, (NUM_HEADS, N_EMBD, HEAD_SIZE), jnp.float32),
        'wq': 0.1 * jax.random.normal(k_wq, (NUM_HEADS, N_EMBD, HEAD_SIZE), jnp.float32),
        'wv': 0.1 * jax.random.normal(k_wv, (NUM_HEADS, N_EMBD, HEAD_SIZE), jnp.float32),
        'wp': 0.1 * jax.random.normal(k_wp, (N_EMBD, N_EMBD), jnp.float32),  # = torch W.T
        'bp': 0.1 * jax.random.normal(k_bp, (N_EMBD,), jnp.float32),
        'emb_table': 0.1 * jax.random.normal(k_emb, (N_POS_TABLE, N_EMBD), jnp.float32),
    }
    params = prepare_params(raw_params)   # static weight packing, done once

    state0 = {
        'memory': jnp.zeros((NUM_HEADS, BATCH_SIZE, N_MEMORY, N_EMBD), jnp.float32),
        'dist':   jnp.zeros((NUM_HEADS, BATCH_SIZE, N_MEMORY), jnp.int32),
        'rank':   jnp.zeros((NUM_HEADS, BATCH_SIZE, N_MEMORY), jnp.float32),
    }
    x1 = jax.random.normal(k_x1, (BATCH_SIZE, BLOCK_SIZE, N_EMBD), jnp.float32)
    x2 = jax.random.normal(k_x2, (BATCH_SIZE, BLOCK_SIZE, N_EMBD), jnp.float32)

    forward = jax.jit(ltm_multihead_forward)

    # call 1: both works start at block 0 (fresh memory)
    bp1 = jnp.array([0, 0], dtype=jnp.int32)
    out1, loss1, state1 = forward(params, state0, bp1, x1)
    ref_out1, ref_loss1, _ = reference_multihead(params, state0, bp1, x1)

    # call 2: non-trivial memory state; work 1 resets
    bp2 = jnp.array([3, 0], dtype=jnp.int32)
    out2, loss2, state2 = forward(params, state1, bp2, x2)
    ref_out2, ref_loss2, _ = reference_multihead(params, state1, bp2, x2)

    jax.block_until_ready((out1, loss1, out2, loss2, state2))

    np.testing.assert_allclose(np.asarray(out1), np.asarray(ref_out1), rtol=5e-2, atol=5e-2)
    np.testing.assert_allclose(np.asarray(loss1), np.asarray(ref_loss1), rtol=5e-2, atol=5e-1)
    np.testing.assert_allclose(np.asarray(out2), np.asarray(ref_out2), rtol=5e-2, atol=5e-2)
    np.testing.assert_allclose(np.asarray(loss2), np.asarray(ref_loss2), rtol=5e-2, atol=5e-1)

    print("KERNEL_OK")
</pallas_src>

<mosaic_0001>
module attributes {stable_mosaic.version = 11 : i64} {
  func.func @_fused_kernel(%arg0: i32, %arg1: memref<128x32xf32, #tpu.memory_space<vmem>>, %arg2: memref<16x32xf32, #tpu.memory_space<vmem>>, %arg3: memref<40x128xf32, #tpu.memory_space<vmem>>, %arg4: memref<8x16xf32, #tpu.memory_space<vmem>>, %arg5: memref<24x128xf32, #tpu.memory_space<vmem>>) attributes {dimension_semantics = [#tpu.dimension_semantics<arbitrary>], iteration_bounds = array<i64: 1>, scalar_prefetch = 0 : i64, scratch_operands = 0 : i64, tpu.core_type = #tpu.core_type<tc>, window_params = [{pipeline_mode = #tpu.pipeline_mode<synchronous>, transform_indices = @transform_0, window_bounds = array<i64: 128, 32>}, {pipeline_mode = #tpu.pipeline_mode<synchronous>, transform_indices = @transform_1, window_bounds = array<i64: 16, 32>}, {pipeline_mode = #tpu.pipeline_mode<synchronous>, transform_indices = @transform_2, window_bounds = array<i64: 40, 128>}, {pipeline_mode = #tpu.pipeline_mode<synchronous>, transform_indices = @transform_3, window_bounds = array<i64: 8, 16>}, {pipeline_mode = #tpu.pipeline_mode<synchronous>, transform_indices = @transform_4, window_bounds = array<i64: 24, 128>}]} {
    %c0 = arith.constant 0 : index
    %c0_0 = arith.constant 0 : index
    %0 = vector.load %arg3[%c0, %c0_0] : memref<40x128xf32, #tpu.memory_space<vmem>>, vector<32x96xf32>
    %c0_1 = arith.constant 0 : index
    %c96 = arith.constant 96 : index
    %1 = vector.load %arg3[%c0_1, %c96] : memref<40x128xf32, #tpu.memory_space<vmem>>, vector<32x32xf32>
    %c32 = arith.constant 32 : index
    %c0_2 = arith.constant 0 : index
    %2 = vector.load %arg3[%c32, %c0_2] : memref<40x128xf32, #tpu.memory_space<vmem>>, vector<1x32xf32>
    %c0_3 = arith.constant 0 : index
    %c0_4 = arith.constant 0 : index
    %3 = vector.load %arg1[%c0_3, %c0_4] : memref<128x32xf32, #tpu.memory_space<vmem>>, vector<128x32xf32>
    %cst = arith.constant dense<0.000000e+00> : vector<128x96xf32>
    %4 = tpu.matmul %3, %0, %cst {dimension_numbers = #tpu.dot_dimension_numbers<[1], [0], [0], [1], [0, 0, 1, 1], [], []>} : vector<128x32xf32>, vector<32x96xf32>, vector<128x96xf32> -> vector<128x96xf32>
    %c0_5 = arith.constant 0 : index
    %c0_6 = arith.constant 0 : index
    %5 = vector.load %arg2[%c0_5, %c0_6] : memref<16x32xf32, #tpu.memory_space<vmem>>, vector<16x32xf32>
    %cst_7 = arith.constant dense<0.000000e+00> : vector<16x96xf32>
    %6 = tpu.matmul %5, %0, %cst_7 {dimension_numbers = #tpu.dot_dimension_numbers<[1], [0], [0], [1], [0, 0, 1, 1], [], []>} : vector<16x32xf32>, vector<32x96xf32>, vector<16x96xf32> -> vector<16x96xf32>
    %cst_8 = arith.constant 0.000000e+00 : f32
    %7 = vector.broadcast %cst_8 : f32 to vector<1x1xf32>
    %8 = tpu.iota {dimensions = array<i32: 0>} : vector<8x16xi32>
    %cst_9 = arith.constant 0.000000e+00 : f32
    %9 = vector.broadcast %cst_9 : f32 to vector<8x16xf32>
    %cst_10 = arith.constant 0.000000e+00 : f32
    %10 = vector.broadcast %cst_10 : f32 to vector<8x32xf32>
    %cst_11 = arith.constant 0.000000e+00 : f32
    %11 = vector.broadcast %cst_11 : f32 to vector<8x32xf32>
    %12 = vector.extract_strided_slice %1 {offsets = [0, 0], sizes = [8, 32], strides = [1, 1]} : vector<32x32xf32> to vector<8x32xf32>
    %13 = vector.extract_strided_slice %4 {offsets = [0, 0], sizes = [16, 96], strides = [1, 1]} : vector<128x96xf32> to vector<16x96xf32>
    %14 = vector.extract_strided_slice %6 {offsets = [0, 0], sizes = [8, 96], strides = [1, 1]} : vector<16x96xf32> to vector<8x96xf32>
    %15 = vector.extract_strided_slice %13 {offsets = [0, 0], sizes = [16, 8], strides = [1, 1]} : vector<16x96xf32> to vector<16x8xf32>
    %16 = vector.extract_strided_slice %13 {offsets = [0, 64], sizes = [16, 8], strides = [1, 1]} : vector<16x96xf32> to vector<16x8xf32>
    %17 = vector.extract_strided_slice %14 {offsets = [0, 0], sizes = [8, 8], strides = [1, 1]} : vector<8x96xf32> to vector<8x8xf32>
    %18 = vector.extract_strided_slice %14 {offsets = [0, 32], sizes = [8, 8], strides = [1, 1]} : vector<8x96xf32> to vector<8x8xf32>
    %19 = vector.extract_strided_slice %14 {offsets = [0, 64], sizes = [8, 8], strides = [1, 1]} : vector<8x96xf32> to vector<8x8xf32>
    %cst_12 = arith.constant dense<0.000000e+00> : vector<8x16xf32>
    %20 = tpu.matmul %18, %15, %cst_12 {dimension_numbers = #tpu.dot_dimension_numbers<[1], [1], [0], [0], [0, 0, 1, 0], [], []>} : vector<8x8xf32>, vector<16x8xf32>, vector<8x16xf32> -> vector<8x16xf32>
    %cst_13 = arith.constant 0.204124153 : f32
    %21 = vector.broadcast %cst_13 : f32 to vector<8x16xf32>
    %22 = arith.mulf %20, %21 : vector<8x16xf32>
    %cst_14 = arith.constant dense<0.000000e+00> : vector<8x8xf32>
    %23 = tpu.matmul %18, %17, %cst_14 {dimension_numbers = #tpu.dot_dimension_numbers<[1], [1], [0], [0], [0, 0, 1, 0], [], []>} : vector<8x8xf32>, vector<8x8xf32>, vector<8x8xf32> -> vector<8x8xf32>
    %cst_15 = arith.constant 0.204124153 : f32
    %24 = vector.broadcast %cst_15 : f32 to vector<8x8xf32>
    %25 = arith.mulf %23, %24 : vector<8x8xf32>
    %26 = arith.mulf %22, %22 : vector<8x16xf32>
    %27 = arith.mulf %25, %25 : vector<8x8xf32>
    %cst_16 = arith.constant dense<0xFF800000> : vector<8xf32>
    %28 = vector.multi_reduction <maximumf>, %26, %cst_16 [1] : vector<8x16xf32> to vector<8xf32>
    %29 = vector.shape_cast %28 : vector<8xf32> to vector<8x1xf32>
    %cst_17 = arith.constant dense<0xFF800000> : vector<8xf32>
    %30 = vector.multi_reduction <maximumf>, %27, %cst_17 [1] : vector<8x8xf32> to vector<8xf32>
    %31 = vector.shape_cast %30 : vector<8xf32> to vector<8x1xf32>
    %32 = arith.maximumf %29, %31 : vector<8x1xf32>
    %cst_18 = arith.constant 1.000000e+00 : f32
    %33 = vector.broadcast %cst_18 : f32 to vector<8x1xf32>
    %34 = arith.divf %33, %32 : vector<8x1xf32>
    %35 = vector.broadcast %34 : vector<8x1xf32> to vector<8x16xf32>
    %36 = arith.mulf %26, %35 : vector<8x16xf32>
    %37 = vector.broadcast %34 : vector<8x1xf32> to vector<8x8xf32>
    %38 = arith.mulf %27, %37 : vector<8x8xf32>
    %cst_19 = arith.constant dense<0.000000e+00> : vector<8x8xf32>
    %39 = tpu.matmul %36, %16, %cst_19 {dimension_numbers = #tpu.dot_dimension_numbers<[1], [0], [0], [1], [0, 0, 1, 1], [], []>} : vector<8x16xf32>, vector<16x8xf32>, vector<8x8xf32> -> vector<8x8xf32>
    %cst_20 = arith.constant dense<0.000000e+00> : vector<8x8xf32>
    %40 = tpu.matmul %38, %19, %cst_20 {dimension_numbers = #tpu.dot_dimension_numbers<[1], [0], [0], [1], [0, 0, 1, 1], [], []>} : vector<8x8xf32>, vector<8x8xf32>, vector<8x8xf32> -> vector<8x8xf32>
    %41 = arith.addf %39, %40 : vector<8x8xf32>
    %cst_21 = arith.constant dense<0.000000e+00> : vector<8x32xf32>
    %42 = tpu.matmul %41, %12, %cst_21 {dimension_numbers = #tpu.dot_dimension_numbers<[1], [0], [0], [1], [0, 0, 1, 1], [], []>} : vector<8x8xf32>, vector<8x32xf32>, vector<8x32xf32> -> vector<8x32xf32>
    %43 = arith.addf %10, %42 : vector<8x32xf32>
    %cst_22 = arith.constant 9.99999997E-7 : f32
    %44 = vector.broadcast %cst_22 : f32 to vector<8x16xf32>
    %45 = arith.addf %36, %44 : vector<8x16xf32>
    %46 = math.log %45 : vector<8x16xf32>
    %47 = vector.shape_cast %46 : vector<8x16xf32> to vector<1x8x16xf32>
    %cst_23 = arith.constant dense<0.000000e+00> : vector<1xf32>
    %48 = vector.multi_reduction <add>, %47, %cst_23 [1, 2] : vector<1x8x16xf32> to vector<1xf32>
    %49 = vector.shape_cast %48 : vector<1xf32> to vector<1x1x1xf32>
    %50 = vector.extract %49[0, 0, 0] : f32 from vector<1x1x1xf32>
    %51 = vector.broadcast %50 : f32 to vector<1x1xf32>
    %cst_24 = arith.constant 9.99999997E-7 : f32
    %52 = vector.broadcast %cst_24 : f32 to vector<8x8xf32>
    %53 = arith.addf %38, %52 : vector<8x8xf32>
    %54 = math.log %53 : vector<8x8xf32>
    %55 = vector.shape_cast %54 : vector<8x8xf32> to vector<1x8x8xf32>
    %cst_25 = arith.constant dense<0.000000e+00> : vector<1xf32>
    %56 = vector.multi_reduction <add>, %55, %cst_25 [1, 2] : vector<1x8x8xf32> to vector<1xf32>
    %57 = vector.shape_cast %56 : vector<1xf32> to vector<1x1x1xf32>
    %58 = vector.extract %57[0, 0, 0] : f32 from vector<1x1x1xf32>
    %59 = vector.broadcast %58 : f32 to vector<1x1xf32>
    %60 = arith.addf %51, %59 : vector<1x1xf32>
    %61 = arith.addf %7, %60 : vector<1x1xf32>
    %cst_26 = arith.constant dense<0.000000e+00> : vector<16xf32>
    %62 = vector.multi_reduction <add>, %36, %cst_26 [0] : vector<8x16xf32> to vector<16xf32>
    %63 = vector.shape_cast %62 : vector<16xf32> to vector<1x16xf32>
    %64 = vector.shape_cast %36 : vector<8x16xf32> to vector<1x8x16xf32>
    %cst_27 = arith.constant dense<0.000000e+00> : vector<1xf32>
    %65 = vector.multi_reduction <add>, %64, %cst_27 [1, 2] : vector<1x8x16xf32> to vector<1xf32>
    %66 = vector.shape_cast %65 : vector<1xf32> to vector<1x1x1xf32>
    %67 = vector.extract %66[0, 0, 0] : f32 from vector<1x1x1xf32>
    %68 = vector.broadcast %67 : f32 to vector<1x1xf32>
    %69 = vector.shape_cast %38 : vector<8x8xf32> to vector<1x8x8xf32>
    %cst_28 = arith.constant dense<0.000000e+00> : vector<1xf32>
    %70 = vector.multi_reduction <add>, %69, %cst_28 [1, 2] : vector<1x8x8xf32> to vector<1xf32>
    %71 = vector.shape_cast %70 : vector<1xf32> to vector<1x1x1xf32>
    %72 = vector.extract %71[0, 0, 0] : f32 from vector<1x1x1xf32>
    %73 = vector.broadcast %72 : f32 to vector<1x1xf32>
    %74 = arith.addf %68, %73 : vector<1x1xf32>
    %cst_29 = arith.constant 0.0416666679 : f32
    %75 = vector.broadcast %cst_29 : f32 to vector<1x1xf32>
    %76 = arith.mulf %74, %75 : vector<1x1xf32>
    %77 = vector.broadcast %76 : vector<1x1xf32> to vector<1x16xf32>
    %78 = arith.divf %63, %77 : vector<1x16xf32>
    %cst_30 = arith.constant 1.000000e+00 : f32
    %79 = vector.broadcast %cst_30 : f32 to vector<1x16xf32>
    %80 = arith.subf %78, %79 : vector<1x16xf32>
    %cst_31 = arith.constant 0.00999999977 : f32
    %81 = vector.broadcast %cst_31 : f32 to vector<1x16xf32>
    %82 = arith.subf %80, %81 : vector<1x16xf32>
    %c0_i32 = arith.constant 0 : i32
    %83 = vector.broadcast %c0_i32 : i32 to vector<8x16xi32>
    %84 = arith.cmpi eq, %8, %83 : vector<8x16xi32>
    %cst_32 = arith.constant 1.000000e+00 : f32
    %cst_33 = arith.constant 0.000000e+00 : f32
    %85 = vector.broadcast %cst_32 : f32 to vector<8x16xf32>
    %86 = vector.broadcast %cst_33 : f32 to vector<8x16xf32>
    %87 = arith.select %84, %85, %86 : vector<8x16xi1>, vector<8x16xf32>
    %88 = vector.broadcast %82 : vector<1x16xf32> to vector<8x16xf32>
    %89 = arith.mulf %87, %88 : vector<8x16xf32>
    %90 = arith.addf %9, %89 : vector<8x16xf32>
    %91 = vector.extract_strided_slice %4 {offsets = [16, 0], sizes = [16, 96], strides = [1, 1]} : vector<128x96xf32> to vector<16x96xf32>
    %92 = vector.extract_strided_slice %6 {offsets = [8, 0], sizes = [8, 96], strides = [1, 1]} : vector<16x96xf32> to vector<8x96xf32>
    %93 = vector.extract_strided_slice %91 {offsets = [0, 0], sizes = [16, 8], strides = [1, 1]} : vector<16x96xf32> to vector<16x8xf32>
    %94 = vector.extract_strided_slice %91 {offsets = [0, 64], sizes = [16, 8], strides = [1, 1]} : vector<16x96xf32> to vector<16x8xf32>
    %95 = vector.extract_strided_slice %92 {offsets = [0, 0], sizes = [8, 8], strides = [1, 1]} : vector<8x96xf32> to vector<8x8xf32>
    %96 = vector.extract_strided_slice %92 {offsets = [0, 32], sizes = [8, 8], strides = [1, 1]} : vector<8x96xf32> to vector<8x8xf32>
    %97 = vector.extract_strided_slice %92 {offsets = [0, 64], sizes = [8, 8], strides = [1, 1]} : vector<8x96xf32> to vector<8x8xf32>
    %cst_34 = arith.constant dense<0.000000e+00> : vector<8x16xf32>
    %98 = tpu.matmul %96, %93, %cst_34 {dimension_numbers = #tpu.dot_dimension_numbers<[1], [1], [0], [0], [0, 0, 1, 0], [], []>} : vector<8x8xf32>, vector<16x8xf32>, vector<8x16xf32> -> vector<8x16xf32>
    %cst_35 = arith.constant 0.204124153 : f32
    %99 = vector.broadcast %cst_35 : f32 to vector<8x16xf32>
    %100 = arith.mulf %98, %99 : vector<8x16xf32>
    %cst_36 = arith.constant dense<0.000000e+00> : vector<8x8xf32>
    %101 = tpu.matmul %96, %95, %cst_36 {dimension_numbers = #tpu.dot_dimension_numbers<[1], [1], [0], [0], [0, 0, 1, 0], [], []>} : vector<8x8xf32>, vector<8x8xf32>, vector<8x8xf32> -> vector<8x8xf32>
    %cst_37 = arith.constant 0.204124153 : f32
    %102 = vector.broadcast %cst_37 : f32 to vector<8x8xf32>
    %103 = arith.mulf %101, %102 : vector<8x8xf32>
    %104 = arith.mulf %100, %100 : vector<8x16xf32>
    %105 = arith.mulf %103, %103 : vector<8x8xf32>
    %cst_38 = arith.constant dense<0xFF800000> : vector<8xf32>
    %106 = vector.multi_reduction <maximumf>, %104, %cst_38 [1] : vector<8x16xf32> to vector<8xf32>
    %107 = vector.shape_cast %106 : vector<8xf32> to vector<8x1xf32>
    %cst_39 = arith.constant dense<0xFF800000> : vector<8xf32>
    %108 = vector.multi_reduction <maximumf>, %105, %cst_39 [1] : vector<8x8xf32> to vector<8xf32>
    %109 = vector.shape_cast %108 : vector<8xf32> to vector<8x1xf32>
    %110 = arith.maximumf %107, %109 : vector<8x1xf32>
    %cst_40 = arith.constant 1.000000e+00 : f32
    %111 = vector.broadcast %cst_40 : f32 to vector<8x1xf32>
    %112 = arith.divf %111, %110 : vector<8x1xf32>
    %113 = vector.broadcast %112 : vector<8x1xf32> to vector<8x16xf32>
    %114 = arith.mulf %104, %113 : vector<8x16xf32>
    %115 = vector.broadcast %112 : vector<8x1xf32> to vector<8x8xf32>
    %116 = arith.mulf %105, %115 : vector<8x8xf32>
    %cst_41 = arith.constant dense<0.000000e+00> : vector<8x8xf32>
    %117 = tpu.matmul %114, %94, %cst_41 {dimension_numbers = #tpu.dot_dimension_numbers<[1], [0], [0], [1], [0, 0, 1, 1], [], []>} : vector<8x16xf32>, vector<16x8xf32>, vector<8x8xf32> -> vector<8x8xf32>
    %cst_42 = arith.constant dense<0.000000e+00> : vector<8x8xf32>
    %118 = tpu.matmul %116, %97, %cst_42 {dimension_numbers = #tpu.dot_dimension_numbers<[1], [0], [0], [1], [0, 0, 1, 1], [], []>} : vector<8x8xf32>, vector<8x8xf32>, vector<8x8xf32> -> vector<8x8xf32>
    %119 = arith.addf %117, %118 : vector<8x8xf32>
    %cst_43 = arith.constant dense<0.000000e+00> : vector<8x32xf32>
    %120 = tpu.matmul %119, %12, %cst_43 {dimension_numbers = #tpu.dot_dimension_numbers<[1], [0], [0], [1], [0, 0, 1, 1], [], []>} : vector<8x8xf32>, vector<8x32xf32>, vector<8x32xf32> -> vector<8x32xf32>
    %121 = arith.addf %11, %120 : vector<8x32xf32>
    %cst_44 = arith.constant 9.99999997E-7 : f32
    %122 = vector.broadcast %cst_44 : f32 to vector<8x16xf32>
    %123 = arith.addf %114, %122 : vector<8x16xf32>
    %124 = math.log %123 : vector<8x16xf32>
    %125 = vector.shape_cast %124 : vector<8x16xf32> to vector<1x8x16xf32>
    %cst_45 = arith.constant dense<0.000000e+00> : vector<1xf32>
    %126 = vector.multi_reduction <add>, %125, %cst_45 [1, 2] : vector<1x8x16xf32> to vector<1xf32>
    %127 = vector.shape_cast %126 : vector<1xf32> to vector<1x1x1xf32>
    %128 = vector.extract %127[0, 0, 0] : f32 from vector<1x1x1xf32>
    %129 = vector.broadcast %128 : f32 to vector<1x1xf32>
    %cst_46 = arith.constant 9.99999997E-7 : f32
    %130 = vector.broadcast %cst_46 : f32 to vector<8x8xf32>
    %131 = arith.addf %116, %130 : vector<8x8xf32>
    %132 = math.log %131 : vector<8x8xf32>
    %133 = vector.shape_cast %132 : vector<8x8xf32> to vector<1x8x8xf32>
    %cst_47 = arith.constant dense<0.000000e+00> : vector<1xf32>
    %134 = vector.multi_reduction <add>, %133, %cst_47 [1, 2] : vector<1x8x8xf32> to vector<1xf32>
    %135 = vector.shape_cast %134 : vector<1xf32> to vector<1x1x1xf32>
    %136 = vector.extract %135[0, 0, 0] : f32 from vector<1x1x1xf32>
    %137 = vector.broadcast %136 : f32 to vector<1x1xf32>
    %138 = arith.addf %129, %137 : vector<1x1xf32>
    %139 = arith.addf %61, %138 : vector<1x1xf32>
    %cst_48 = arith.constant dense<0.000000e+00> : vector<16xf32>
    %140 = vector.multi_reduction <add>, %114, %cst_48 [0] : vector<8x16xf32> to vector<16xf32>
    %141 = vector.shape_cast %140 : vector<16xf32> to vector<1x16xf32>
    %142 = vector.shape_cast %114 : vector<8x16xf32> to vector<1x8x16xf32>
    %cst_49 = arith.constant dense<0.000000e+00> : vector<1xf32>
    %143 = vector.multi_reduction <add>, %142, %cst_49 [1, 2] : vector<1x8x16xf32> to vector<1xf32>
    %144 = vector.shape_cast %143 : vector<1xf32> to vector<1x1x1xf32>
    %145 = vector.extract %144[0, 0, 0] : f32 from vector<1x1x1xf32>
    %146 = vector.broadcast %145 : f32 to vector<1x1xf32>
    %147 = vector.shape_cast %116 : vector<8x8xf32> to vector<1x8x8xf32>
    %cst_50 = arith.constant dense<0.000000e+00> : vector<1xf32>
    %148 = vector.multi_reduction <add>, %147, %cst_50 [1, 2] : vector<1x8x8xf32> to vector<1xf32>
    %149 = vector.shape_cast %148 : vector<1xf32> to vector<1x1x1xf32>
    %150 = vector.extract %149[0, 0, 0] : f32 from vector<1x1x1xf32>
    %151 = vector.broadcast %150 : f32 to vector<1x1xf32>
    %152 = arith.addf %146, %151 : vector<1x1xf32>
    %cst_51 = arith.constant 0.0416666679 : f32
    %153 = vector.broadcast %cst_51 : f32 to vector<1x1xf32>
    %154 = arith.mulf %152, %153 : vector<1x1xf32>
    %155 = vector.broadcast %154 : vector<1x1xf32> to vector<1x16xf32>
    %156 = arith.divf %141, %155 : vector<1x16xf32>
    %cst_52 = arith.constant 1.000000e+00 : f32
    %157 = vector.broadcast %cst_52 : f32 to vector<1x16xf32>
    %158 = arith.subf %156, %157 : vector<1x16xf32>
    %cst_53 = arith.constant 0.00999999977 : f32
    %159 = vector.broadcast %cst_53 : f32 to vector<1x16xf32>
    %160 = arith.subf %158, %159 : vector<1x16xf32>
    %c1_i32 = arith.constant 1 : i32
    %161 = vector.broadcast %c1_i32 : i32 to vector<8x16xi32>
    %162 = arith.cmpi eq, %8, %161 : vector<8x16xi32>
    %cst_54 = arith.constant 1.000000e+00 : f32
    %cst_55 = arith.constant 0.000000e+00 : f32
    %163 = vector.broadcast %cst_54 : f32 to vector<8x16xf32>
    %164 = vector.broadcast %cst_55 : f32 to vector<8x16xf32>
    %165 = arith.select %162, %163, %164 : vector<8x16xi1>, vector<8x16xf32>
    %166 = vector.broadcast %160 : vector<1x16xf32> to vector<8x16xf32>
    %167 = arith.mulf %165, %166 : vector<8x16xf32>
    %168 = arith.addf %90, %167 : vector<8x16xf32>
    %169 = vector.extract_strided_slice %1 {offsets = [8, 0], sizes = [8, 32], strides = [1, 1]} : vector<32x32xf32> to vector<8x32xf32>
    %170 = vector.extract_strided_slice %4 {offsets = [32, 0], sizes = [16, 96], strides = [1, 1]} : vector<128x96xf32> to vector<16x96xf32>
    %171 = vector.extract_strided_slice %6 {offsets = [0, 0], sizes = [8, 96], strides = [1, 1]} : vector<16x96xf32> to vector<8x96xf32>
    %172 = vector.extract_strided_slice %170 {offsets = [0, 8], sizes = [16, 8], strides = [1, 1]} : vector<16x96xf32> to vector<16x8xf32>
    %173 = vector.extract_strided_slice %170 {offsets = [0, 72], sizes = [16, 8], strides = [1, 1]} : vector<16x96xf32> to vector<16x8xf32>
    %174 = vector.extract_strided_slice %171 {offsets = [0, 8], sizes = [8, 8], strides = [1, 1]} : vector<8x96xf32> to vector<8x8xf32>
    %175 = vector.extract_strided_slice %171 {offsets = [0, 40], sizes = [8, 8], strides = [1, 1]} : vector<8x96xf32> to vector<8x8xf32>
    %176 = vector.extract_strided_slice %171 {offsets = [0, 72], sizes = [8, 8], strides = [1, 1]} : vector<8x96xf32> to vector<8x8xf32>
    %cst_56 = arith.constant dense<0.000000e+00> : vector<8x16xf32>
    %177 = tpu.matmul %175, %172, %cst_56 {dimension_numbers = #tpu.dot_dimension_numbers<[1], [1], [0], [0], [0, 0, 1, 0], [], []>} : vector<8x8xf32>, vector<16x8xf32>, vector<8x16xf32> -> vector<8x16xf32>
    %cst_57 = arith.constant 0.204124153 : f32
    %178 = vector.broadcast %cst_57 : f32 to vector<8x16xf32>
    %179 = arith.mulf %177, %178 : vector<8x16xf32>
    %cst_58 = arith.constant dense<0.000000e+00> : vector<8x8xf32>
    %180 = tpu.matmul %175, %174, %cst_58 {dimension_numbers = #tpu.dot_dimension_numbers<[1], [1], [0], [0], [0, 0, 1, 0], [], []>} : vector<8x8xf32>, vector<8x8xf32>, vector<8x8xf32> -> vector<8x8xf32>
    %cst_59 = arith.constant 0.204124153 : f32
    %181 = vector.broadcast %cst_59 : f32 to vector<8x8xf32>
    %182 = arith.mulf %180, %181 : vector<8x8xf32>
    %183 = arith.mulf %179, %179 : vector<8x16xf32>
    %184 = arith.mulf %182, %182 : vector<8x8xf32>
    %cst_60 = arith.constant dense<0xFF800000> : vector<8xf32>
    %185 = vector.multi_reduction <maximumf>, %183, %cst_60 [1] : vector<8x16xf32> to vector<8xf32>
    %186 = vector.shape_cast %185 : vector<8xf32> to vector<8x1xf32>
    %cst_61 = arith.constant dense<0xFF800000> : vector<8xf32>
    %187 = vector.multi_reduction <maximumf>, %184, %cst_61 [1] : vector<8x8xf32> to vector<8xf32>
    %188 = vector.shape_cast %187 : vector<8xf32> to vector<8x1xf32>
    %189 = arith.maximumf %186, %188 : vector<8x1xf32>
    %cst_62 = arith.constant 1.000000e+00 : f32
    %190 = vector.broadcast %cst_62 : f32 to vector<8x1xf32>
    %191 = arith.divf %190, %189 : vector<8x1xf32>
    %192 = vector.broadcast %191 : vector<8x1xf32> to vector<8x16xf32>
    %193 = arith.mulf %183, %192 : vector<8x16xf32>
    %194 = vector.broadcast %191 : vector<8x1xf32> to vector<8x8xf32>
    %195 = arith.mulf %184, %194 : vector<8x8xf32>
    %cst_63 = arith.constant dense<0.000000e+00> : vector<8x8xf32>
    %196 = tpu.matmul %193, %173, %cst_63 {dimension_numbers = #tpu.dot_dimension_numbers<[1], [0], [0], [1], [0, 0, 1, 1], [], []>} : vector<8x16xf32>, vector<16x8xf32>, vector<8x8xf32> -> vector<8x8xf32>
    %cst_64 = arith.constant dense<0.000000e+00> : vector<8x8xf32>
    %197 = tpu.matmul %195, %176, %cst_64 {dimension_numbers = #tpu.dot_dimension_numbers<[1], [0], [0], [1], [0, 0, 1, 1], [], []>} : vector<8x8xf32>, vector<8x8xf32>, vector<8x8xf32> -> vector<8x8xf32>
    %198 = arith.addf %196, %197 : vector<8x8xf32>
    %cst_65 = arith.constant dense<0.000000e+00> : vector<8x32xf32>
    %199 = tpu.matmul %198, %169, %cst_65 {dimension_numbers = #tpu.dot_dimension_numbers<[1], [0], [0], [1], [0, 0, 1, 1], [], []>} : vector<8x8xf32>, vector<8x32xf32>, vector<8x32xf32> -> vector<8x32xf32>
    %200 = arith.addf %43, %199 : vector<8x32xf32>
    %cst_66 = arith.constant 9.99999997E-7 : f32
    %201 = vector.broadcast %cst_66 : f32 to vector<8x16xf32>
    %202 = arith.addf %193, %201 : vector<8x16xf32>
    %203 = math.log %202 : vector<8x16xf32>
    %204 = vector.shape_cast %203 : vector<8x16xf32> to vector<1x8x16xf32>
    %cst_67 = arith.constant dense<0.000000e+00> : vector<1xf32>
    %205 = vector.multi_reduction <add>, %204, %cst_67 [1, 2] : vector<1x8x16xf32> to vector<1xf32>
    %206 = vector.shape_cast %205 : vector<1xf32> to vector<1x1x1xf32>
    %207 = vector.extract %206[0, 0, 0] : f32 from vector<1x1x1xf32>
    %208 = vector.broadcast %207 : f32 to vector<1x1xf32>
    %cst_68 = arith.constant 9.99999997E-7 : f32
    %209 = vector.broadcast %cst_68 : f32 to vector<8x8xf32>
    %210 = arith.addf %195, %209 : vector<8x8xf32>
    %211 = math.log %210 : vector<8x8xf32>
    %212 = vector.shape_cast %211 : vector<8x8xf32> to vector<1x8x8xf32>
    %cst_69 = arith.constant dense<0.000000e+00> : vector<1xf32>
    %213 = vector.multi_reduction <add>, %212, %cst_69 [1, 2] : vector<1x8x8xf32> to vector<1xf32>
    %214 = vector.shape_cast %213 : vector<1xf32> to vector<1x1x1xf32>
    %215 = vector.extract %214[0, 0, 0] : f32 from vector<1x1x1xf32>
    %216 = vector.broadcast %215 : f32 to vector<1x1xf32>
    %217 = arith.addf %208, %216 : vector<1x1xf32>
    %218 = arith.addf %139, %217 : vector<1x1xf32>
    %cst_70 = arith.constant dense<0.000000e+00> : vector<16xf32>
    %219 = vector.multi_reduction <add>, %193, %cst_70 [0] : vector<8x16xf32> to vector<16xf32>
    %220 = vector.shape_cast %219 : vector<16xf32> to vector<1x16xf32>
    %221 = vector.shape_cast %193 : vector<8x16xf32> to vector<1x8x16xf32>
    %cst_71 = arith.constant dense<0.000000e+00> : vector<1xf32>
    %222 = vector.multi_reduction <add>, %221, %cst_71 [1, 2] : vector<1x8x16xf32> to vector<1xf32>
    %223 = vector.shape_cast %222 : vector<1xf32> to vector<1x1x1xf32>
    %224 = vector.extract %223[0, 0, 0] : f32 from vector<1x1x1xf32>
    %225 = vector.broadcast %224 : f32 to vector<1x1xf32>
    %226 = vector.shape_cast %195 : vector<8x8xf32> to vector<1x8x8xf32>
    %cst_72 = arith.constant dense<0.000000e+00> : vector<1xf32>
    %227 = vector.multi_reduction <add>, %226, %cst_72 [1, 2] : vector<1x8x8xf32> to vector<1xf32>
    %228 = vector.shape_cast %227 : vector<1xf32> to vector<1x1x1xf32>
    %229 = vector.extract %228[0, 0, 0] : f32 from vector<1x1x1xf32>
    %230 = vector.broadcast %229 : f32 to vector<1x1xf32>
    %231 = arith.addf %225, %230 : vector<1x1xf32>
    %cst_73 = arith.constant 0.0416666679 : f32
    %232 = vector.broadcast %cst_73 : f32 to vector<1x1xf32>
    %233 = arith.mulf %231, %232 : vector<1x1xf32>
    %234 = vector.broadcast %233 : vector<1x1xf32> to vector<1x16xf32>
    %235 = arith.divf %220, %234 : vector<1x16xf32>
    %cst_74 = arith.constant 1.000000e+00 : f32
    %236 = vector.broadcast %cst_74 : f32 to vector<1x16xf32>
    %237 = arith.subf %235, %236 : vector<1x16xf32>
    %cst_75 = arith.constant 0.00999999977 : f32
    %238 = vector.broadcast %cst_75 : f32 to vector<1x16xf32>
    %239 = arith.subf %237, %238 : vector<1x16xf32>
    %c2_i32 = arith.constant 2 : i32
    %240 = vector.broadcast %c2_i32 : i32 to vector<8x16xi32>
    %241 = arith.cmpi eq, %8, %240 : vector<8x16xi32>
    %cst_76 = arith.constant 1.000000e+00 : f32
    %cst_77 = arith.constant 0.000000e+00 : f32
    %242 = vector.broadcast %cst_76 : f32 to vector<8x16xf32>
    %243 = vector.broadcast %cst_77 : f32 to vector<8x16xf32>
    %244 = arith.select %241, %242, %243 : vector<8x16xi1>, vector<8x16xf32>
    %245 = vector.broadcast %239 : vector<1x16xf32> to vector<8x16xf32>
    %246 = arith.mulf %244, %245 : vector<8x16xf32>
    %247 = arith.addf %168, %246 : vector<8x16xf32>
    %248 = vector.extract_strided_slice %4 {offsets = [48, 0], sizes = [16, 96], strides = [1, 1]} : vector<128x96xf32> to vector<16x96xf32>
    %249 = vector.extract_strided_slice %6 {offsets = [8, 0], sizes = [8, 96], strides = [1, 1]} : vector<16x96xf32> to vector<8x96xf32>
    %250 = vector.extract_strided_slice %248 {offsets = [0, 8], sizes = [16, 8], strides = [1, 1]} : vector<16x96xf32> to vector<16x8xf32>
    %251 = vector.extract_strided_slice %248 {offsets = [0, 72], sizes = [16, 8], strides = [1, 1]} : vector<16x96xf32> to vector<16x8xf32>
    %252 = vector.extract_strided_slice %249 {offsets = [0, 8], sizes = [8, 8], strides = [1, 1]} : vector<8x96xf32> to vector<8x8xf32>
    %253 = vector.extract_strided_slice %249 {offsets = [0, 40], sizes = [8, 8], strides = [1, 1]} : vector<8x96xf32> to vector<8x8xf32>
    %254 = vector.extract_strided_slice %249 {offsets = [0, 72], sizes = [8, 8], strides = [1, 1]} : vector<8x96xf32> to vector<8x8xf32>
    %cst_78 = arith.constant dense<0.000000e+00> : vector<8x16xf32>
    %255 = tpu.matmul %253, %250, %cst_78 {dimension_numbers = #tpu.dot_dimension_numbers<[1], [1], [0], [0], [0, 0, 1, 0], [], []>} : vector<8x8xf32>, vector<16x8xf32>, vector<8x16xf32> -> vector<8x16xf32>
    %cst_79 = arith.constant 0.204124153 : f32
    %256 = vector.broadcast %cst_79 : f32 to vector<8x16xf32>
    %257 = arith.mulf %255, %256 : vector<8x16xf32>
    %cst_80 = arith.constant dense<0.000000e+00> : vector<8x8xf32>
    %258 = tpu.matmul %253, %252, %cst_80 {dimension_numbers = #tpu.dot_dimension_numbers<[1], [1], [0], [0], [0, 0, 1, 0], [], []>} : vector<8x8xf32>, vector<8x8xf32>, vector<8x8xf32> -> vector<8x8xf32>
    %cst_81 = arith.constant 0.204124153 : f32
    %259 = vector.broadcast %cst_81 : f32 to vector<8x8xf32>
    %260 = arith.mulf %258, %259 : vector<8x8xf32>
    %261 = arith.mulf %257, %257 : vector<8x16xf32>
    %262 = arith.mulf %260, %260 : vector<8x8xf32>
    %cst_82 = arith.constant dense<0xFF800000> : vector<8xf32>
    %263 = vector.multi_reduction <maximumf>, %261, %cst_82 [1] : vector<8x16xf32> to vector<8xf32>
    %264 = vector.shape_cast %263 : vector<8xf32> to vector<8x1xf32>
    %cst_83 = arith.constant dense<0xFF800000> : vector<8xf32>
    %265 = vector.multi_reduction <maximumf>, %262, %cst_83 [1] : vector<8x8xf32> to vector<8xf32>
    %266 = vector.shape_cast %265 : vector<8xf32> to vector<8x1xf32>
    %267 = arith.maximumf %264, %266 : vector<8x1xf32>
    %cst_84 = arith.constant 1.000000e+00 : f32
    %268 = vector.broadcast %cst_84 : f32 to vector<8x1xf32>
    %269 = arith.divf %268, %267 : vector<8x1xf32>
    %270 = vector.broadcast %269 : vector<8x1xf32> to vector<8x16xf32>
    %271 = arith.mulf %261, %270 : vector<8x16xf32>
    %272 = vector.broadcast %269 : vector<8x1xf32> to vector<8x8xf32>
    %273 = arith.mulf %262, %272 : vector<8x8xf32>
    %cst_85 = arith.constant dense<0.000000e+00> : vector<8x8xf32>
    %274 = tpu.matmul %271, %251, %cst_85 {dimension_numbers = #tpu.dot_dimension_numbers<[1], [0], [0], [1], [0, 0, 1, 1], [], []>} : vector<8x16xf32>, vector<16x8xf32>, vector<8x8xf32> -> vector<8x8xf32>
    %cst_86 = arith.constant dense<0.000000e+00> : vector<8x8xf32>
    %275 = tpu.matmul %273, %254, %cst_86 {dimension_numbers = #tpu.dot_dimension_numbers<[1], [0], [0], [1], [0, 0, 1, 1], [], []>} : vector<8x8xf32>, vector<8x8xf32>, vector<8x8xf32> -> vector<8x8xf32>
    %276 = arith.addf %274, %275 : vector<8x8xf32>
    %cst_87 = arith.constant dense<0.000000e+00> : vector<8x32xf32>
    %277 = tpu.matmul %276, %169, %cst_87 {dimension_numbers = #tpu.dot_dimension_numbers<[1], [0], [0], [1], [0, 0, 1, 1], [], []>} : vector<8x8xf32>, vector<8x32xf32>, vector<8x32xf32> -> vector<8x32xf32>
    %278 = arith.addf %121, %277 : vector<8x32xf32>
    %cst_88 = arith.constant 9.99999997E-7 : f32
    %279 = vector.broadcast %cst_88 : f32 to vector<8x16xf32>
    %280 = arith.addf %271, %279 : vector<8x16xf32>
    %281 = math.log %280 : vector<8x16xf32>
    %282 = vector.shape_cast %281 : vector<8x16xf32> to vector<1x8x16xf32>
    %cst_89 = arith.constant dense<0.000000e+00> : vector<1xf32>
    %283 = vector.multi_reduction <add>, %282, %cst_89 [1, 2] : vector<1x8x16xf32> to vector<1xf32>
    %284 = vector.shape_cast %283 : vector<1xf32> to vector<1x1x1xf32>
    %285 = vector.extract %284[0, 0, 0] : f32 from vector<1x1x1xf32>
    %286 = vector.broadcast %285 : f32 to vector<1x1xf32>
    %cst_90 = arith.constant 9.99999997E-7 : f32
    %287 = vector.broadcast %cst_90 : f32 to vector<8x8xf32>
    %288 = arith.addf %273, %287 : vector<8x8xf32>
    %289 = math.log %288 : vector<8x8xf32>
    %290 = vector.shape_cast %289 : vector<8x8xf32> to vector<1x8x8xf32>
    %cst_91 = arith.constant dense<0.000000e+00> : vector<1xf32>
    %291 = vector.multi_reduction <add>, %290, %cst_91 [1, 2] : vector<1x8x8xf32> to vector<1xf32>
    %292 = vector.shape_cast %291 : vector<1xf32> to vector<1x1x1xf32>
    %293 = vector.extract %292[0, 0, 0] : f32 from vector<1x1x1xf32>
    %294 = vector.broadcast %293 : f32 to vector<1x1xf32>
    %295 = arith.addf %286, %294 : vector<1x1xf32>
    %296 = arith.addf %218, %295 : vector<1x1xf32>
    %cst_92 = arith.constant dense<0.000000e+00> : vector<16xf32>
    %297 = vector.multi_reduction <add>, %271, %cst_92 [0] : vector<8x16xf32> to vector<16xf32>
    %298 = vector.shape_cast %297 : vector<16xf32> to vector<1x16xf32>
    %299 = vector.shape_cast %271 : vector<8x16xf32> to vector<1x8x16xf32>
    %cst_93 = arith.constant dense<0.000000e+00> : vector<1xf32>
    %300 = vector.multi_reduction <add>, %299, %cst_93 [1, 2] : vector<1x8x16xf32> to vector<1xf32>
    %301 = vector.shape_cast %300 : vector<1xf32> to vector<1x1x1xf32>
    %302 = vector.extract %301[0, 0, 0] : f32 from vector<1x1x1xf32>
    %303 = vector.broadcast %302 : f32 to vector<1x1xf32>
    %304 = vector.shape_cast %273 : vector<8x8xf32> to vector<1x8x8xf32>
    %cst_94 = arith.constant dense<0.000000e+00> : vector<1xf32>
    %305 = vector.multi_reduction <add>, %304, %cst_94 [1, 2] : vector<1x8x8xf32> to vector<1xf32>
    %306 = vector.shape_cast %305 : vector<1xf32> to vector<1x1x1xf32>
    %307 = vector.extract %306[0, 0, 0] : f32 from vector<1x1x1xf32>
    %308 = vector.broadcast %307 : f32 to vector<1x1xf32>
    %309 = arith.addf %303, %308 : vector<1x1xf32>
    %cst_95 = arith.constant 0.0416666679 : f32
    %310 = vector.broadcast %cst_95 : f32 to vector<1x1xf32>
    %311 = arith.mulf %309, %310 : vector<1x1xf32>
    %312 = vector.broadcast %311 : vector<1x1xf32> to vector<1x16xf32>
    %313 = arith.divf %298, %312 : vector<1x16xf32>
    %cst_96 = arith.constant 1.000000e+00 : f32
    %314 = vector.broadcast %cst_96 : f32 to vector<1x16xf32>
    %315 = arith.subf %313, %314 : vector<1x16xf32>
    %cst_97 = arith.constant 0.00999999977 : f32
    %316 = vector.broadcast %cst_97 : f32 to vector<1x16xf32>
    %317 = arith.subf %315, %316 : vector<1x16xf32>
    %c3_i32 = arith.constant 3 : i32
    %318 = vector.broadcast %c3_i32 : i32 to vector<8x16xi32>
    %319 = arith.cmpi eq, %8, %318 : vector<8x16xi32>
    %cst_98 = arith.constant 1.000000e+00 : f32
    %cst_99 = arith.constant 0.000000e+00 : f32
    %320 = vector.broadcast %cst_98 : f32 to vector<8x16xf32>
    %321 = vector.broadcast %cst_99 : f32 to vector<8x16xf32>
    %322 = arith.select %319, %320, %321 : vector<8x16xi1>, vector<8x16xf32>
    %323 = vector.broadcast %317 : vector<1x16xf32> to vector<8x16xf32>
    %324 = arith.mulf %322, %323 : vector<8x16xf32>
    %325 = arith.addf %247, %324 : vector<8x16xf32>
    %326 = vector.extract_strided_slice %1 {offsets = [16, 0], sizes = [8, 32], strides = [1, 1]} : vector<32x32xf32> to vector<8x32xf32>
    %327 = vector.extract_strided_slice %4 {offsets = [64, 0], sizes = [16, 96], strides = [1, 1]} : vector<128x96xf32> to vector<16x96xf32>
    %328 = vector.extract_strided_slice %6 {offsets = [0, 0], sizes = [8, 96], strides = [1, 1]} : vector<16x96xf32> to vector<8x96xf32>
    %329 = vector.extract_strided_slice %327 {offsets = [0, 16], sizes = [16, 8], strides = [1, 1]} : vector<16x96xf32> to vector<16x8xf32>
    %330 = vector.extract_strided_slice %327 {offsets = [0, 80], sizes = [16, 8], strides = [1, 1]} : vector<16x96xf32> to vector<16x8xf32>
    %331 = vector.extract_strided_slice %328 {offsets = [0, 16], sizes = [8, 8], strides = [1, 1]} : vector<8x96xf32> to vector<8x8xf32>
    %332 = vector.extract_strided_slice %328 {offsets = [0, 48], sizes = [8, 8], strides = [1, 1]} : vector<8x96xf32> to vector<8x8xf32>
    %333 = vector.extract_strided_slice %328 {offsets = [0, 80], sizes = [8, 8], strides = [1, 1]} : vector<8x96xf32> to vector<8x8xf32>
    %cst_100 = arith.constant dense<0.000000e+00> : vector<8x16xf32>
    %334 = tpu.matmul %332, %329, %cst_100 {dimension_numbers = #tpu.dot_dimension_numbers<[1], [1], [0], [0], [0, 0, 1, 0], [], []>} : vector<8x8xf32>, vector<16x8xf32>, vector<8x16xf32> -> vector<8x16xf32>
    %cst_101 = arith.constant 0.204124153 : f32
    %335 = vector.broadcast %cst_101 : f32 to vector<8x16xf32>
    %336 = arith.mulf %334, %335 : vector<8x16xf32>
    %cst_102 = arith.constant dense<0.000000e+00> : vector<8x8xf32>
    %337 = tpu.matmul %332, %331, %cst_102 {dimension_numbers = #tpu.dot_dimension_numbers<[1], [1], [0], [0], [0, 0, 1, 0], [], []>} : vector<8x8xf32>, vector<8x8xf32>, vector<8x8xf32> -> vector<8x8xf32>
    %cst_103 = arith.constant 0.204124153 : f32
    %338 = vector.broadcast %cst_103 : f32 to vector<8x8xf32>
    %339 = arith.mulf %337, %338 : vector<8x8xf32>
    %340 = arith.mulf %336, %336 : vector<8x16xf32>
    %341 = arith.mulf %339, %339 : vector<8x8xf32>
    %cst_104 = arith.constant dense<0xFF800000> : vector<8xf32>
    %342 = vector.multi_reduction <maximumf>, %340, %cst_104 [1] : vector<8x16xf32> to vector<8xf32>
    %343 = vector.shape_cast %342 : vector<8xf32> to vector<8x1xf32>
    %cst_105 = arith.constant dense<0xFF800000> : vector<8xf32>
    %344 = vector.multi_reduction <maximumf>, %341, %cst_105 [1] : vector<8x8xf32> to vector<8xf32>
    %345 = vector.shape_cast %344 : vector<8xf32> to vector<8x1xf32>
    %346 = arith.maximumf %343, %345 : vector<8x1xf32>
    %cst_106 = arith.constant 1.000000e+00 : f32
    %347 = vector.broadcast %cst_106 : f32 to vector<8x1xf32>
    %348 = arith.divf %347, %346 : vector<8x1xf32>
    %349 = vector.broadcast %348 : vector<8x1xf32> to vector<8x16xf32>
    %350 = arith.mulf %340, %349 : vector<8x16xf32>
    %351 = vector.broadcast %348 : vector<8x1xf32> to vector<8x8xf32>
    %352 = arith.mulf %341, %351 : vector<8x8xf32>
    %cst_107 = arith.constant dense<0.000000e+00> : vector<8x8xf32>
    %353 = tpu.matmul %350, %330, %cst_107 {dimension_numbers = #tpu.dot_dimension_numbers<[1], [0], [0], [1], [0, 0, 1, 1], [], []>} : vector<8x16xf32>, vector<16x8xf32>, vector<8x8xf32> -> vector<8x8xf32>
    %cst_108 = arith.constant dense<0.000000e+00> : vector<8x8xf32>
    %354 = tpu.matmul %352, %333, %cst_108 {dimension_numbers = #tpu.dot_dimension_numbers<[1], [0], [0], [1], [0, 0, 1, 1], [], []>} : vector<8x8xf32>, vector<8x8xf32>, vector<8x8xf32> -> vector<8x8xf32>
    %355 = arith.addf %353, %354 : vector<8x8xf32>
    %cst_109 = arith.constant dense<0.000000e+00> : vector<8x32xf32>
    %356 = tpu.matmul %355, %326, %cst_109 {dimension_numbers = #tpu.dot_dimension_numbers<[1], [0], [0], [1], [0, 0, 1, 1], [], []>} : vector<8x8xf32>, vector<8x32xf32>, vector<8x32xf32> -> vector<8x32xf32>
    %357 = arith.addf %200, %356 : vector<8x32xf32>
    %cst_110 = arith.constant 9.99999997E-7 : f32
    %358 = vector.broadcast %cst_110 : f32 to vector<8x16xf32>
    %359 = arith.addf %350, %358 : vector<8x16xf32>
    %360 = math.log %359 : vector<8x16xf32>
    %361 = vector.shape_cast %360 : vector<8x16xf32> to vector<1x8x16xf32>
    %cst_111 = arith.constant dense<0.000000e+00> : vector<1xf32>
    %362 = vector.multi_reduction <add>, %361, %cst_111 [1, 2] : vector<1x8x16xf32> to vector<1xf32>
    %363 = vector.shape_cast %362 : vector<1xf32> to vector<1x1x1xf32>
    %364 = vector.extract %363[0, 0, 0] : f32 from vector<1x1x1xf32>
    %365 = vector.broadcast %364 : f32 to vector<1x1xf32>
    %cst_112 = arith.constant 9.99999997E-7 : f32
    %366 = vector.broadcast %cst_112 : f32 to vector<8x8xf32>
    %367 = arith.addf %352, %366 : vector<8x8xf32>
    %368 = math.log %367 : vector<8x8xf32>
    %369 = vector.shape_cast %368 : vector<8x8xf32> to vector<1x8x8xf32>
    %cst_113 = arith.constant dense<0.000000e+00> : vector<1xf32>
    %370 = vector.multi_reduction <add>, %369, %cst_113 [1, 2] : vector<1x8x8xf32> to vector<1xf32>
    %371 = vector.shape_cast %370 : vector<1xf32> to vector<1x1x1xf32>
    %372 = vector.extract %371[0, 0, 0] : f32 from vector<1x1x1xf32>
    %373 = vector.broadcast %372 : f32 to vector<1x1xf32>
    %374 = arith.addf %365, %373 : vector<1x1xf32>
    %375 = arith.addf %296, %374 : vector<1x1xf32>
    %cst_114 = arith.constant dense<0.000000e+00> : vector<16xf32>
    %376 = vector.multi_reduction <add>, %350, %cst_114 [0] : vector<8x16xf32> to vector<16xf32>
    %377 = vector.shape_cast %376 : vector<16xf32> to vector<1x16xf32>
    %378 = vector.shape_cast %350 : vector<8x16xf32> to vector<1x8x16xf32>
    %cst_115 = arith.constant dense<0.000000e+00> : vector<1xf32>
    %379 = vector.multi_reduction <add>, %378, %cst_115 [1, 2] : vector<1x8x16xf32> to vector<1xf32>
    %380 = vector.shape_cast %379 : vector<1xf32> to vector<1x1x1xf32>
    %381 = vector.extract %380[0, 0, 0] : f32 from vector<1x1x1xf32>
    %382 = vector.broadcast %381 : f32 to vector<1x1xf32>
    %383 = vector.shape_cast %352 : vector<8x8xf32> to vector<1x8x8xf32>
    %cst_116 = arith.constant dense<0.000000e+00> : vector<1xf32>
    %384 = vector.multi_reduction <add>, %383, %cst_116 [1, 2] : vector<1x8x8xf32> to vector<1xf32>
    %385 = vector.shape_cast %384 : vector<1xf32> to vector<1x1x1xf32>
    %386 = vector.extract %385[0, 0, 0] : f32 from vector<1x1x1xf32>
    %387 = vector.broadcast %386 : f32 to vector<1x1xf32>
    %388 = arith.addf %382, %387 : vector<1x1xf32>
    %cst_117 = arith.constant 0.0416666679 : f32
    %389 = vector.broadcast %cst_117 : f32 to vector<1x1xf32>
    %390 = arith.mulf %388, %389 : vector<1x1xf32>
    %391 = vector.broadcast %390 : vector<1x1xf32> to vector<1x16xf32>
    %392 = arith.divf %377, %391 : vector<1x16xf32>
    %cst_118 = arith.constant 1.000000e+00 : f32
    %393 = vector.broadcast %cst_118 : f32 to vector<1x16xf32>
    %394 = arith.subf %392, %393 : vector<1x16xf32>
    %cst_119 = arith.constant 0.00999999977 : f32
    %395 = vector.broadcast %cst_119 : f32 to vector<1x16xf32>
    %396 = arith.subf %394, %395 : vector<1x16xf32>
    %c4_i32 = arith.constant 4 : i32
    %397 = vector.broadcast %c4_i32 : i32 to vector<8x16xi32>
    %398 = arith.cmpi eq, %8, %397 : vector<8x16xi32>
    %cst_120 = arith.constant 1.000000e+00 : f32
    %cst_121 = arith.constant 0.000000e+00 : f32
    %399 = vector.broadcast %cst_120 : f32 to vector<8x16xf32>
    %400 = vector.broadcast %cst_121 : f32 to vector<8x16xf32>
    %401 = arith.select %398, %399, %400 : vector<8x16xi1>, vector<8x16xf32>
    %402 = vector.broadcast %396 : vector<1x16xf32> to vector<8x16xf32>
    %403 = arith.mulf %401, %402 : vector<8x16xf32>
    %404 = arith.addf %325, %403 : vector<8x16xf32>
    %405 = vector.extract_strided_slice %4 {offsets = [80, 0], sizes = [16, 96], strides = [1, 1]} : vector<128x96xf32> to vector<16x96xf32>
    %406 = vector.extract_strided_slice %6 {offsets = [8, 0], sizes = [8, 96], strides = [1, 1]} : vector<16x96xf32> to vector<8x96xf32>
    %407 = vector.extract_strided_slice %405 {offsets = [0, 16], sizes = [16, 8], strides = [1, 1]} : vector<16x96xf32> to vector<16x8xf32>
    %408 = vector.extract_strided_slice %405 {offsets = [0, 80], sizes = [16, 8], strides = [1, 1]} : vector<16x96xf32> to vector<16x8xf32>
    %409 = vector.extract_strided_slice %406 {offsets = [0, 16], sizes = [8, 8], strides = [1, 1]} : vector<8x96xf32> to vector<8x8xf32>
    %410 = vector.extract_strided_slice %406 {offsets = [0, 48], sizes = [8, 8], strides = [1, 1]} : vector<8x96xf32> to vector<8x8xf32>
    %411 = vector.extract_strided_slice %406 {offsets = [0, 80], sizes = [8, 8], strides = [1, 1]} : vector<8x96xf32> to vector<8x8xf32>
    %cst_122 = arith.constant dense<0.000000e+00> : vector<8x16xf32>
    %412 = tpu.matmul %410, %407, %cst_122 {dimension_numbers = #tpu.dot_dimension_numbers<[1], [1], [0], [0], [0, 0, 1, 0], [], []>} : vector<8x8xf32>, vector<16x8xf32>, vector<8x16xf32> -> vector<8x16xf32>
    %cst_123 = arith.constant 0.204124153 : f32
    %413 = vector.broadcast %cst_123 : f32 to vector<8x16xf32>
    %414 = arith.mulf %412, %413 : vector<8x16xf32>
    %cst_124 = arith.constant dense<0.000000e+00> : vector<8x8xf32>
    %415 = tpu.matmul %410, %409, %cst_124 {dimension_numbers = #tpu.dot_dimension_numbers<[1], [1], [0], [0], [0, 0, 1, 0], [], []>} : vector<8x8xf32>, vector<8x8xf32>, vector<8x8xf32> -> vector<8x8xf32>
    %cst_125 = arith.constant 0.204124153 : f32
    %416 = vector.broadcast %cst_125 : f32 to vector<8x8xf32>
    %417 = arith.mulf %415, %416 : vector<8x8xf32>
    %418 = arith.mulf %414, %414 : vector<8x16xf32>
    %419 = arith.mulf %417, %417 : vector<8x8xf32>
    %cst_126 = arith.constant dense<0xFF800000> : vector<8xf32>
    %420 = vector.multi_reduction <maximumf>, %418, %cst_126 [1] : vector<8x16xf32> to vector<8xf32>
    %421 = vector.shape_cast %420 : vector<8xf32> to vector<8x1xf32>
    %cst_127 = arith.constant dense<0xFF800000> : vector<8xf32>
    %422 = vector.multi_reduction <maximumf>, %419, %cst_127 [1] : vector<8x8xf32> to vector<8xf32>
    %423 = vector.shape_cast %422 : vector<8xf32> to vector<8x1xf32>
    %424 = arith.maximumf %421, %423 : vector<8x1xf32>
    %cst_128 = arith.constant 1.000000e+00 : f32
    %425 = vector.broadcast %cst_128 : f32 to vector<8x1xf32>
    %426 = arith.divf %425, %424 : vector<8x1xf32>
    %427 = vector.broadcast %426 : vector<8x1xf32> to vector<8x16xf32>
    %428 = arith.mulf %418, %427 : vector<8x16xf32>
    %429 = vector.broadcast %426 : vector<8x1xf32> to vector<8x8xf32>
    %430 = arith.mulf %419, %429 : vector<8x8xf32>
    %cst_129 = arith.constant dense<0.000000e+00> : vector<8x8xf32>
    %431 = tpu.matmul %428, %408, %cst_129 {dimension_numbers = #tpu.dot_dimension_numbers<[1], [0], [0], [1], [0, 0, 1, 1], [], []>} : vector<8x16xf32>, vector<16x8xf32>, vector<8x8xf32> -> vector<8x8xf32>
    %cst_130 = arith.constant dense<0.000000e+00> : vector<8x8xf32>
    %432 = tpu.matmul %430, %411, %cst_130 {dimension_numbers = #tpu.dot_dimension_numbers<[1], [0], [0], [1], [0, 0, 1, 1], [], []>} : vector<8x8xf32>, vector<8x8xf32>, vector<8x8xf32> -> vector<8x8xf32>
    %433 = arith.addf %431, %432 : vector<8x8xf32>
    %cst_131 = arith.constant dense<0.000000e+00> : vector<8x32xf32>
    %434 = tpu.matmul %433, %326, %cst_131 {dimension_numbers = #tpu.dot_dimension_numbers<[1], [0], [0], [1], [0, 0, 1, 1], [], []>} : vector<8x8xf32>, vector<8x32xf32>, vector<8x32xf32> -> vector<8x32xf32>
    %435 = arith.addf %278, %434 : vector<8x32xf32>
    %cst_132 = arith.constant 9.99999997E-7 : f32
    %436 = vector.broadcast %cst_132 : f32 to vector<8x16xf32>
    %437 = arith.addf %428, %436 : vector<8x16xf32>
    %438 = math.log %437 : vector<8x16xf32>
    %439 = vector.shape_cast %438 : vector<8x16xf32> to vector<1x8x16xf32>
    %cst_133 = arith.constant dense<0.000000e+00> : vector<1xf32>
    %440 = vector.multi_reduction <add>, %439, %cst_133 [1, 2] : vector<1x8x16xf32> to vector<1xf32>
    %441 = vector.shape_cast %440 : vector<1xf32> to vector<1x1x1xf32>
    %442 = vector.extract %441[0, 0, 0] : f32 from vector<1x1x1xf32>
    %443 = vector.broadcast %442 : f32 to vector<1x1xf32>
    %cst_134 = arith.constant 9.99999997E-7 : f32
    %444 = vector.broadcast %cst_134 : f32 to vector<8x8xf32>
    %445 = arith.addf %430, %444 : vector<8x8xf32>
    %446 = math.log %445 : vector<8x8xf32>
    %447 = vector.shape_cast %446 : vector<8x8xf32> to vector<1x8x8xf32>
    %cst_135 = arith.constant dense<0.000000e+00> : vector<1xf32>
    %448 = vector.multi_reduction <add>, %447, %cst_135 [1, 2] : vector<1x8x8xf32> to vector<1xf32>
    %449 = vector.shape_cast %448 : vector<1xf32> to vector<1x1x1xf32>
    %450 = vector.extract %449[0, 0, 0] : f32 from vector<1x1x1xf32>
    %451 = vector.broadcast %450 : f32 to vector<1x1xf32>
    %452 = arith.addf %443, %451 : vector<1x1xf32>
    %453 = arith.addf %375, %452 : vector<1x1xf32>
    %cst_136 = arith.constant dense<0.000000e+00> : vector<16xf32>
    %454 = vector.multi_reduction <add>, %428, %cst_136 [0] : vector<8x16xf32> to vector<16xf32>
    %455 = vector.shape_cast %454 : vector<16xf32> to vector<1x16xf32>
    %456 = vector.shape_cast %428 : vector<8x16xf32> to vector<1x8x16xf32>
    %cst_137 = arith.constant dense<0.000000e+00> : vector<1xf32>
    %457 = vector.multi_reduction <add>, %456, %cst_137 [1, 2] : vector<1x8x16xf32> to vector<1xf32>
    %458 = vector.shape_cast %457 : vector<1xf32> to vector<1x1x1xf32>
    %459 = vector.extract %458[0, 0, 0] : f32 from vector<1x1x1xf32>
    %460 = vector.broadcast %459 : f32 to vector<1x1xf32>
    %461 = vector.shape_cast %430 : vector<8x8xf32> to vector<1x8x8xf32>
    %cst_138 = arith.constant dense<0.000000e+00> : vector<1xf32>
    %462 = vector.multi_reduction <add>, %461, %cst_138 [1, 2] : vector<1x8x8xf32> to vector<1xf32>
    %463 = vector.shape_cast %462 : vector<1xf32> to vector<1x1x1xf32>
    %464 = vector.extract %463[0, 0, 0] : f32 from vector<1x1x1xf32>
    %465 = vector.broadcast %464 : f32 to vector<1x1xf32>
    %466 = arith.addf %460, %465 : vector<1x1xf32>
    %cst_139 = arith.constant 0.0416666679 : f32
    %467 = vector.broadcast %cst_139 : f32 to vector<1x1xf32>
    %468 = arith.mulf %466, %467 : vector<1x1xf32>
    %469 = vector.broadcast %468 : vector<1x1xf32> to vector<1x16xf32>
    %470 = arith.divf %455, %469 : vector<1x16xf32>
    %cst_140 = arith.constant 1.000000e+00 : f32
    %471 = vector.broadcast %cst_140 : f32 to vector<1x16xf32>
    %472 = arith.subf %470, %471 : vector<1x16xf32>
    %cst_141 = arith.constant 0.00999999977 : f32
    %473 = vector.broadcast %cst_141 : f32 to vector<1x16xf32>
    %474 = arith.subf %472, %473 : vector<1x16xf32>
    %c5_i32 = arith.constant 5 : i32
    %475 = vector.broadcast %c5_i32 : i32 to vector<8x16xi32>
    %476 = arith.cmpi eq, %8, %475 : vector<8x16xi32>
    %cst_142 = arith.constant 1.000000e+00 : f32
    %cst_143 = arith.constant 0.000000e+00 : f32
    %477 = vector.broadcast %cst_142 : f32 to vector<8x16xf32>
    %478 = vector.broadcast %cst_143 : f32 to vector<8x16xf32>
    %479 = arith.select %476, %477, %478 : vector<8x16xi1>, vector<8x16xf32>
    %480 = vector.broadcast %474 : vector<1x16xf32> to vector<8x16xf32>
    %481 = arith.mulf %479, %480 : vector<8x16xf32>
    %482 = arith.addf %404, %481 : vector<8x16xf32>
    %483 = vector.extract_strided_slice %1 {offsets = [24, 0], sizes = [8, 32], strides = [1, 1]} : vector<32x32xf32> to vector<8x32xf32>
    %484 = vector.extract_strided_slice %4 {offsets = [96, 0], sizes = [16, 96], strides = [1, 1]} : vector<128x96xf32> to vector<16x96xf32>
    %485 = vector.extract_strided_slice %6 {offsets = [0, 0], sizes = [8, 96], strides = [1, 1]} : vector<16x96xf32> to vector<8x96xf32>
    %486 = vector.extract_strided_slice %484 {offsets = [0, 24], sizes = [16, 8], strides = [1, 1]} : vector<16x96xf32> to vector<16x8xf32>
    %487 = vector.extract_strided_slice %484 {offsets = [0, 88], sizes = [16, 8], strides = [1, 1]} : vector<16x96xf32> to vector<16x8xf32>
    %488 = vector.extract_strided_slice %485 {offsets = [0, 24], sizes = [8, 8], strides = [1, 1]} : vector<8x96xf32> to vector<8x8xf32>
    %489 = vector.extract_strided_slice %485 {offsets = [0, 56], sizes = [8, 8], strides = [1, 1]} : vector<8x96xf32> to vector<8x8xf32>
    %490 = vector.extract_strided_slice %485 {offsets = [0, 88], sizes = [8, 8], strides = [1, 1]} : vector<8x96xf32> to vector<8x8xf32>
    %cst_144 = arith.constant dense<0.000000e+00> : vector<8x16xf32>
    %491 = tpu.matmul %489, %486, %cst_144 {dimension_numbers = #tpu.dot_dimension_numbers<[1], [1], [0], [0], [0, 0, 1, 0], [], []>} : vector<8x8xf32>, vector<16x8xf32>, vector<8x16xf32> -> vector<8x16xf32>
    %cst_145 = arith.constant 0.204124153 : f32
    %492 = vector.broadcast %cst_145 : f32 to vector<8x16xf32>
    %493 = arith.mulf %491, %492 : vector<8x16xf32>
    %cst_146 = arith.constant dense<0.000000e+00> : vector<8x8xf32>
    %494 = tpu.matmul %489, %488, %cst_146 {dimension_numbers = #tpu.dot_dimension_numbers<[1], [1], [0], [0], [0, 0, 1, 0], [], []>} : vector<8x8xf32>, vector<8x8xf32>, vector<8x8xf32> -> vector<8x8xf32>
    %cst_147 = arith.constant 0.204124153 : f32
    %495 = vector.broadcast %cst_147 : f32 to vector<8x8xf32>
    %496 = arith.mulf %494, %495 : vector<8x8xf32>
    %497 = arith.mulf %493, %493 : vector<8x16xf32>
    %498 = arith.mulf %496, %496 : vector<8x8xf32>
    %cst_148 = arith.constant dense<0xFF800000> : vector<8xf32>
    %499 = vector.multi_reduction <maximumf>, %497, %cst_148 [1] : vector<8x16xf32> to vector<8xf32>
    %500 = vector.shape_cast %499 : vector<8xf32> to vector<8x1xf32>
    %cst_149 = arith.constant dense<0xFF800000> : vector<8xf32>
    %501 = vector.multi_reduction <maximumf>, %498, %cst_149 [1] : vector<8x8xf32> to vector<8xf32>
    %502 = vector.shape_cast %501 : vector<8xf32> to vector<8x1xf32>
    %503 = arith.maximumf %500, %502 : vector<8x1xf32>
    %cst_150 = arith.constant 1.000000e+00 : f32
    %504 = vector.broadcast %cst_150 : f32 to vector<8x1xf32>
    %505 = arith.divf %504, %503 : vector<8x1xf32>
    %506 = vector.broadcast %505 : vector<8x1xf32> to vector<8x16xf32>
    %507 = arith.mulf %497, %506 : vector<8x16xf32>
    %508 = vector.broadcast %505 : vector<8x1xf32> to vector<8x8xf32>
    %509 = arith.mulf %498, %508 : vector<8x8xf32>
    %cst_151 = arith.constant dense<0.000000e+00> : vector<8x8xf32>
    %510 = tpu.matmul %507, %487, %cst_151 {dimension_numbers = #tpu.dot_dimension_numbers<[1], [0], [0], [1], [0, 0, 1, 1], [], []>} : vector<8x16xf32>, vector<16x8xf32>, vector<8x8xf32> -> vector<8x8xf32>
    %cst_152 = arith.constant dense<0.000000e+00> : vector<8x8xf32>
    %511 = tpu.matmul %509, %490, %cst_152 {dimension_numbers = #tpu.dot_dimension_numbers<[1], [0], [0], [1], [0, 0, 1, 1], [], []>} : vector<8x8xf32>, vector<8x8xf32>, vector<8x8xf32> -> vector<8x8xf32>
    %512 = arith.addf %510, %511 : vector<8x8xf32>
    %cst_153 = arith.constant dense<0.000000e+00> : vector<8x32xf32>
    %513 = tpu.matmul %512, %483, %cst_153 {dimension_numbers = #tpu.dot_dimension_numbers<[1], [0], [0], [1], [0, 0, 1, 1], [], []>} : vector<8x8xf32>, vector<8x32xf32>, vector<8x32xf32> -> vector<8x32xf32>
    %514 = arith.addf %357, %513 : vector<8x32xf32>
    %cst_154 = arith.constant 9.99999997E-7 : f32
    %515 = vector.broadcast %cst_154 : f32 to vector<8x16xf32>
    %516 = arith.addf %507, %515 : vector<8x16xf32>
    %517 = math.log %516 : vector<8x16xf32>
    %518 = vector.shape_cast %517 : vector<8x16xf32> to vector<1x8x16xf32>
    %cst_155 = arith.constant dense<0.000000e+00> : vector<1xf32>
    %519 = vector.multi_reduction <add>, %518, %cst_155 [1, 2] : vector<1x8x16xf32> to vector<1xf32>
    %520 = vector.shape_cast %519 : vector<1xf32> to vector<1x1x1xf32>
    %521 = vector.extract %520[0, 0, 0] : f32 from vector<1x1x1xf32>
    %522 = vector.broadcast %521 : f32 to vector<1x1xf32>
    %cst_156 = arith.constant 9.99999997E-7 : f32
    %523 = vector.broadcast %cst_156 : f32 to vector<8x8xf32>
    %524 = arith.addf %509, %523 : vector<8x8xf32>
    %525 = math.log %524 : vector<8x8xf32>
    %526 = vector.shape_cast %525 : vector<8x8xf32> to vector<1x8x8xf32>
    %cst_157 = arith.constant dense<0.000000e+00> : vector<1xf32>
    %527 = vector.multi_reduction <add>, %526, %cst_157 [1, 2] : vector<1x8x8xf32> to vector<1xf32>
    %528 = vector.shape_cast %527 : vector<1xf32> to vector<1x1x1xf32>
    %529 = vector.extract %528[0, 0, 0] : f32 from vector<1x1x1xf32>
    %530 = vector.broadcast %529 : f32 to vector<1x1xf32>
    %531 = arith.addf %522, %530 : vector<1x1xf32>
    %532 = arith.addf %453, %531 : vector<1x1xf32>
    %cst_158 = arith.constant dense<0.000000e+00> : vector<16xf32>
    %533 = vector.multi_reduction <add>, %507, %cst_158 [0] : vector<8x16xf32> to vector<16xf32>
    %534 = vector.shape_cast %533 : vector<16xf32> to vector<1x16xf32>
    %535 = vector.shape_cast %507 : vector<8x16xf32> to vector<1x8x16xf32>
    %cst_159 = arith.constant dense<0.000000e+00> : vector<1xf32>
    %536 = vector.multi_reduction <add>, %535, %cst_159 [1, 2] : vector<1x8x16xf32> to vector<1xf32>
    %537 = vector.shape_cast %536 : vector<1xf32> to vector<1x1x1xf32>
    %538 = vector.extract %537[0, 0, 0] : f32 from vector<1x1x1xf32>
    %539 = vector.broadcast %538 : f32 to vector<1x1xf32>
    %540 = vector.shape_cast %509 : vector<8x8xf32> to vector<1x8x8xf32>
    %cst_160 = arith.constant dense<0.000000e+00> : vector<1xf32>
    %541 = vector.multi_reduction <add>, %540, %cst_160 [1, 2] : vector<1x8x8xf32> to vector<1xf32>
    %542 = vector.shape_cast %541 : vector<1xf32> to vector<1x1x1xf32>
    %543 = vector.extract %542[0, 0, 0] : f32 from vector<1x1x1xf32>
    %544 = vector.broadcast %543 : f32 to vector<1x1xf32>
    %545 = arith.addf %539, %544 : vector<1x1xf32>
    %cst_161 = arith.constant 0.0416666679 : f32
    %546 = vector.broadcast %cst_161 : f32 to vector<1x1xf32>
    %547 = arith.mulf %545, %546 : vector<1x1xf32>
    %548 = vector.broadcast %547 : vector<1x1xf32> to vector<1x16xf32>
    %549 = arith.divf %534, %548 : vector<1x16xf32>
    %cst_162 = arith.constant 1.000000e+00 : f32
    %550 = vector.broadcast %cst_162 : f32 to vector<1x16xf32>
    %551 = arith.subf %549, %550 : vector<1x16xf32>
    %cst_163 = arith.constant 0.00999999977 : f32
    %552 = vector.broadcast %cst_163 : f32 to vector<1x16xf32>
    %553 = arith.subf %551, %552 : vector<1x16xf32>
    %c6_i32 = arith.constant 6 : i32
    %554 = vector.broadcast %c6_i32 : i32 to vector<8x16xi32>
    %555 = arith.cmpi eq, %8, %554 : vector<8x16xi32>
    %cst_164 = arith.constant 1.000000e+00 : f32
    %cst_165 = arith.constant 0.000000e+00 : f32
    %556 = vector.broadcast %cst_164 : f32 to vector<8x16xf32>
    %557 = vector.broadcast %cst_165 : f32 to vector<8x16xf32>
    %558 = arith.select %555, %556, %557 : vector<8x16xi1>, vector<8x16xf32>
    %559 = vector.broadcast %553 : vector<1x16xf32> to vector<8x16xf32>
    %560 = arith.mulf %558, %559 : vector<8x16xf32>
    %561 = arith.addf %482, %560 : vector<8x16xf32>
    %562 = vector.extract_strided_slice %4 {offsets = [112, 0], sizes = [16, 96], strides = [1, 1]} : vector<128x96xf32> to vector<16x96xf32>
    %563 = vector.extract_strided_slice %6 {offsets = [8, 0], sizes = [8, 96], strides = [1, 1]} : vector<16x96xf32> to vector<8x96xf32>
    %564 = vector.extract_strided_slice %562 {offsets = [0, 24], sizes = [16, 8], strides = [1, 1]} : vector<16x96xf32> to vector<16x8xf32>
    %565 = vector.extract_strided_slice %562 {offsets = [0, 88], sizes = [16, 8], strides = [1, 1]} : vector<16x96xf32> to vector<16x8xf32>
    %566 = vector.extract_strided_slice %563 {offsets = [0, 24], sizes = [8, 8], strides = [1, 1]} : vector<8x96xf32> to vector<8x8xf32>
    %567 = vector.extract_strided_slice %563 {offsets = [0, 56], sizes = [8, 8], strides = [1, 1]} : vector<8x96xf32> to vector<8x8xf32>
    %568 = vector.extract_strided_slice %563 {offsets = [0, 88], sizes = [8, 8], strides = [1, 1]} : vector<8x96xf32> to vector<8x8xf32>
    %cst_166 = arith.constant dense<0.000000e+00> : vector<8x16xf32>
    %569 = tpu.matmul %567, %564, %cst_166 {dimension_numbers = #tpu.dot_dimension_numbers<[1], [1], [0], [0], [0, 0, 1, 0], [], []>} : vector<8x8xf32>, vector<16x8xf32>, vector<8x16xf32> -> vector<8x16xf32>
    %cst_167 = arith.constant 0.204124153 : f32
    %570 = vector.broadcast %cst_167 : f32 to vector<8x16xf32>
    %571 = arith.mulf %569, %570 : vector<8x16xf32>
    %cst_168 = arith.constant dense<0.000000e+00> : vector<8x8xf32>
    %572 = tpu.matmul %567, %566, %cst_168 {dimension_numbers = #tpu.dot_dimension_numbers<[1], [1], [0], [0], [0, 0, 1, 0], [], []>} : vector<8x8xf32>, vector<8x8xf32>, vector<8x8xf32> -> vector<8x8xf32>
    %cst_169 = arith.constant 0.204124153 : f32
    %573 = vector.broadcast %cst_169 : f32 to vector<8x8xf32>
    %574 = arith.mulf %572, %573 : vector<8x8xf32>
    %575 = arith.mulf %571, %571 : vector<8x16xf32>
    %576 = arith.mulf %574, %574 : vector<8x8xf32>
    %cst_170 = arith.constant dense<0xFF800000> : vector<8xf32>
    %577 = vector.multi_reduction <maximumf>, %575, %cst_170 [1] : vector<8x16xf32> to vector<8xf32>
    %578 = vector.shape_cast %577 : vector<8xf32> to vector<8x1xf32>
    %cst_171 = arith.constant dense<0xFF800000> : vector<8xf32>
    %579 = vector.multi_reduction <maximumf>, %576, %cst_171 [1] : vector<8x8xf32> to vector<8xf32>
    %580 = vector.shape_cast %579 : vector<8xf32> to vector<8x1xf32>
    %581 = arith.maximumf %578, %580 : vector<8x1xf32>
    %cst_172 = arith.constant 1.000000e+00 : f32
    %582 = vector.broadcast %cst_172 : f32 to vector<8x1xf32>
    %583 = arith.divf %582, %581 : vector<8x1xf32>
    %584 = vector.broadcast %583 : vector<8x1xf32> to vector<8x16xf32>
    %585 = arith.mulf %575, %584 : vector<8x16xf32>
    %586 = vector.broadcast %583 : vector<8x1xf32> to vector<8x8xf32>
    %587 = arith.mulf %576, %586 : vector<8x8xf32>
    %cst_173 = arith.constant dense<0.000000e+00> : vector<8x8xf32>
    %588 = tpu.matmul %585, %565, %cst_173 {dimension_numbers = #tpu.dot_dimension_numbers<[1], [0], [0], [1], [0, 0, 1, 1], [], []>} : vector<8x16xf32>, vector<16x8xf32>, vector<8x8xf32> -> vector<8x8xf32>
    %cst_174 = arith.constant dense<0.000000e+00> : vector<8x8xf32>
    %589 = tpu.matmul %587, %568, %cst_174 {dimension_numbers = #tpu.dot_dimension_numbers<[1], [0], [0], [1], [0, 0, 1, 1], [], []>} : vector<8x8xf32>, vector<8x8xf32>, vector<8x8xf32> -> vector<8x8xf32>
    %590 = arith.addf %588, %589 : vector<8x8xf32>
    %cst_175 = arith.constant dense<0.000000e+00> : vector<8x32xf32>
    %591 = tpu.matmul %590, %483, %cst_175 {dimension_numbers = #tpu.dot_dimension_numbers<[1], [0], [0], [1], [0, 0, 1, 1], [], []>} : vector<8x8xf32>, vector<8x32xf32>, vector<8x32xf32> -> vector<8x32xf32>
    %592 = arith.addf %435, %591 : vector<8x32xf32>
    %cst_176 = arith.constant 9.99999997E-7 : f32
    %593 = vector.broadcast %cst_176 : f32 to vector<8x16xf32>
    %594 = arith.addf %585, %593 : vector<8x16xf32>
    %595 = math.log %594 : vector<8x16xf32>
    %596 = vector.shape_cast %595 : vector<8x16xf32> to vector<1x8x16xf32>
    %cst_177 = arith.constant dense<0.000000e+00> : vector<1xf32>
    %597 = vector.multi_reduction <add>, %596, %cst_177 [1, 2] : vector<1x8x16xf32> to vector<1xf32>
    %598 = vector.shape_cast %597 : vector<1xf32> to vector<1x1x1xf32>
    %599 = vector.extract %598[0, 0, 0] : f32 from vector<1x1x1xf32>
    %600 = vector.broadcast %599 : f32 to vector<1x1xf32>
    %cst_178 = arith.constant 9.99999997E-7 : f32
    %601 = vector.broadcast %cst_178 : f32 to vector<8x8xf32>
    %602 = arith.addf %587, %601 : vector<8x8xf32>
    %603 = math.log %602 : vector<8x8xf32>
    %604 = vector.shape_cast %603 : vector<8x8xf32> to vector<1x8x8xf32>
    %cst_179 = arith.constant dense<0.000000e+00> : vector<1xf32>
    %605 = vector.multi_reduction <add>, %604, %cst_179 [1, 2] : vector<1x8x8xf32> to vector<1xf32>
    %606 = vector.shape_cast %605 : vector<1xf32> to vector<1x1x1xf32>
    %607 = vector.extract %606[0, 0, 0] : f32 from vector<1x1x1xf32>
    %608 = vector.broadcast %607 : f32 to vector<1x1xf32>
    %609 = arith.addf %600, %608 : vector<1x1xf32>
    %610 = arith.addf %532, %609 : vector<1x1xf32>
    %cst_180 = arith.constant dense<0.000000e+00> : vector<16xf32>
    %611 = vector.multi_reduction <add>, %585, %cst_180 [0] : vector<8x16xf32> to vector<16xf32>
    %612 = vector.shape_cast %611 : vector<16xf32> to vector<1x16xf32>
    %613 = vector.shape_cast %585 : vector<8x16xf32> to vector<1x8x16xf32>
    %cst_181 = arith.constant dense<0.000000e+00> : vector<1xf32>
    %614 = vector.multi_reduction <add>, %613, %cst_181 [1, 2] : vector<1x8x16xf32> to vector<1xf32>
    %615 = vector.shape_cast %614 : vector<1xf32> to vector<1x1x1xf32>
    %616 = vector.extract %615[0, 0, 0] : f32 from vector<1x1x1xf32>
    %617 = vector.broadcast %616 : f32 to vector<1x1xf32>
    %618 = vector.shape_cast %587 : vector<8x8xf32> to vector<1x8x8xf32>
    %cst_182 = arith.constant dense<0.000000e+00> : vector<1xf32>
    %619 = vector.multi_reduction <add>, %618, %cst_182 [1, 2] : vector<1x8x8xf32> to vector<1xf32>
    %620 = vector.shape_cast %619 : vector<1xf32> to vector<1x1x1xf32>
    %621 = vector.extract %620[0, 0, 0] : f32 from vector<1x1x1xf32>
    %622 = vector.broadcast %621 : f32 to vector<1x1xf32>
    %623 = arith.addf %617, %622 : vector<1x1xf32>
    %cst_183 = arith.constant 0.0416666679 : f32
    %624 = vector.broadcast %cst_183 : f32 to vector<1x1xf32>
    %625 = arith.mulf %623, %624 : vector<1x1xf32>
    %626 = vector.broadcast %625 : vector<1x1xf32> to vector<1x16xf32>
    %627 = arith.divf %612, %626 : vector<1x16xf32>
    %cst_184 = arith.constant 1.000000e+00 : f32
    %628 = vector.broadcast %cst_184 : f32 to vector<1x16xf32>
    %629 = arith.subf %627, %628 : vector<1x16xf32>
    %cst_185 = arith.constant 0.00999999977 : f32
    %630 = vector.broadcast %cst_185 : f32 to vector<1x16xf32>
    %631 = arith.subf %629, %630 : vector<1x16xf32>
    %c7_i32 = arith.constant 7 : i32
    %632 = vector.broadcast %c7_i32 : i32 to vector<8x16xi32>
    %633 = arith.cmpi eq, %8, %632 : vector<8x16xi32>
    %cst_186 = arith.constant 1.000000e+00 : f32
    %cst_187 = arith.constant 0.000000e+00 : f32
    %634 = vector.broadcast %cst_186 : f32 to vector<8x16xf32>
    %635 = vector.broadcast %cst_187 : f32 to vector<8x16xf32>
    %636 = arith.select %633, %634, %635 : vector<8x16xi1>, vector<8x16xf32>
    %637 = vector.broadcast %631 : vector<1x16xf32> to vector<8x16xf32>
    %638 = arith.mulf %636, %637 : vector<8x16xf32>
    %639 = arith.addf %561, %638 : vector<8x16xf32>
    %640 = tpu.concatenate %514, %592 in 0 : vector<8x32xf32>, vector<8x32xf32> -> vector<16x32xf32>
    %641 = vector.broadcast %2 : vector<1x32xf32> to vector<16x32xf32>
    %642 = arith.addf %640, %641 : vector<16x32xf32>
    %c0_188 = arith.constant 0 : index
    %c0_189 = arith.constant 0 : index
    %643 = vector.load %arg5[%c0_188, %c0_189] : memref<24x128xf32, #tpu.memory_space<vmem>>, vector<16x32xf32>
    tpu.vector_store %arg5[%c0_188, %c0_189], %642 {strides = array<i32>} : memref<24x128xf32, #tpu.memory_space<vmem>>, vector<16x32xf32>,
    %c0_190 = arith.constant 0 : index
    %c0_191 = arith.constant 0 : index
    %644 = vector.load %arg4[%c0_190, %c0_191] : memref<8x16xf32, #tpu.memory_space<vmem>>, vector<8x16xf32>
    %645 = arith.addf %644, %639 : vector<8x16xf32>
    %c16 = arith.constant 16 : index
    %c0_192 = arith.constant 0 : index
    %646 = vector.load %arg5[%c16, %c0_192] : memref<24x128xf32, #tpu.memory_space<vmem>>, vector<8x16xf32>
    tpu.vector_store %arg5[%c16, %c0_192], %645 {strides = array<i32>} : memref<24x128xf32, #tpu.memory_space<vmem>>, vector<8x16xf32>,
    %c0_193 = arith.constant 0 : index
    %c32_194 = arith.constant 32 : index
    %647 = vector.load %arg5[%c0_193, %c32_194] : memref<24x128xf32, #tpu.memory_space<vmem>>, vector<1x1xf32>
    tpu.vector_store %arg5[%c0_193, %c32_194], %610 {strides = array<i32>} : memref<24x128xf32, #tpu.memory_space<vmem>>, vector<1x1xf32>,
    return
  }
  func.func @transform_0(%arg0: i32) -> (i32, i32) {
    %c0_i32 = arith.constant 0 : i32
    %c0_i32_0 = arith.constant 0 : i32
    %c0_i32_1 = arith.constant 0 : i32
    return %c0_i32, %c0_i32_0 : i32, i32
  }
  func.func @transform_1(%arg0: i32) -> (i32, i32) {
    %c0_i32 = arith.constant 0 : i32
    %c0_i32_0 = arith.constant 0 : i32
    %c0_i32_1 = arith.constant 0 : i32
    return %c0_i32, %c0_i32_0 : i32, i32
  }
  func.func @transform_2(%arg0: i32) -> (i32, i32) {
    %c0_i32 = arith.constant 0 : i32
    %c0_i32_0 = arith.constant 0 : i32
    %c0_i32_1 = arith.constant 0 : i32
    return %c0_i32, %c0_i32_0 : i32, i32
  }
  func.func @transform_3(%arg0: i32) -> (i32, i32) {
    %c0_i32 = arith.constant 0 : i32
    %c0_i32_0 = arith.constant 0 : i32
    %c0_i32_1 = arith.constant 0 : i32
    return %c0_i32, %c0_i32_0 : i32, i32
  }
  func.func @transform_4(%arg0: i32) -> (i32, i32) {
    %c0_i32 = arith.constant 0 : i32
    %c0_i32_0 = arith.constant 0 : i32
    %c0_i32_1 = arith.constant 0 : i32
    return %c0_i32, %c0_i32_0 : i32, i32
  }
}

</mosaic_0001>

<llo_original>
// kernel: ltm_multihead_forward.1
$region0: #{ltm_multihead_forward.1}
  #allocation0 [shape = 'u32[]', space=smem, size = 0x4, offset = 0x4, fixed_abs, tag = 'smem constant byte address 0x4 - core index']
  #allocation1 [shape = 'u32[144,128]{1,0:T(1,128)}', space=vmem, size = 0x12000, scoped, tag = 'internal scratch']
  %s0 = inlined_call_operand.vmem [shape: f32[128,32], index: 0, kind: input, shape index: {}]
  %s1 = inlined_call_operand.vmem [shape: f32[16,32], index: 1, kind: input, shape index: {}]
  %s2 = inlined_call_operand.vmem [shape: f32[40,128], index: 2, kind: input, shape index: {}]
  %s3 = inlined_call_operand.vmem [shape: f32[8,16], index: 3, kind: input, shape index: {}]
  %s4 = inlined_call_operand.vmem [shape: f32[24,128], index: 4, kind: output, shape index: {}]
  %s5 = sld [smem:[#allocation0]]
  $region26: #{ltm_multihead_forward.1} parent=0
    _
  %s7 = ssub.s32 1, %s5
  %s8 = scalar_select 0, %s7, %s5
  // Predicated region
  $region2: #{ltm_multihead_forward.1} parent=0 // pred_check
    _
  $region3: #{ltm_multihead_forward.1} parent=0 // pred_check_branch
    %10 = sbr.rel (0) target = $region5
  $region4: #{ltm_multihead_forward.1} parent=0 // pred_region
    _
  $region5: #{ltm_multihead_forward.1} parent=0 // pred_fallthru
    _
  // Predicated region
  $region6: #{ltm_multihead_forward.1} parent=0 // pred_check
    _
  $region7: #{ltm_multihead_forward.1} parent=0 // pred_check_branch
    %12 = sbr.rel (0) target = $region9
  $region8: #{ltm_multihead_forward.1} parent=0 // pred_region
    _
  $region9: #{ltm_multihead_forward.1} parent=0 // pred_fallthru
    _
  // Predicated region
  $region10: #{ltm_multihead_forward.1} parent=0 // pred_check
    _
  $region11: #{ltm_multihead_forward.1} parent=0 // pred_check_branch
    %14 = sbr.rel (0) target = $region13
  $region12: #{ltm_multihead_forward.1} parent=0 // pred_region
    _
  $region13: #{ltm_multihead_forward.1} parent=0 // pred_fallthru
    _
  // Predicated region
  $region14: #{ltm_multihead_forward.1} parent=0 // pred_check
    _
  $region15: #{ltm_multihead_forward.1} parent=0 // pred_check_branch
    %16 = sbr.rel (0) target = $region17
  $region16: #{ltm_multihead_forward.1} parent=0 // pred_region
    _
  $region17: #{ltm_multihead_forward.1} parent=0 // pred_fallthru
    _
  %v17 = vld [vmem:[%s2] sm:$0xff]
  %v18 = vld [vmem:[%s2 + $0x8] sm:$0xff]
  %v19 = vld [vmem:[%s2 + $0x10] sm:$0xff]
  %v20 = vld [vmem:[%s2 + $0x18] sm:$0xff]
  %v21 = vld [vmem:[%s2 + $0x20] sm:$0x1]
  %v22 = vld [vmem:[%s0] sm:$0xff]
  %v23 = vld [vmem:[%s0 + $0x8] sm:$0xff]
  %v24 = vld [vmem:[%s0 + $0x10] sm:$0xff]
  %v25 = vld [vmem:[%s0 + $0x18] sm:$0xff]
  %v26 = vld [vmem:[%s0 + $0x20] sm:$0xff]
  %v27 = vld [vmem:[%s0 + $0x28] sm:$0xff]
  %v28 = vld [vmem:[%s0 + $0x30] sm:$0xff]
  %v29 = vld [vmem:[%s0 + $0x38] sm:$0xff]
  %v30 = vld [vmem:[%s0 + $0x40] sm:$0xff]
  %v31 = vld [vmem:[%s0 + $0x48] sm:$0xff]
  %v32 = vld [vmem:[%s0 + $0x50] sm:$0xff]
  %v33 = vld [vmem:[%s0 + $0x58] sm:$0xff]
  %v34 = vld [vmem:[%s0 + $0x60] sm:$0xff]
  %v35 = vld [vmem:[%s0 + $0x68] sm:$0xff]
  %v36 = vld [vmem:[%s0 + $0x70] sm:$0xff]
  %v37 = vld [vmem:[%s0 + $0x78] sm:$0xff]
  %vm38 = vcmask 261120
  %v40 = vsel %vm38, %v22, 0
  %v43 = vsel %vm38, %v23, 0
  %v46 = vsel %vm38, %v24, 0
  %v49 = vsel %vm38, %v25, 0
  %v52 = vsel %vm38, %v26, 0
  %v55 = vsel %vm38, %v27, 0
  %v58 = vsel %vm38, %v28, 0
  %v61 = vsel %vm38, %v29, 0
  %v64 = vsel %vm38, %v30, 0
  %v67 = vsel %vm38, %v31, 0
  %v70 = vsel %vm38, %v32, 0
  %v73 = vsel %vm38, %v33, 0
  %v76 = vsel %vm38, %v34, 0
  %v79 = vsel %vm38, %v35, 0
  %v82 = vsel %vm38, %v36, 0
  %v85 = vsel %vm38, %v37, 0
  %87 = vmatprep.subr.mxu0 0.0
  %88 = vmatpush1.msra.mxu0 0.0
  %89 = vmatprep.subr.mxu0 0.0
  %90 = vmatpush1.msra.mxu0 0.0
  %91 = vmatprep.subr.mxu0 0.0
  %92 = vmatpush1.msra.mxu0 0.0
  %93 = vmatprep.subr.mxu0 0.0
  %94 = vmatpush1.msra.mxu0 0.0
  %95 = vmatprep.subr.mxu0 0.0
  %96 = vmatpush1.msra.mxu0 0.0
  %97 = vmatprep.subr.mxu0 0.0
  %98 = vmatpush1.msra.mxu0 0.0
  %99 = vmatprep.subr.mxu0 0.0
  %100 = vmatpush1.msra.mxu0 0.0
  %101 = vmatprep.subr.mxu0 0.0
  %102 = vmatpush1.msra.mxu0 0.0
  %103 = vmatprep.subr.mxu0 0.0
  %104 = vmatpush1.msra.mxu0 0.0
  %105 = vmatprep.subr.mxu0 0.0
  %106 = vmatpush1.msra.mxu0 0.0
  %107 = vmatprep.subr.mxu0 0.0
  %108 = vmatpush1.msra.mxu0 0.0
  %109 = vmatprep.subr.mxu0 0.0
  %110 = vmatpush1.msra.mxu0 0.0
  %111 = vmatprep.subr.mxu0 0.0
  %112 = vmatpush1.msra.mxu0 %v20
  %113 = vmatprep.subr.mxu0 0.0
  %114 = vmatpush1.msra.mxu0 %v19
  %115 = vmatprep.subr.mxu0 0.0
  %116 = vmatpush1.msra.mxu0 %v18
  %117 = vmatprep.subr.mxu0 0.0
  %118 = vmatpush1.msra.mxu0 %v17
  %119 = vmatprep.subr.mxu0 0.0
  %120 = vmatpush2.msra.mxu0 0.0
  %121 = vmatprep.subr.mxu0 0.0
  %122 = vmatpush2.msra.mxu0 0.0
  %123 = vmatprep.subr.mxu0 0.0
  %124 = vmatpush2.msra.mxu0 0.0
  %125 = vmatprep.subr.mxu0 0.0
  %126 = vmatpush2.msra.mxu0 0.0
  %127 = vmatprep.subr.mxu0 0.0
  %128 = vmatpush2.msra.mxu0 0.0
  %129 = vmatprep.subr.mxu0 0.0
  %130 = vmatpush2.msra.mxu0 0.0
  %131 = vmatprep.subr.mxu0 0.0
  %132 = vmatpush2.msra.mxu0 0.0
  %133 = vmatprep.subr.mxu0 0.0
  %134 = vmatpush2.msra.mxu0 0.0
  %135 = vmatprep.subr.mxu0 0.0
  %136 = vmatpush2.msra.mxu0 0.0
  %137 = vmatprep.subr.mxu0 0.0
  %138 = vmatpush2.msra.mxu0 0.0
  %139 = vmatprep.subr.mxu0 0.0
  %140 = vmatpush2.msra.mxu0 0.0
  %141 = vmatprep.subr.mxu0 0.0
  %142 = vmatpush2.msra.mxu0 0.0
  %143 = vmatprep.subr.mxu0 0.0
  %144 = vmatpush2.msra.mxu0 0.0
  %145 = vmatprep.subr.mxu0 0.0
  %146 = vmatpush2.msra.mxu0 0.0
  %147 = vmatprep.subr.mxu0 0.0
  %148 = vmatpush2.msra.mxu0 0.0
  %149 = vmatprep.subr.mxu0 0.0
  %150 = vmatpush2.msra.mxu0 0.0
  %151 = vmatprep.mubr.f32.mxu0 0.0
  %152 = vmatmul.mubr.f32.gmra.mxu0 %v40
  %v153 = vpop.f32.mrf.mxu0
  %v154 = vadd.f32 0.0, %v153
  %v155 = vpop.f32.mrf.mxu0
  %156 = vmatprep.mubr.f32.mxu0 0.0
  %157 = vmatmul.mubr.f32.gmra.mxu0 %v43
  %v158 = vpop.f32.mrf.mxu0
  %v159 = vadd.f32 0.0, %v158
  %v160 = vpop.f32.mrf.mxu0
  %161 = vmatprep.mubr.f32.mxu0 0.0
  %162 = vmatmul.mubr.f32.gmra.mxu0 %v46
  %v163 = vpop.f32.mrf.mxu0
  %v164 = vadd.f32 0.0, %v163
  %v165 = vpop.f32.mrf.mxu0
  %166 = vmatprep.mubr.f32.mxu0 0.0
  %167 = vmatmul.mubr.f32.gmra.mxu0 %v49
  %v168 = vpop.f32.mrf.mxu0
  %v169 = vadd.f32 0.0, %v168
  %v170 = vpop.f32.mrf.mxu0
  %171 = vmatprep.mubr.f32.mxu0 0.0
  %172 = vmatmul.mubr.f32.gmra.mxu0 %v52
  %v173 = vpop.f32.mrf.mxu0
  %v174 = vadd.f32 0.0, %v173
  %v175 = vpop.f32.mrf.mxu0
  %176 = vmatprep.mubr.f32.mxu0 0.0
  %177 = vmatmul.mubr.f32.gmra.mxu0 %v55
  %v178 = vpop.f32.mrf.mxu0
  %v179 = vadd.f32 0.0, %v178
  %v180 = vpop.f32.mrf.mxu0
  %181 = vmatprep.mubr.f32.mxu0 0.0
  %182 = vmatmul.mubr.f32.gmra.mxu0 %v58
  %v183 = vpop.f32.mrf.mxu0
  %v184 = vadd.f32 0.0, %v183
  %v185 = vpop.f32.mrf.mxu0
  %186 = vmatprep.mubr.f32.mxu0 0.0
  %187 = vmatmul.mubr.f32.gmra.mxu0 %v61
  %v188 = vpop.f32.mrf.mxu0
  %v189 = vadd.f32 0.0, %v188
  %v190 = vpop.f32.mrf.mxu0
  %191 = vmatprep.mubr.f32.mxu0 0.0
  %192 = vmatmul.mubr.f32.gmra.mxu0 %v64
  %v193 = vpop.f32.mrf.mxu0
  %v194 = vadd.f32 0.0, %v193
  %v195 = vpop.f32.mrf.mxu0
  %196 = vmatprep.mubr.f32.mxu0 0.0
  %197 = vmatmul.mubr.f32.gmra.mxu0 %v67
  %v198 = vpop.f32.mrf.mxu0
  %v199 = vadd.f32 0.0, %v198
  %v200 = vpop.f32.mrf.mxu0
  %201 = vmatprep.mubr.f32.mxu0 0.0
  %202 = vmatmul.mubr.f32.gmra.mxu0 %v70
  %v203 = vpop.f32.mrf.mxu0
  %v204 = vadd.f32 0.0, %v203
  %v205 = vpop.f32.mrf.mxu0
  %206 = vmatprep.mubr.f32.mxu0 0.0
  %207 = vmatmul.mubr.f32.gmra.mxu0 %v73
  %v208 = vpop.f32.mrf.mxu0
  %v209 = vadd.f32 0.0, %v208
  %v210 = vpop.f32.mrf.mxu0
  %211 = vmatprep.mubr.f32.mxu0 0.0
  %212 = vmatmul.mubr.f32.gmra.mxu0 %v76
  %v213 = vpop.f32.mrf.mxu0
  %v214 = vadd.f32 0.0, %v213
  %v215 = vpop.f32.mrf.mxu0
  %216 = vmatprep.mubr.f32.mxu0 0.0
  %217 = vmatmul.mubr.f32.gmra.mxu0 %v79
  %v218 = vpop.f32.mrf.mxu0
  %v219 = vadd.f32 0.0, %v218
  %v220 = vpop.f32.mrf.mxu0
  %221 = vmatprep.mubr.f32.mxu0 0.0
  %222 = vmatmul.mubr.f32.gmra.mxu0 %v82
  %v223 = vpop.f32.mrf.mxu0
  %v224 = vadd.f32 0.0, %v223
  %v225 = vpop.f32.mrf.mxu0
  %226 = vmatprep.mubr.f32.mxu0 0.0
  %227 = vmatmul.mubr.f32.gmra.mxu0 %v85
  %v228 = vpop.f32.mrf.mxu0
  %v229 = vadd.f32 0.0, %v228
  %v230 = vpop.f32.mrf.mxu0
  %231 = vdwg.mxu0
  %v232 = vld [vmem:[%s1] sm:$0xff]
  %v233 = vld [vmem:[%s1 + $0x8] sm:$0xff]
  %v235 = vsel %vm38, %v232, 0
  %v238 = vsel %vm38, %v233, 0
  %240 = vmatprep.subr.mxu0 0.0
  %241 = vmatpush1.msra.mxu0 0.0
  %242 = vmatprep.subr.mxu0 0.0
  %243 = vmatpush1.msra.mxu0 0.0
  %244 = vmatprep.subr.mxu0 0.0
  %245 = vmatpush1.msra.mxu0 0.0
  %246 = vmatprep.subr.mxu0 0.0
  %247 = vmatpush1.msra.mxu0 0.0
  %248 = vmatprep.subr.mxu0 0.0
  %249 = vmatpush1.msra.mxu0 0.0
  %250 = vmatprep.subr.mxu0 0.0
  %251 = vmatpush1.msra.mxu0 0.0
  %252 = vmatprep.subr.mxu0 0.0
  %253 = vmatpush1.msra.mxu0 0.0
  %254 = vmatprep.subr.mxu0 0.0
  %255 = vmatpush1.msra.mxu0 0.0
  %256 = vmatprep.subr.mxu0 0.0
  %257 = vmatpush1.msra.mxu0 0.0
  %258 = vmatprep.subr.mxu0 0.0
  %259 = vmatpush1.msra.mxu0 0.0
  %260 = vmatprep.subr.mxu0 0.0
  %261 = vmatpush1.msra.mxu0 0.0
  %262 = vmatprep.subr.mxu0 0.0
  %263 = vmatpush1.msra.mxu0 0.0
  %264 = vmatprep.subr.mxu0 0.0
  %265 = vmatpush1.msra.mxu0 %v20
  %266 = vmatprep.subr.mxu0 0.0
  %267 = vmatpush1.msra.mxu0 %v19
  %268 = vmatprep.subr.mxu0 0.0
  %269 = vmatpush1.msra.mxu0 %v18
  %270 = vmatprep.subr.mxu0 0.0
  %271 = vmatpush1.msra.mxu0 %v17
  %272 = vmatprep.subr.mxu0 0.0
  %273 = vmatpush2.msra.mxu0 0.0
  %274 = vmatprep.subr.mxu0 0.0
  %275 = vmatpush2.msra.mxu0 0.0
  %276 = vmatprep.subr.mxu0 0.0
  %277 = vmatpush2.msra.mxu0 0.0
  %278 = vmatprep.subr.mxu0 0.0
  %279 = vmatpush2.msra.mxu0 0.0
  %280 = vmatprep.subr.mxu0 0.0
  %281 = vmatpush2.msra.mxu0 0.0
  %282 = vmatprep.subr.mxu0 0.0
  %283 = vmatpush2.msra.mxu0 0.0
  %284 = vmatprep.subr.mxu0 0.0
  %285 = vmatpush2.msra.mxu0 0.0
  %286 = vmatprep.subr.mxu0 0.0
  %287 = vmatpush2.msra.mxu0 0.0
  %288 = vmatprep.subr.mxu0 0.0
  %289 = vmatpush2.msra.mxu0 0.0
  %290 = vmatprep.subr.mxu0 0.0
  %291 = vmatpush2.msra.mxu0 0.0
  %292 = vmatprep.subr.mxu0 0.0
  %293 = vmatpush2.msra.mxu0 0.0
  %294 = vmatprep.subr.mxu0 0.0
  %295 = vmatpush2.msra.mxu0 0.0
  %296 = vmatprep.subr.mxu0 0.0
  %297 = vmatpush2.msra.mxu0 0.0
  %298 = vmatprep.subr.mxu0 0.0
  %299 = vmatpush2.msra.mxu0 0.0
  %300 = vmatprep.subr.mxu0 0.0
  %301 = vmatpush2.msra.mxu0 0.0
  %302 = vmatprep.subr.mxu0 0.0
  %303 = vmatpush2.msra.mxu0 0.0
  %304 = vmatprep.mubr.f32.mxu0 0.0
  %305 = vmatmul.mubr.f32.gmra.mxu0 %v235
  %v306 = vpop.f32.mrf.mxu0
  %v307 = vadd.f32 0.0, %v306
  %v308 = vpop.f32.mrf.mxu0
  %309 = vmatprep.mubr.f32.mxu0 0.0
  %310 = vmatmul.mubr.f32.gmra.mxu0 %v238
  %v311 = vpop.f32.mrf.mxu0
  %v312 = vadd.f32 0.0, %v311
  %v313 = vpop.f32.mrf.mxu0
  %314 = vdwg.mxu0
  %v315 = vlaneseq
  %v316 = vshrl.u32 %v315, 7
  %318 = vrot.lane.b32.xlu0 %v307, 96
  %v319 = vpop.permute.xlu0 %318
  %vm320 = vcmask 64512
  %v321 = vsel %vm320, %v319, 0
  %v324 = vsel %vm320, %v154, 0
  %v327 = vsel %vm320, %v159, 0
  %329 = vmatprep.subr.mxu0 0.0
  %330 = vmatpush1.xpose.msra.mxu0 0.0
  %331 = vmatprep.subr.mxu0 0.0
  %332 = vmatpush1.xpose.msra.mxu0 0.0
  %333 = vmatprep.subr.mxu0 0.0
  %334 = vmatpush1.xpose.msra.mxu0 0.0
  %335 = vmatprep.subr.mxu0 0.0
  %336 = vmatpush1.xpose.msra.mxu0 0.0
  %337 = vmatprep.subr.mxu0 0.0
  %338 = vmatpush1.xpose.msra.mxu0 0.0
  %339 = vmatprep.subr.mxu0 0.0
  %340 = vmatpush1.xpose.msra.mxu0 0.0
  %341 = vmatprep.subr.mxu0 0.0
  %342 = vmatpush1.xpose.msra.mxu0 0.0
  %343 = vmatprep.subr.mxu0 0.0
  %344 = vmatpush1.xpose.msra.mxu0 0.0
  %345 = vmatprep.subr.mxu0 0.0
  %346 = vmatpush1.xpose.msra.mxu0 0.0
  %347 = vmatprep.subr.mxu0 0.0
  %348 = vmatpush1.xpose.msra.mxu0 0.0
  %349 = vmatprep.subr.mxu0 0.0
  %350 = vmatpush1.xpose.msra.mxu0 0.0
  %351 = vmatprep.subr.mxu0 0.0
  %352 = vmatpush1.xpose.msra.mxu0 0.0
  %353 = vmatprep.subr.mxu0 0.0
  %354 = vmatpush1.xpose.msra.mxu0 0.0
  %355 = vmatprep.subr.mxu0 0.0
  %356 = vmatpush1.xpose.msra.mxu0 0.0
  %357 = vmatprep.subr.mxu0 0.0
  %358 = vmatpush1.xpose.msra.mxu0 %v327
  %359 = vmatprep.subr.mxu0 0.0
  %360 = vmatpush1.xpose.msra.mxu0 %v324
  %361 = vmatprep.subr.mxu0 0.0
  %362 = vmatpush2.xpose.msra.mxu0 0.0
  %363 = vmatprep.subr.mxu0 0.0
  %364 = vmatpush2.xpose.msra.mxu0 0.0
  %365 = vmatprep.subr.mxu0 0.0
  %366 = vmatpush2.xpose.msra.mxu0 0.0
  %367 = vmatprep.subr.mxu0 0.0
  %368 = vmatpush2.xpose.msra.mxu0 0.0
  %369 = vmatprep.subr.mxu0 0.0
  %370 = vmatpush2.xpose.msra.mxu0 0.0
  %371 = vmatprep.subr.mxu0 0.0
  %372 = vmatpush2.xpose.msra.mxu0 0.0
  %373 = vmatprep.subr.mxu0 0.0
  %374 = vmatpush2.xpose.msra.mxu0 0.0
  %375 = vmatprep.subr.mxu0 0.0
  %376 = vmatpush2.xpose.msra.mxu0 0.0
  %377 = vmatprep.subr.mxu0 0.0
  %378 = vmatpush2.xpose.msra.mxu0 0.0
  %379 = vmatprep.subr.mxu0 0.0
  %380 = vmatpush2.xpose.msra.mxu0 0.0
  %381 = vmatprep.subr.mxu0 0.0
  %382 = vmatpush2.xpose.msra.mxu0 0.0
  %383 = vmatprep.subr.mxu0 0.0
  %384 = vmatpush2.xpose.msra.mxu0 0.0
  %385 = vmatprep.subr.mxu0 0.0
  %386 = vmatpush2.xpose.msra.mxu0 0.0
  %387 = vmatprep.subr.mxu0 0.0
  %388 = vmatpush2.xpose.msra.mxu0 0.0
  %389 = vmatprep.subr.mxu0 0.0
  %390 = vmatpush2.xpose.msra.mxu0 0.0
  %391 = vmatprep.subr.mxu0 0.0
  %392 = vmatpush2.xpose.msra.mxu0 0.0
  %393 = vmatprep.mubr.f32.mxu0 0.0
  %394 = vmatmul.mubr.f32.gmra.mxu0 %v321
  %v395 = vpop.f32.mrf.mxu0
  %v396 = vadd.f32 0.0, %v395
  %v397 = vpop.f32.mrf.mxu0
  %398 = vdwg.mxu0
  %v399 = vmul.f32 %v396, 0.20412415
  %v400 = vsel %vm320, %v307, 0
  %402 = vmatprep.subr.mxu0 0.0
  %403 = vmatpush1.xpose.msra.mxu0 0.0
  %404 = vmatprep.subr.mxu0 0.0
  %405 = vmatpush1.xpose.msra.mxu0 0.0
  %406 = vmatprep.subr.mxu0 0.0
  %407 = vmatpush1.xpose.msra.mxu0 0.0
  %408 = vmatprep.subr.mxu0 0.0
  %409 = vmatpush1.xpose.msra.mxu0 0.0
  %410 = vmatprep.subr.mxu0 0.0
  %411 = vmatpush1.xpose.msra.mxu0 0.0
  %412 = vmatprep.subr.mxu0 0.0
  %413 = vmatpush1.xpose.msra.mxu0 0.0
  %414 = vmatprep.subr.mxu0 0.0
  %415 = vmatpush1.xpose.msra.mxu0 0.0
  %416 = vmatprep.subr.mxu0 0.0
  %417 = vmatpush1.xpose.msra.mxu0 0.0
  %418 = vmatprep.subr.mxu0 0.0
  %419 = vmatpush1.xpose.msra.mxu0 0.0
  %420 = vmatprep.subr.mxu0 0.0
  %421 = vmatpush1.xpose.msra.mxu0 0.0
  %422 = vmatprep.subr.mxu0 0.0
  %423 = vmatpush1.xpose.msra.mxu0 0.0
  %424 = vmatprep.subr.mxu0 0.0
  %425 = vmatpush1.xpose.msra.mxu0 0.0
  %426 = vmatprep.subr.mxu0 0.0
  %427 = vmatpush1.xpose.msra.mxu0 0.0
  %428 = vmatprep.subr.mxu0 0.0
  %429 = vmatpush1.xpose.msra.mxu0 0.0
  %430 = vmatprep.subr.mxu0 0.0
  %431 = vmatpush1.xpose.msra.mxu0 0.0
  %432 = vmatprep.subr.mxu0 0.0
  %433 = vmatpush1.xpose.msra.mxu0 %v400
  %434 = vmatprep.subr.mxu0 0.0
  %435 = vmatpush2.xpose.msra.mxu0 0.0
  %436 = vmatprep.subr.mxu0 0.0
  %437 = vmatpush2.xpose.msra.mxu0 0.0
  %438 = vmatprep.subr.mxu0 0.0
  %439 = vmatpush2.xpose.msra.mxu0 0.0
  %440 = vmatprep.subr.mxu0 0.0
  %441 = vmatpush2.xpose.msra.mxu0 0.0
  %442 = vmatprep.subr.mxu0 0.0
  %443 = vmatpush2.xpose.msra.mxu0 0.0
  %444 = vmatprep.subr.mxu0 0.0
  %445 = vmatpush2.xpose.msra.mxu0 0.0
  %446 = vmatprep.subr.mxu0 0.0
  %447 = vmatpush2.xpose.msra.mxu0 0.0
  %448 = vmatprep.subr.mxu0 0.0
  %449 = vmatpush2.xpose.msra.mxu0 0.0
  %450 = vmatprep.subr.mxu0 0.0
  %451 = vmatpush2.xpose.msra.mxu0 0.0
  %452 = vmatprep.subr.mxu0 0.0
  %453 = vmatpush2.xpose.msra.mxu0 0.0
  %454 = vmatprep.subr.mxu0 0.0
  %455 = vmatpush2.xpose.msra.mxu0 0.0
  %456 = vmatprep.subr.mxu0 0.0
  %457 = vmatpush2.xpose.msra.mxu0 0.0
  %458 = vmatprep.subr.mxu0 0.0
  %459 = vmatpush2.xpose.msra.mxu0 0.0
  %460 = vmatprep.subr.mxu0 0.0
  %461 = vmatpush2.xpose.msra.mxu0 0.0
  %462 = vmatprep.subr.mxu0 0.0
  %463 = vmatpush2.xpose.msra.mxu0 0.0
  %464 = vmatprep.subr.mxu0 0.0
  %465 = vmatpush2.xpose.msra.mxu0 0.0
  %466 = vmatprep.mubr.f32.mxu0 0.0
  %467 = vmatmul.mubr.f32.gmra.mxu0 %v321
  %v468 = vpop.f32.mrf.mxu0
  %v469 = vadd.f32 0.0, %v468
  %v470 = vpop.f32.mrf.mxu0
  %471 = vdwg.mxu0
  %v472 = vmul.f32 %v469, 0.20412415
  %v473 = vmul.f32 %v399, %v399
  %v474 = vmul.f32 %v472, %v472
  %vm475 = vcmask 130048
  %v476 = vsel %vm475, %v473, -inf
  %477 = vmax.xlane.f32.xlu0 %v476
  %v478 = vpop.xlane.xlu0 %477
  %v479 = vsel %vm320, %v474, -inf
  %480 = vmax.xlane.f32.xlu0 %v479
  %v481 = vpop.xlane.xlu0 %480
  %v482 = vmax.f32 %v478, %v481
  %v483 = vrcp.pop %v482
  %v484 = vmul.f32 1.0, %v483
  %v485 = vmul.f32 %v473, %v484
  %v486 = vmul.f32 %v474, %v484
  %487 = vrot.lane.b32.xlu0 %v307, 64
  %v488 = vpop.permute.xlu0 %487
  %v491 = vsel %vm320, %v486, 0
  %493 = vmatprep.subr.mxu0 0.0
  %494 = vmatpush1.msra.mxu0 0.0
  %495 = vmatprep.subr.mxu0 0.0
  %496 = vmatpush1.msra.mxu0 0.0
  %497 = vmatprep.subr.mxu0 0.0
  %498 = vmatpush1.msra.mxu0 0.0
  %499 = vmatprep.subr.mxu0 0.0
  %500 = vmatpush1.msra.mxu0 0.0
  %501 = vmatprep.subr.mxu0 0.0
  %502 = vmatpush1.msra.mxu0 0.0
  %503 = vmatprep.subr.mxu0 0.0
  %504 = vmatpush1.msra.mxu0 0.0
  %505 = vmatprep.subr.mxu0 0.0
  %506 = vmatpush1.msra.mxu0 0.0
  %507 = vmatprep.subr.mxu0 0.0
  %508 = vmatpush1.msra.mxu0 0.0
  %509 = vmatprep.subr.mxu0 0.0
  %510 = vmatpush1.msra.mxu0 0.0
  %511 = vmatprep.subr.mxu0 0.0
  %512 = vmatpush1.msra.mxu0 0.0
  %513 = vmatprep.subr.mxu0 0.0
  %514 = vmatpush1.msra.mxu0 0.0
  %515 = vmatprep.subr.mxu0 0.0
  %516 = vmatpush1.msra.mxu0 0.0
  %517 = vmatprep.subr.mxu0 0.0
  %518 = vmatpush1.msra.mxu0 0.0
  %519 = vmatprep.subr.mxu0 0.0
  %520 = vmatpush1.msra.mxu0 0.0
  %521 = vmatprep.subr.mxu0 0.0
  %522 = vmatpush1.msra.mxu0 0.0
  %523 = vmatprep.subr.mxu0 0.0
  %524 = vmatpush1.msra.mxu0 %v488
  %525 = vmatprep.subr.mxu0 0.0
  %526 = vmatpush2.msra.mxu0 0.0
  %527 = vmatprep.subr.mxu0 0.0
  %528 = vmatpush2.msra.mxu0 0.0
  %529 = vmatprep.subr.mxu0 0.0
  %530 = vmatpush2.msra.mxu0 0.0
  %531 = vmatprep.subr.mxu0 0.0
  %532 = vmatpush2.msra.mxu0 0.0
  %533 = vmatprep.subr.mxu0 0.0
  %534 = vmatpush2.msra.mxu0 0.0
  %535 = vmatprep.subr.mxu0 0.0
  %536 = vmatpush2.msra.mxu0 0.0
  %537 = vmatprep.subr.mxu0 0.0
  %538 = vmatpush2.msra.mxu0 0.0
  %539 = vmatprep.subr.mxu0 0.0
  %540 = vmatpush2.msra.mxu0 0.0
  %541 = vmatprep.subr.mxu0 0.0
  %542 = vmatpush2.msra.mxu0 0.0
  %543 = vmatprep.subr.mxu0 0.0
  %544 = vmatpush2.msra.mxu0 0.0
  %545 = vmatprep.subr.mxu0 0.0
  %546 = vmatpush2.msra.mxu0 0.0
  %547 = vmatprep.subr.mxu0 0.0
  %548 = vmatpush2.msra.mxu0 0.0
  %549 = vmatprep.subr.mxu0 0.0
  %550 = vmatpush2.msra.mxu0 0.0
  %551 = vmatprep.subr.mxu0 0.0
  %552 = vmatpush2.msra.mxu0 0.0
  %553 = vmatprep.subr.mxu0 0.0
  %554 = vmatpush2.msra.mxu0 0.0
  %555 = vmatprep.subr.mxu0 0.0
  %556 = vmatpush2.msra.mxu0 0.0
  %557 = vmatprep.mubr.f32.mxu0 0.0
  %558 = vmatmul.mubr.f32.gmra.mxu0 %v491
  %v559 = vpop.f32.mrf.mxu0
  %v560 = vadd.f32 0.0, %v559
  %v561 = vpop.f32.mrf.mxu0
  %562 = vdwg.mxu0
  %563 = vrot.lane.b32.xlu0 %v154, 64
  %v564 = vpop.permute.xlu0 %563
  %565 = vrot.lane.b32.xlu0 %v159, 64
  %v566 = vpop.permute.xlu0 %565
  %v570 = vsel %vm475, %v485, 0
  %572 = vmatprep.subr.mxu0 0.0
  %573 = vmatpush1.msra.mxu0 0.0
  %574 = vmatprep.subr.mxu0 0.0
  %575 = vmatpush1.msra.mxu0 0.0
  %576 = vmatprep.subr.mxu0 0.0
  %577 = vmatpush1.msra.mxu0 0.0
  %578 = vmatprep.subr.mxu0 0.0
  %579 = vmatpush1.msra.mxu0 0.0
  %580 = vmatprep.subr.mxu0 0.0
  %581 = vmatpush1.msra.mxu0 0.0
  %582 = vmatprep.subr.mxu0 0.0
  %583 = vmatpush1.msra.mxu0 0.0
  %584 = vmatprep.subr.mxu0 0.0
  %585 = vmatpush1.msra.mxu0 0.0
  %586 = vmatprep.subr.mxu0 0.0
  %587 = vmatpush1.msra.mxu0 0.0
  %588 = vmatprep.subr.mxu0 0.0
  %589 = vmatpush1.msra.mxu0 0.0
  %590 = vmatprep.subr.mxu0 0.0
  %591 = vmatpush1.msra.mxu0 0.0
  %592 = vmatprep.subr.mxu0 0.0
  %593 = vmatpush1.msra.mxu0 0.0
  %594 = vmatprep.subr.mxu0 0.0
  %595 = vmatpush1.msra.mxu0 0.0
  %596 = vmatprep.subr.mxu0 0.0
  %597 = vmatpush1.msra.mxu0 0.0
  %598 = vmatprep.subr.mxu0 0.0
  %599 = vmatpush1.msra.mxu0 0.0
  %600 = vmatprep.subr.mxu0 0.0
  %601 = vmatpush1.msra.mxu0 %v566
  %602 = vmatprep.subr.mxu0 0.0
  %603 = vmatpush1.msra.mxu0 %v564
  %604 = vmatprep.subr.mxu0 0.0
  %605 = vmatpush2.msra.mxu0 0.0
  %606 = vmatprep.subr.mxu0 0.0
  %607 = vmatpush2.msra.mxu0 0.0
  %608 = vmatprep.subr.mxu0 0.0
  %609 = vmatpush2.msra.mxu0 0.0
  %610 = vmatprep.subr.mxu0 0.0
  %611 = vmatpush2.msra.mxu0 0.0
  %612 = vmatprep.subr.mxu0 0.0
  %613 = vmatpush2.msra.mxu0 0.0
  %614 = vmatprep.subr.mxu0 0.0
  %615 = vmatpush2.msra.mxu0 0.0
  %616 = vmatprep.subr.mxu0 0.0
  %617 = vmatpush2.msra.mxu0 0.0
  %618 = vmatprep.subr.mxu0 0.0
  %619 = vmatpush2.msra.mxu0 0.0
  %620 = vmatprep.subr.mxu0 0.0
  %621 = vmatpush2.msra.mxu0 0.0
  %622 = vmatprep.subr.mxu0 0.0
  %623 = vmatpush2.msra.mxu0 0.0
  %624 = vmatprep.subr.mxu0 0.0
  %625 = vmatpush2.msra.mxu0 0.0
  %626 = vmatprep.subr.mxu0 0.0
  %627 = vmatpush2.msra.mxu0 0.0
  %628 = vmatprep.subr.mxu0 0.0
  %629 = vmatpush2.msra.mxu0 0.0
  %630 = vmatprep.subr.mxu0 0.0
  %631 = vmatpush2.msra.mxu0 0.0
  %632 = vmatprep.subr.mxu0 0.0
  %633 = vmatpush2.msra.mxu0 0.0
  %634 = vmatprep.subr.mxu0 0.0
  %635 = vmatpush2.msra.mxu0 0.0
  %636 = vmatprep.mubr.f32.mxu0 0.0
  %637 = vmatmul.mubr.f32.gmra.mxu0 %v570
  %v638 = vpop.f32.mrf.mxu0
  %v639 = vadd.f32 %v560, %v638
  %v640 = vpop.f32.mrf.mxu0
  %641 = vdwg.mxu0
  %v642 = vadd.f32 %v485, 1e-06
  %v643 = vlog2.pop %v642
  %v644 = vmul.f32 %v643, 0.6931472
  %v645 = vsel %vm475, %v644, 0.0
  %646 = vadd.xlane.f32.xlu0 %v645
  %v647 = vpop.xlane.xlu0 %646
  %v648 = vrot.slane %v647, 4
  %v649 = vadd.f32 %v647, %v648
  %v650 = vrot.slane %v649, 2
  %v651 = vadd.f32 %v649, %v650
  %v652 = vrot.slane %v651, 1
  %v653 = vadd.f32 %v651, %v652
  %s654 = vtos %v653
  %v655 = vstv %s654
  %v656 = vadd.f32 %v486, 1e-06
  %v657 = vlog2.pop %v656
  %v658 = vmul.f32 %v657, 0.6931472
  %v659 = vsel %vm320, %v658, 0.0
  %660 = vadd.xlane.f32.xlu0 %v659
  %v661 = vpop.xlane.xlu0 %660
  %v662 = vrot.slane %v661, 4
  %v663 = vadd.f32 %v661, %v662
  %v664 = vrot.slane %v663, 2
  %v665 = vadd.f32 %v663, %v664
  %v666 = vrot.slane %v665, 1
  %v667 = vadd.f32 %v665, %v666
  %s668 = vtos %v667
  %v669 = vstv %s668
  %v670 = vadd.f32 %v655, %v669
  %v671 = vadd.f32 %v670, 0.0
  %v672 = vsel %vm475, %v485, 0.0
  %v673 = vrot.slane %v672, 4
  %v674 = vadd.f32 %v672, %v673
  %v675 = vrot.slane %v674, 2
  %v676 = vadd.f32 %v674, %v675
  %v677 = vrot.slane %v676, 1
  %v678 = vadd.f32 %v676, %v677
  %679 = vadd.xlane.f32.xlu0 %v672
  %v680 = vpop.xlane.xlu0 %679
  %v681 = vrot.slane %v680, 4
  %v682 = vadd.f32 %v680, %v681
  %v683 = vrot.slane %v682, 2
  %v684 = vadd.f32 %v682, %v683
  %v685 = vrot.slane %v684, 1
  %v686 = vadd.f32 %v684, %v685
  %s687 = vtos %v686
  %v688 = vstv %s687
  %v689 = vsel %vm320, %v486, 0.0
  %690 = vadd.xlane.f32.xlu0 %v689
  %v691 = vpop.xlane.xlu0 %690
  %v692 = vrot.slane %v691, 4
  %v693 = vadd.f32 %v691, %v692
  %v694 = vrot.slane %v693, 2
  %v695 = vadd.f32 %v693, %v694
  %v696 = vrot.slane %v695, 1
  %v697 = vadd.f32 %v695, %v696
  %s698 = vtos %v697
  %v699 = vstv %s698
  %v700 = vadd.f32 %v688, %v699
  %v701 = vmul.f32 %v700, 0.041666668
  %v702 = vrcp.pop %v701
  %v703 = vmul.f32 %v678, %v702
  %v704 = vsub.f32 %v703, 1.0
  %v705 = vsub.f32 %v704, 0.01
  %vm706 = vcmp.eq.s32.totalorder %v316, 0
  %v707 = vsel %vm706, 1.0, 0.0
  %v708 = vmul.f32 %v707, %v705
  %v709 = vadd.f32 %v708, 0.0
  %711 = vrot.lane.b32.xlu0 %v312, 96
  %v712 = vpop.permute.xlu0 %711
  %v713 = vsel %vm320, %v712, 0
  %v716 = vsel %vm320, %v164, 0
  %v719 = vsel %vm320, %v169, 0
  %721 = vmatprep.subr.mxu0 0.0
  %722 = vmatpush1.xpose.msra.mxu0 0.0
  %723 = vmatprep.subr.mxu0 0.0
  %724 = vmatpush1.xpose.msra.mxu0 0.0
  %725 = vmatprep.subr.mxu0 0.0
  %726 = vmatpush1.xpose.msra.mxu0 0.0
  %727 = vmatprep.subr.mxu0 0.0
  %728 = vmatpush1.xpose.msra.mxu0 0.0
  %729 = vmatprep.subr.mxu0 0.0
  %730 = vmatpush1.xpose.msra.mxu0 0.0
  %731 = vmatprep.subr.mxu0 0.0
  %732 = vmatpush1.xpose.msra.mxu0 0.0
  %733 = vmatprep.subr.mxu0 0.0
  %734 = vmatpush1.xpose.msra.mxu0 0.0
  %735 = vmatprep.subr.mxu0 0.0
  %736 = vmatpush1.xpose.msra.mxu0 0.0
  %737 = vmatprep.subr.mxu0 0.0
  %738 = vmatpush1.xpose.msra.mxu0 0.0
  %739 = vmatprep.subr.mxu0 0.0
  %740 = vmatpush1.xpose.msra.mxu0 0.0
  %741 = vmatprep.subr.mxu0 0.0
  %742 = vmatpush1.xpose.msra.mxu0 0.0
  %743 = vmatprep.subr.mxu0 0.0
  %744 = vmatpush1.xpose.msra.mxu0 0.0
  %745 = vmatprep.subr.mxu0 0.0
  %746 = vmatpush1.xpose.msra.mxu0 0.0
  %747 = vmatprep.subr.mxu0 0.0
  %748 = vmatpush1.xpose.msra.mxu0 0.0
  %749 = vmatprep.subr.mxu0 0.0
  %750 = vmatpush1.xpose.msra.mxu0 %v719
  %751 = vmatprep.subr.mxu0 0.0
  %752 = vmatpush1.xpose.msra.mxu0 %v716
  %753 = vmatprep.subr.mxu0 0.0
  %754 = vmatpush2.xpose.msra.mxu0 0.0
  %755 = vmatprep.subr.mxu0 0.0
  %756 = vmatpush2.xpose.msra.mxu0 0.0
  %757 = vmatprep.subr.mxu0 0.0
  %758 = vmatpush2.xpose.msra.mxu0 0.0
  %759 = vmatprep.subr.mxu0 0.0
  %760 = vmatpush2.xpose.msra.mxu0 0.0
  %761 = vmatprep.subr.mxu0 0.0
  %762 = vmatpush2.xpose.msra.mxu0 0.0
  %763 = vmatprep.subr.mxu0 0.0
  %764 = vmatpush2.xpose.msra.mxu0 0.0
  %765 = vmatprep.subr.mxu0 0.0
  %766 = vmatpush2.xpose.msra.mxu0 0.0
  %767 = vmatprep.subr.mxu0 0.0
  %768 = vmatpush2.xpose.msra.mxu0 0.0
  %769 = vmatprep.subr.mxu0 0.0
  %770 = vmatpush2.xpose.msra.mxu0 0.0
  %771 = vmatprep.subr.mxu0 0.0
  %772 = vmatpush2.xpose.msra.mxu0 0.0
  %773 = vmatprep.subr.mxu0 0.0
  %774 = vmatpush2.xpose.msra.mxu0 0.0
  %775 = vmatprep.subr.mxu0 0.0
  %776 = vmatpush2.xpose.msra.mxu0 0.0
  %777 = vmatprep.subr.mxu0 0.0
  %778 = vmatpush2.xpose.msra.mxu0 0.0
  %779 = vmatprep.subr.mxu0 0.0
  %780 = vmatpush2.xpose.msra.mxu0 0.0
  %781 = vmatprep.subr.mxu0 0.0
  %782 = vmatpush2.xpose.msra.mxu0 0.0
  %783 = vmatprep.subr.mxu0 0.0
  %784 = vmatpush2.xpose.msra.mxu0 0.0
  %785 = vmatprep.mubr.f32.mxu0 0.0
  %786 = vmatmul.mubr.f32.gmra.mxu0 %v713
  %v787 = vpop.f32.mrf.mxu0
  %v788 = vadd.f32 0.0, %v787
  %v789 = vpop.f32.mrf.mxu0
  %790 = vdwg.mxu0
  %v791 = vmul.f32 %v788, 0.20412415
  %v792 = vsel %vm320, %v312, 0
  %794 = vmatprep.subr.mxu0 0.0
  %795 = vmatpush1.xpose.msra.mxu0 0.0
  %796 = vmatprep.subr.mxu0 0.0
  %797 = vmatpush1.xpose.msra.mxu0 0.0
  %798 = vmatprep.subr.mxu0 0.0
  %799 = vmatpush1.xpose.msra.mxu0 0.0
  %800 = vmatprep.subr.mxu0 0.0
  %801 = vmatpush1.xpose.msra.mxu0 0.0
  %802 = vmatprep.subr.mxu0 0.0
  %803 = vmatpush1.xpose.msra.mxu0 0.0
  %804 = vmatprep.subr.mxu0 0.0
  %805 = vmatpush1.xpose.msra.mxu0 0.0
  %806 = vmatprep.subr.mxu0 0.0
  %807 = vmatpush1.xpose.msra.mxu0 0.0
  %808 = vmatprep.subr.mxu0 0.0
  %809 = vmatpush1.xpose.msra.mxu0 0.0
  %810 = vmatprep.subr.mxu0 0.0
  %811 = vmatpush1.xpose.msra.mxu0 0.0
  %812 = vmatprep.subr.mxu0 0.0
  %813 = vmatpush1.xpose.msra.mxu0 0.0
  %814 = vmatprep.subr.mxu0 0.0
  %815 = vmatpush1.xpose.msra.mxu0 0.0
  %816 = vmatprep.subr.mxu0 0.0
  %817 = vmatpush1.xpose.msra.mxu0 0.0
  %818 = vmatprep.subr.mxu0 0.0
  %819 = vmatpush1.xpose.msra.mxu0 0.0
  %820 = vmatprep.subr.mxu0 0.0
  %821 = vmatpush1.xpose.msra.mxu0 0.0
  %822 = vmatprep.subr.mxu0 0.0
  %823 = vmatpush1.xpose.msra.mxu0 0.0
  %824 = vmatprep.subr.mxu0 0.0
  %825 = vmatpush1.xpose.msra.mxu0 %v792
  %826 = vmatprep.subr.mxu0 0.0
  %827 = vmatpush2.xpose.msra.mxu0 0.0
  %828 = vmatprep.subr.mxu0 0.0
  %829 = vmatpush2.xpose.msra.mxu0 0.0
  %830 = vmatprep.subr.mxu0 0.0
  %831 = vmatpush2.xpose.msra.mxu0 0.0
  %832 = vmatprep.subr.mxu0 0.0
  %833 = vmatpush2.xpose.msra.mxu0 0.0
  %834 = vmatprep.subr.mxu0 0.0
  %835 = vmatpush2.xpose.msra.mxu0 0.0
  %836 = vmatprep.subr.mxu0 0.0
  %837 = vmatpush2.xpose.msra.mxu0 0.0
  %838 = vmatprep.subr.mxu0 0.0
  %839 = vmatpush2.xpose.msra.mxu0 0.0
  %840 = vmatprep.subr.mxu0 0.0
  %841 = vmatpush2.xpose.msra.mxu0 0.0
  %842 = vmatprep.subr.mxu0 0.0
  %843 = vmatpush2.xpose.msra.mxu0 0.0
  %844 = vmatprep.subr.mxu0 0.0
  %845 = vmatpush2.xpose.msra.mxu0 0.0
  %846 = vmatprep.subr.mxu0 0.0
  %847 = vmatpush2.xpose.msra.mxu0 0.0
  %848 = vmatprep.subr.mxu0 0.0
  %849 = vmatpush2.xpose.msra.mxu0 0.0
  %850 = vmatprep.subr.mxu0 0.0
  %851 = vmatpush2.xpose.msra.mxu0 0.0
  %852 = vmatprep.subr.mxu0 0.0
  %853 = vmatpush2.xpose.msra.mxu0 0.0
  %854 = vmatprep.subr.mxu0 0.0
  %855 = vmatpush2.xpose.msra.mxu0 0.0
  %856 = vmatprep.subr.mxu0 0.0
  %857 = vmatpush2.xpose.msra.mxu0 0.0
  %858 = vmatprep.mubr.f32.mxu0 0.0
  %859 = vmatmul.mubr.f32.gmra.mxu0 %v713
  %v860 = vpop.f32.mrf.mxu0
  %v861 = vadd.f32 0.0, %v860
  %v862 = vpop.f32.mrf.mxu0
  %863 = vdwg.mxu0
  %v864 = vmul.f32 %v861, 0.20412415
  %v865 = vmul.f32 %v791, %v791
  %v866 = vmul.f32 %v864, %v864
  %v867 = vsel %vm475, %v865, -inf
  %868 = vmax.xlane.f32.xlu0 %v867
  %v869 = vpop.xlane.xlu0 %868
  %v870 = vsel %vm320, %v866, -inf
  %871 = vmax.xlane.f32.xlu0 %v870
  %v872 = vpop.xlane.xlu0 %871
  %v873 = vmax.f32 %v869, %v872
  %v874 = vrcp.pop %v873
  %v875 = vmul.f32 1.0, %v874
  %v876 = vmul.f32 %v865, %v875
  %v877 = vmul.f32 %v866, %v875
  %878 = vrot.lane.b32.xlu0 %v312, 64
  %v879 = vpop.permute.xlu0 %878
  %v882 = vsel %vm320, %v877, 0
  %884 = vmatprep.subr.mxu0 0.0
  %885 = vmatpush1.msra.mxu0 0.0
  %886 = vmatprep.subr.mxu0 0.0
  %887 = vmatpush1.msra.mxu0 0.0
  %888 = vmatprep.subr.mxu0 0.0
  %889 = vmatpush1.msra.mxu0 0.0
  %890 = vmatprep.subr.mxu0 0.0
  %891 = vmatpush1.msra.mxu0 0.0
  %892 = vmatprep.subr.mxu0 0.0
  %893 = vmatpush1.msra.mxu0 0.0
  %894 = vmatprep.subr.mxu0 0.0
  %895 = vmatpush1.msra.mxu0 0.0
  %896 = vmatprep.subr.mxu0 0.0
  %897 = vmatpush1.msra.mxu0 0.0
  %898 = vmatprep.subr.mxu0 0.0
  %899 = vmatpush1.msra.mxu0 0.0
  %900 = vmatprep.subr.mxu0 0.0
  %901 = vmatpush1.msra.mxu0 0.0
  %902 = vmatprep.subr.mxu0 0.0
  %903 = vmatpush1.msra.mxu0 0.0
  %904 = vmatprep.subr.mxu0 0.0
  %905 = vmatpush1.msra.mxu0 0.0
  %906 = vmatprep.subr.mxu0 0.0
  %907 = vmatpush1.msra.mxu0 0.0
  %908 = vmatprep.subr.mxu0 0.0
  %909 = vmatpush1.msra.mxu0 0.0
  %910 = vmatprep.subr.mxu0 0.0
  %911 = vmatpush1.msra.mxu0 0.0
  %912 = vmatprep.subr.mxu0 0.0
  %913 = vmatpush1.msra.mxu0 0.0
  %914 = vmatprep.subr.mxu0 0.0
  %915 = vmatpush1.msra.mxu0 %v879
  %916 = vmatprep.subr.mxu0 0.0
  %917 = vmatpush2.msra.mxu0 0.0
  %918 = vmatprep.subr.mxu0 0.0
  %919 = vmatpush2.msra.mxu0 0.0
  %920 = vmatprep.subr.mxu0 0.0
  %921 = vmatpush2.msra.mxu0 0.0
  %922 = vmatprep.subr.mxu0 0.0
  %923 = vmatpush2.msra.mxu0 0.0
  %924 = vmatprep.subr.mxu0 0.0
  %925 = vmatpush2.msra.mxu0 0.0
  %926 = vmatprep.subr.mxu0 0.0
  %927 = vmatpush2.msra.mxu0 0.0
  %928 = vmatprep.subr.mxu0 0.0
  %929 = vmatpush2.msra.mxu0 0.0
  %930 = vmatprep.subr.mxu0 0.0
  %931 = vmatpush2.msra.mxu0 0.0
  %932 = vmatprep.subr.mxu0 0.0
  %933 = vmatpush2.msra.mxu0 0.0
  %934 = vmatprep.subr.mxu0 0.0
  %935 = vmatpush2.msra.mxu0 0.0
  %936 = vmatprep.subr.mxu0 0.0
  %937 = vmatpush2.msra.mxu0 0.0
  %938 = vmatprep.subr.mxu0 0.0
  %939 = vmatpush2.msra.mxu0 0.0
  %940 = vmatprep.subr.mxu0 0.0
  %941 = vmatpush2.msra.mxu0 0.0
  %942 = vmatprep.subr.mxu0 0.0
  %943 = vmatpush2.msra.mxu0 0.0
  %944 = vmatprep.subr.mxu0 0.0
  %945 = vmatpush2.msra.mxu0 0.0
  %946 = vmatprep.subr.mxu0 0.0
  %947 = vmatpush2.msra.mxu0 0.0
  %948 = vmatprep.mubr.f32.mxu0 0.0
  %949 = vmatmul.mubr.f32.gmra.mxu0 %v882
  %v950 = vpop.f32.mrf.mxu0
  %v951 = vadd.f32 0.0, %v950
  %v952 = vpop.f32.mrf.mxu0
  %953 = vdwg.mxu0
  %954 = vrot.lane.b32.xlu0 %v164, 64
  %v955 = vpop.permute.xlu0 %954
  %956 = vrot.lane.b32.xlu0 %v169, 64
  %v957 = vpop.permute.xlu0 %956
  %v961 = vsel %vm475, %v876, 0
  %963 = vmatprep.subr.mxu0 0.0
  %964 = vmatpush1.msra.mxu0 0.0
  %965 = vmatprep.subr.mxu0 0.0
  %966 = vmatpush1.msra.mxu0 0.0
  %967 = vmatprep.subr.mxu0 0.0
  %968 = vmatpush1.msra.mxu0 0.0
  %969 = vmatprep.subr.mxu0 0.0
  %970 = vmatpush1.msra.mxu0 0.0
  %971 = vmatprep.subr.mxu0 0.0
  %972 = vmatpush1.msra.mxu0 0.0
  %973 = vmatprep.subr.mxu0 0.0
  %974 = vmatpush1.msra.mxu0 0.0
  %975 = vmatprep.subr.mxu0 0.0
  %976 = vmatpush1.msra.mxu0 0.0
  %977 = vmatprep.subr.mxu0 0.0
  %978 = vmatpush1.msra.mxu0 0.0
  %979 = vmatprep.subr.mxu0 0.0
  %980 = vmatpush1.msra.mxu0 0.0
  %981 = vmatprep.subr.mxu0 0.0
  %982 = vmatpush1.msra.mxu0 0.0
  %983 = vmatprep.subr.mxu0 0.0
  %984 = vmatpush1.msra.mxu0 0.0
  %985 = vmatprep.subr.mxu0 0.0
  %986 = vmatpush1.msra.mxu0 0.0
  %987 = vmatprep.subr.mxu0 0.0
  %988 = vmatpush1.msra.mxu0 0.0
  %989 = vmatprep.subr.mxu0 0.0
  %990 = vmatpush1.msra.mxu0 0.0
  %991 = vmatprep.subr.mxu0 0.0
  %992 = vmatpush1.msra.mxu0 %v957
  %993 = vmatprep.subr.mxu0 0.0
  %994 = vmatpush1.msra.mxu0 %v955
  %995 = vmatprep.subr.mxu0 0.0
  %996 = vmatpush2.msra.mxu0 0.0
  %997 = vmatprep.subr.mxu0 0.0
  %998 = vmatpush2.msra.mxu0 0.0
  %999 = vmatprep.subr.mxu0 0.0
  %1000 = vmatpush2.msra.mxu0 0.0
  %1001 = vmatprep.subr.mxu0 0.0
  %1002 = vmatpush2.msra.mxu0 0.0
  %1003 = vmatprep.subr.mxu0 0.0
  %1004 = vmatpush2.msra.mxu0 0.0
  %1005 = vmatprep.subr.mxu0 0.0
  %1006 = vmatpush2.msra.mxu0 0.0
  %1007 = vmatprep.subr.mxu0 0.0
  %1008 = vmatpush2.msra.mxu0 0.0
  %1009 = vmatprep.subr.mxu0 0.0
  %1010 = vmatpush2.msra.mxu0 0.0
  %1011 = vmatprep.subr.mxu0 0.0
  %1012 = vmatpush2.msra.mxu0 0.0
  %1013 = vmatprep.subr.mxu0 0.0
  %1014 = vmatpush2.msra.mxu0 0.0
  %1015 = vmatprep.subr.mxu0 0.0
  %1016 = vmatpush2.msra.mxu0 0.0
  %1017 = vmatprep.subr.mxu0 0.0
  %1018 = vmatpush2.msra.mxu0 0.0
  %1019 = vmatprep.subr.mxu0 0.0
  %1020 = vmatpush2.msra.mxu0 0.0
  %1021 = vmatprep.subr.mxu0 0.0
  %1022 = vmatpush2.msra.mxu0 0.0
  %1023 = vmatprep.subr.mxu0 0.0
  %1024 = vmatpush2.msra.mxu0 0.0
  %1025 = vmatprep.subr.mxu0 0.0
  %1026 = vmatpush2.msra.mxu0 0.0
  %1027 = vmatprep.mubr.f32.mxu0 0.0
  %1028 = vmatmul.mubr.f32.gmra.mxu0 %v961
  %v1029 = vpop.f32.mrf.mxu0
  %v1030 = vadd.f32 %v951, %v1029
  %v1031 = vpop.f32.mrf.mxu0
  %1032 = vdwg.mxu0
  %v1033 = vadd.f32 %v876, 1e-06
  %v1034 = vlog2.pop %v1033
  %v1035 = vmul.f32 %v1034, 0.6931472
  %v1036 = vsel %vm475, %v1035, 0.0
  %1037 = vadd.xlane.f32.xlu0 %v1036
  %v1038 = vpop.xlane.xlu0 %1037
  %v1039 = vrot.slane %v1038, 4
  %v1040 = vadd.f32 %v1038, %v1039
  %v1041 = vrot.slane %v1040, 2
  %v1042 = vadd.f32 %v1040, %v1041
  %v1043 = vrot.slane %v1042, 1
  %v1044 = vadd.f32 %v1042, %v1043
  %s1045 = vtos %v1044
  %v1046 = vstv %s1045
  %v1047 = vadd.f32 %v877, 1e-06
  %v1048 = vlog2.pop %v1047
  %v1049 = vmul.f32 %v1048, 0.6931472
  %v1050 = vsel %vm320, %v1049, 0.0
  %1051 = vadd.xlane.f32.xlu0 %v1050
  %v1052 = vpop.xlane.xlu0 %1051
  %v1053 = vrot.slane %v1052, 4
  %v1054 = vadd.f32 %v1052, %v1053
  %v1055 = vrot.slane %v1054, 2
  %v1056 = vadd.f32 %v1054, %v1055
  %v1057 = vrot.slane %v1056, 1
  %v1058 = vadd.f32 %v1056, %v1057
  %s1059 = vtos %v1058
  %v1060 = vstv %s1059
  %v1061 = vadd.f32 %v1046, %v1060
  %v1062 = vadd.f32 %v671, %v1061
  %v1063 = vsel %vm475, %v876, 0.0
  %v1064 = vrot.slane %v1063, 4
  %v1065 = vadd.f32 %v1063, %v1064
  %v1066 = vrot.slane %v1065, 2
  %v1067 = vadd.f32 %v1065, %v1066
  %v1068 = vrot.slane %v1067, 1
  %v1069 = vadd.f32 %v1067, %v1068
  %1070 = vadd.xlane.f32.xlu0 %v1063
  %v1071 = vpop.xlane.xlu0 %1070
  %v1072 = vrot.slane %v1071, 4
  %v1073 = vadd.f32 %v1071, %v1072
  %v1074 = vrot.slane %v1073, 2
  %v1075 = vadd.f32 %v1073, %v1074
  %v1076 = vrot.slane %v1075, 1
  %v1077 = vadd.f32 %v1075, %v1076
  %s1078 = vtos %v1077
  %v1079 = vstv %s1078
  %v1080 = vsel %vm320, %v877, 0.0
  %1081 = vadd.xlane.f32.xlu0 %v1080
  %v1082 = vpop.xlane.xlu0 %1081
  %v1083 = vrot.slane %v1082, 4
  %v1084 = vadd.f32 %v1082, %v1083
  %v1085 = vrot.slane %v1084, 2
  %v1086 = vadd.f32 %v1084, %v1085
  %v1087 = vrot.slane %v1086, 1
  %v1088 = vadd.f32 %v1086, %v1087
  %s1089 = vtos %v1088
  %v1090 = vstv %s1089
  %v1091 = vadd.f32 %v1079, %v1090
  %v1092 = vmul.f32 %v1091, 0.041666668
  %v1093 = vrcp.pop %v1092
  %v1094 = vmul.f32 %v1069, %v1093
  %v1095 = vsub.f32 %v1094, 1.0
  %v1096 = vsub.f32 %v1095, 0.01
  %vm1097 = vcmp.eq.s32.totalorder %v316, 1
  %v1098 = vsel %vm1097, 1.0, 0.0
  %v1099 = vmul.f32 %v1098, %v1096
  %v1100 = vadd.f32 %v709, %v1099
  %1101 = vrot.lane.b32.xlu0 %v307, 88
  %v1102 = vpop.permute.xlu0 %1101
  %1105 = vrot.lane.b32.xlu0 %v174, 120
  %v1106 = vpop.permute.xlu0 %1105
  %1107 = vrot.lane.b32.xlu0 %v179, 120
  %v1108 = vpop.permute.xlu0 %1107
  %v1109 = vsel %vm320, %v1102, 0
  %v1111 = vsel %vm320, %v1106, 0
  %v1113 = vsel %vm320, %v1108, 0
  %1115 = vmatprep.subr.mxu0 0.0
  %1116 = vmatpush1.xpose.msra.mxu0 0.0
  %1117 = vmatprep.subr.mxu0 0.0
  %1118 = vmatpush1.xpose.msra.mxu0 0.0
  %1119 = vmatprep.subr.mxu0 0.0
  %1120 = vmatpush1.xpose.msra.mxu0 0.0
  %1121 = vmatprep.subr.mxu0 0.0
  %1122 = vmatpush1.xpose.msra.mxu0 0.0
  %1123 = vmatprep.subr.mxu0 0.0
  %1124 = vmatpush1.xpose.msra.mxu0 0.0
  %1125 = vmatprep.subr.mxu0 0.0
  %1126 = vmatpush1.xpose.msra.mxu0 0.0
  %1127 = vmatprep.subr.mxu0 0.0
  %1128 = vmatpush1.xpose.msra.mxu0 0.0
  %1129 = vmatprep.subr.mxu0 0.0
  %1130 = vmatpush1.xpose.msra.mxu0 0.0
  %1131 = vmatprep.subr.mxu0 0.0
  %1132 = vmatpush1.xpose.msra.mxu0 0.0
  %1133 = vmatprep.subr.mxu0 0.0
  %1134 = vmatpush1.xpose.msra.mxu0 0.0
  %1135 = vmatprep.subr.mxu0 0.0
  %1136 = vmatpush1.xpose.msra.mxu0 0.0
  %1137 = vmatprep.subr.mxu0 0.0
  %1138 = vmatpush1.xpose.msra.mxu0 0.0
  %1139 = vmatprep.subr.mxu0 0.0
  %1140 = vmatpush1.xpose.msra.mxu0 0.0
  %1141 = vmatprep.subr.mxu0 0.0
  %1142 = vmatpush1.xpose.msra.mxu0 0.0
  %1143 = vmatprep.subr.mxu0 0.0
  %1144 = vmatpush1.xpose.msra.mxu0 %v1113
  %1145 = vmatprep.subr.mxu0 0.0
  %1146 = vmatpush1.xpose.msra.mxu0 %v1111
  %1147 = vmatprep.subr.mxu0 0.0
  %1148 = vmatpush2.xpose.msra.mxu0 0.0
  %1149 = vmatprep.subr.mxu0 0.0
  %1150 = vmatpush2.xpose.msra.mxu0 0.0
  %1151 = vmatprep.subr.mxu0 0.0
  %1152 = vmatpush2.xpose.msra.mxu0 0.0
  %1153 = vmatprep.subr.mxu0 0.0
  %1154 = vmatpush2.xpose.msra.mxu0 0.0
  %1155 = vmatprep.subr.mxu0 0.0
  %1156 = vmatpush2.xpose.msra.mxu0 0.0
  %1157 = vmatprep.subr.mxu0 0.0
  %1158 = vmatpush2.xpose.msra.mxu0 0.0
  %1159 = vmatprep.subr.mxu0 0.0
  %1160 = vmatpush2.xpose.msra.mxu0 0.0
  %1161 = vmatprep.subr.mxu0 0.0
  %1162 = vmatpush2.xpose.msra.mxu0 0.0
  %1163 = vmatprep.subr.mxu0 0.0
  %1164 = vmatpush2.xpose.msra.mxu0 0.0
  %1165 = vmatprep.subr.mxu0 0.0
  %1166 = vmatpush2.xpose.msra.mxu0 0.0
  %1167 = vmatprep.subr.mxu0 0.0
  %1168 = vmatpush2.xpose.msra.mxu0 0.0
  %1169 = vmatprep.subr.mxu0 0.0
  %1170 = vmatpush2.xpose.msra.mxu0 0.0
  %1171 = vmatprep.subr.mxu0 0.0
  %1172 = vmatpush2.xpose.msra.mxu0 0.0
  %1173 = vmatprep.subr.mxu0 0.0
  %1174 = vmatpush2.xpose.msra.mxu0 0.0
  %1175 = vmatprep.subr.mxu0 0.0
  %1176 = vmatpush2.xpose.msra.mxu0 0.0
  %1177 = vmatprep.subr.mxu0 0.0
  %1178 = vmatpush2.xpose.msra.mxu0 0.0
  %1179 = vmatprep.mubr.f32.mxu0 0.0
  %1180 = vmatmul.mubr.f32.gmra.mxu0 %v1109
  %v1181 = vpop.f32.mrf.mxu0
  %v1182 = vadd.f32 0.0, %v1181
  %v1183 = vpop.f32.mrf.mxu0
  %1184 = vdwg.mxu0
  %v1185 = vmul.f32 %v1182, 0.20412415
  %1186 = vrot.lane.b32.xlu0 %v307, 120
  %v1187 = vpop.permute.xlu0 %1186
  %v1188 = vsel %vm320, %v1187, 0
  %1190 = vmatprep.subr.mxu0 0.0
  %1191 = vmatpush1.xpose.msra.mxu0 0.0
  %1192 = vmatprep.subr.mxu0 0.0
  %1193 = vmatpush1.xpose.msra.mxu0 0.0
  %1194 = vmatprep.subr.mxu0 0.0
  %1195 = vmatpush1.xpose.msra.mxu0 0.0
  %1196 = vmatprep.subr.mxu0 0.0
  %1197 = vmatpush1.xpose.msra.mxu0 0.0
  %1198 = vmatprep.subr.mxu0 0.0
  %1199 = vmatpush1.xpose.msra.mxu0 0.0
  %1200 = vmatprep.subr.mxu0 0.0
  %1201 = vmatpush1.xpose.msra.mxu0 0.0
  %1202 = vmatprep.subr.mxu0 0.0
  %1203 = vmatpush1.xpose.msra.mxu0 0.0
  %1204 = vmatprep.subr.mxu0 0.0
  %1205 = vmatpush1.xpose.msra.mxu0 0.0
  %1206 = vmatprep.subr.mxu0 0.0
  %1207 = vmatpush1.xpose.msra.mxu0 0.0
  %1208 = vmatprep.subr.mxu0 0.0
  %1209 = vmatpush1.xpose.msra.mxu0 0.0
  %1210 = vmatprep.subr.mxu0 0.0
  %1211 = vmatpush1.xpose.msra.mxu0 0.0
  %1212 = vmatprep.subr.mxu0 0.0
  %1213 = vmatpush1.xpose.msra.mxu0 0.0
  %1214 = vmatprep.subr.mxu0 0.0
  %1215 = vmatpush1.xpose.msra.mxu0 0.0
  %1216 = vmatprep.subr.mxu0 0.0
  %1217 = vmatpush1.xpose.msra.mxu0 0.0
  %1218 = vmatprep.subr.mxu0 0.0
  %1219 = vmatpush1.xpose.msra.mxu0 0.0
  %1220 = vmatprep.subr.mxu0 0.0
  %1221 = vmatpush1.xpose.msra.mxu0 %v1188
  %1222 = vmatprep.subr.mxu0 0.0
  %1223 = vmatpush2.xpose.msra.mxu0 0.0
  %1224 = vmatprep.subr.mxu0 0.0
  %1225 = vmatpush2.xpose.msra.mxu0 0.0
  %1226 = vmatprep.subr.mxu0 0.0
  %1227 = vmatpush2.xpose.msra.mxu0 0.0
  %1228 = vmatprep.subr.mxu0 0.0
  %1229 = vmatpush2.xpose.msra.mxu0 0.0
  %1230 = vmatprep.subr.mxu0 0.0
  %1231 = vmatpush2.xpose.msra.mxu0 0.0
  %1232 = vmatprep.subr.mxu0 0.0
  %1233 = vmatpush2.xpose.msra.mxu0 0.0
  %1234 = vmatprep.subr.mxu0 0.0
  %1235 = vmatpush2.xpose.msra.mxu0 0.0
  %1236 = vmatprep.subr.mxu0 0.0
  %1237 = vmatpush2.xpose.msra.mxu0 0.0
  %1238 = vmatprep.subr.mxu0 0.0
  %1239 = vmatpush2.xpose.msra.mxu0 0.0
  %1240 = vmatprep.subr.mxu0 0.0
  %1241 = vmatpush2.xpose.msra.mxu0 0.0
  %1242 = vmatprep.subr.mxu0 0.0
  %1243 = vmatpush2.xpose.msra.mxu0 0.0
  %1244 = vmatprep.subr.mxu0 0.0
  %1245 = vmatpush2.xpose.msra.mxu0 0.0
  %1246 = vmatprep.subr.mxu0 0.0
  %1247 = vmatpush2.xpose.msra.mxu0 0.0
  %1248 = vmatprep.subr.mxu0 0.0
  %1249 = vmatpush2.xpose.msra.mxu0 0.0
  %1250 = vmatprep.subr.mxu0 0.0
  %1251 = vmatpush2.xpose.msra.mxu0 0.0
  %1252 = vmatprep.subr.mxu0 0.0
  %1253 = vmatpush2.xpose.msra.mxu0 0.0
  %1254 = vmatprep.mubr.f32.mxu0 0.0
  %1255 = vmatmul.mubr.f32.gmra.mxu0 %v1109
  %v1256 = vpop.f32.mrf.mxu0
  %v1257 = vadd.f32 0.0, %v1256
  %v1258 = vpop.f32.mrf.mxu0
  %1259 = vdwg.mxu0
  %v1260 = vmul.f32 %v1257, 0.20412415
  %v1261 = vmul.f32 %v1185, %v1185
  %v1262 = vmul.f32 %v1260, %v1260
  %v1263 = vsel %vm475, %v1261, -inf
  %1264 = vmax.xlane.f32.xlu0 %v1263
  %v1265 = vpop.xlane.xlu0 %1264
  %v1266 = vsel %vm320, %v1262, -inf
  %1267 = vmax.xlane.f32.xlu0 %v1266
  %v1268 = vpop.xlane.xlu0 %1267
  %v1269 = vmax.f32 %v1265, %v1268
  %v1270 = vrcp.pop %v1269
  %v1271 = vmul.f32 1.0, %v1270
  %v1272 = vmul.f32 %v1261, %v1271
  %v1273 = vmul.f32 %v1262, %v1271
  %1274 = vrot.lane.b32.xlu0 %v307, 56
  %v1275 = vpop.permute.xlu0 %1274
  %v1278 = vsel %vm320, %v1273, 0
  %1280 = vmatprep.subr.mxu0 0.0
  %1281 = vmatpush1.msra.mxu0 0.0
  %1282 = vmatprep.subr.mxu0 0.0
  %1283 = vmatpush1.msra.mxu0 0.0
  %1284 = vmatprep.subr.mxu0 0.0
  %1285 = vmatpush1.msra.mxu0 0.0
  %1286 = vmatprep.subr.mxu0 0.0
  %1287 = vmatpush1.msra.mxu0 0.0
  %1288 = vmatprep.subr.mxu0 0.0
  %1289 = vmatpush1.msra.mxu0 0.0
  %1290 = vmatprep.subr.mxu0 0.0
  %1291 = vmatpush1.msra.mxu0 0.0
  %1292 = vmatprep.subr.mxu0 0.0
  %1293 = vmatpush1.msra.mxu0 0.0
  %1294 = vmatprep.subr.mxu0 0.0
  %1295 = vmatpush1.msra.mxu0 0.0
  %1296 = vmatprep.subr.mxu0 0.0
  %1297 = vmatpush1.msra.mxu0 0.0
  %1298 = vmatprep.subr.mxu0 0.0
  %1299 = vmatpush1.msra.mxu0 0.0
  %1300 = vmatprep.subr.mxu0 0.0
  %1301 = vmatpush1.msra.mxu0 0.0
  %1302 = vmatprep.subr.mxu0 0.0
  %1303 = vmatpush1.msra.mxu0 0.0
  %1304 = vmatprep.subr.mxu0 0.0
  %1305 = vmatpush1.msra.mxu0 0.0
  %1306 = vmatprep.subr.mxu0 0.0
  %1307 = vmatpush1.msra.mxu0 0.0
  %1308 = vmatprep.subr.mxu0 0.0
  %1309 = vmatpush1.msra.mxu0 0.0
  %1310 = vmatprep.subr.mxu0 0.0
  %1311 = vmatpush1.msra.mxu0 %v1275
  %1312 = vmatprep.subr.mxu0 0.0
  %1313 = vmatpush2.msra.mxu0 0.0
  %1314 = vmatprep.subr.mxu0 0.0
  %1315 = vmatpush2.msra.mxu0 0.0
  %1316 = vmatprep.subr.mxu0 0.0
  %1317 = vmatpush2.msra.mxu0 0.0
  %1318 = vmatprep.subr.mxu0 0.0
  %1319 = vmatpush2.msra.mxu0 0.0
  %1320 = vmatprep.subr.mxu0 0.0
  %1321 = vmatpush2.msra.mxu0 0.0
  %1322 = vmatprep.subr.mxu0 0.0
  %1323 = vmatpush2.msra.mxu0 0.0
  %1324 = vmatprep.subr.mxu0 0.0
  %1325 = vmatpush2.msra.mxu0 0.0
  %1326 = vmatprep.subr.mxu0 0.0
  %1327 = vmatpush2.msra.mxu0 0.0
  %1328 = vmatprep.subr.mxu0 0.0
  %1329 = vmatpush2.msra.mxu0 0.0
  %1330 = vmatprep.subr.mxu0 0.0
  %1331 = vmatpush2.msra.mxu0 0.0
  %1332 = vmatprep.subr.mxu0 0.0
  %1333 = vmatpush2.msra.mxu0 0.0
  %1334 = vmatprep.subr.mxu0 0.0
  %1335 = vmatpush2.msra.mxu0 0.0
  %1336 = vmatprep.subr.mxu0 0.0
  %1337 = vmatpush2.msra.mxu0 0.0
  %1338 = vmatprep.subr.mxu0 0.0
  %1339 = vmatpush2.msra.mxu0 0.0
  %1340 = vmatprep.subr.mxu0 0.0
  %1341 = vmatpush2.msra.mxu0 0.0
  %1342 = vmatprep.subr.mxu0 0.0
  %1343 = vmatpush2.msra.mxu0 0.0
  %1344 = vmatprep.mubr.f32.mxu0 0.0
  %1345 = vmatmul.mubr.f32.gmra.mxu0 %v1278
  %v1346 = vpop.f32.mrf.mxu0
  %v1347 = vadd.f32 0.0, %v1346
  %v1348 = vpop.f32.mrf.mxu0
  %1349 = vdwg.mxu0
  %1350 = vrot.lane.b32.xlu0 %v174, 56
  %v1351 = vpop.permute.xlu0 %1350
  %1352 = vrot.lane.b32.xlu0 %v179, 56
  %v1353 = vpop.permute.xlu0 %1352
  %v1357 = vsel %vm475, %v1272, 0
  %1359 = vmatprep.subr.mxu0 0.0
  %1360 = vmatpush1.msra.mxu0 0.0
  %1361 = vmatprep.subr.mxu0 0.0
  %1362 = vmatpush1.msra.mxu0 0.0
  %1363 = vmatprep.subr.mxu0 0.0
  %1364 = vmatpush1.msra.mxu0 0.0
  %1365 = vmatprep.subr.mxu0 0.0
  %1366 = vmatpush1.msra.mxu0 0.0
  %1367 = vmatprep.subr.mxu0 0.0
  %1368 = vmatpush1.msra.mxu0 0.0
  %1369 = vmatprep.subr.mxu0 0.0
  %1370 = vmatpush1.msra.mxu0 0.0
  %1371 = vmatprep.subr.mxu0 0.0
  %1372 = vmatpush1.msra.mxu0 0.0
  %1373 = vmatprep.subr.mxu0 0.0
  %1374 = vmatpush1.msra.mxu0 0.0
  %1375 = vmatprep.subr.mxu0 0.0
  %1376 = vmatpush1.msra.mxu0 0.0
  %1377 = vmatprep.subr.mxu0 0.0
  %1378 = vmatpush1.msra.mxu0 0.0
  %1379 = vmatprep.subr.mxu0 0.0
  %1380 = vmatpush1.msra.mxu0 0.0
  %1381 = vmatprep.subr.mxu0 0.0
  %1382 = vmatpush1.msra.mxu0 0.0
  %1383 = vmatprep.subr.mxu0 0.0
  %1384 = vmatpush1.msra.mxu0 0.0
  %1385 = vmatprep.subr.mxu0 0.0
  %1386 = vmatpush1.msra.mxu0 0.0
  %1387 = vmatprep.subr.mxu0 0.0
  %1388 = vmatpush1.msra.mxu0 %v1353
  %1389 = vmatprep.subr.mxu0 0.0
  %1390 = vmatpush1.msra.mxu0 %v1351
  %1391 = vmatprep.subr.mxu0 0.0
  %1392 = vmatpush2.msra.mxu0 0.0
  %1393 = vmatprep.subr.mxu0 0.0
  %1394 = vmatpush2.msra.mxu0 0.0
  %1395 = vmatprep.subr.mxu0 0.0
  %1396 = vmatpush2.msra.mxu0 0.0
  %1397 = vmatprep.subr.mxu0 0.0
  %1398 = vmatpush2.msra.mxu0 0.0
  %1399 = vmatprep.subr.mxu0 0.0
  %1400 = vmatpush2.msra.mxu0 0.0
  %1401 = vmatprep.subr.mxu0 0.0
  %1402 = vmatpush2.msra.mxu0 0.0
  %1403 = vmatprep.subr.mxu0 0.0
  %1404 = vmatpush2.msra.mxu0 0.0
  %1405 = vmatprep.subr.mxu0 0.0
  %1406 = vmatpush2.msra.mxu0 0.0
  %1407 = vmatprep.subr.mxu0 0.0
  %1408 = vmatpush2.msra.mxu0 0.0
  %1409 = vmatprep.subr.mxu0 0.0
  %1410 = vmatpush2.msra.mxu0 0.0
  %1411 = vmatprep.subr.mxu0 0.0
  %1412 = vmatpush2.msra.mxu0 0.0
  %1413 = vmatprep.subr.mxu0 0.0
  %1414 = vmatpush2.msra.mxu0 0.0
  %1415 = vmatprep.subr.mxu0 0.0
  %1416 = vmatpush2.msra.mxu0 0.0
  %1417 = vmatprep.subr.mxu0 0.0
  %1418 = vmatpush2.msra.mxu0 0.0
  %1419 = vmatprep.subr.mxu0 0.0
  %1420 = vmatpush2.msra.mxu0 0.0
  %1421 = vmatprep.subr.mxu0 0.0
  %1422 = vmatpush2.msra.mxu0 0.0
  %1423 = vmatprep.mubr.f32.mxu0 0.0
  %1424 = vmatmul.mubr.f32.gmra.mxu0 %v1357
  %v1425 = vpop.f32.mrf.mxu0
  %v1426 = vadd.f32 %v1347, %v1425
  %v1427 = vpop.f32.mrf.mxu0
  %1428 = vdwg.mxu0
  %1430 = vrot.lane.b32.xlu0 %v18, 32
  %v1431 = vpop.permute.xlu0 %1430
  %v1434 = vsel %vm320, %v1426, 0
  %1436 = vmatprep.subr.mxu0 0.0
  %1437 = vmatpush1.msra.mxu0 0.0
  %1438 = vmatprep.subr.mxu0 0.0
  %1439 = vmatpush1.msra.mxu0 0.0
  %1440 = vmatprep.subr.mxu0 0.0
  %1441 = vmatpush1.msra.mxu0 0.0
  %1442 = vmatprep.subr.mxu0 0.0
  %1443 = vmatpush1.msra.mxu0 0.0
  %1444 = vmatprep.subr.mxu0 0.0
  %1445 = vmatpush1.msra.mxu0 0.0
  %1446 = vmatprep.subr.mxu0 0.0
  %1447 = vmatpush1.msra.mxu0 0.0
  %1448 = vmatprep.subr.mxu0 0.0
  %1449 = vmatpush1.msra.mxu0 0.0
  %1450 = vmatprep.subr.mxu0 0.0
  %1451 = vmatpush1.msra.mxu0 0.0
  %1452 = vmatprep.subr.mxu0 0.0
  %1453 = vmatpush1.msra.mxu0 0.0
  %1454 = vmatprep.subr.mxu0 0.0
  %1455 = vmatpush1.msra.mxu0 0.0
  %1456 = vmatprep.subr.mxu0 0.0
  %1457 = vmatpush1.msra.mxu0 0.0
  %1458 = vmatprep.subr.mxu0 0.0
  %1459 = vmatpush1.msra.mxu0 0.0
  %1460 = vmatprep.subr.mxu0 0.0
  %1461 = vmatpush1.msra.mxu0 0.0
  %1462 = vmatprep.subr.mxu0 0.0
  %1463 = vmatpush1.msra.mxu0 0.0
  %1464 = vmatprep.subr.mxu0 0.0
  %1465 = vmatpush1.msra.mxu0 0.0
  %1466 = vmatprep.subr.mxu0 0.0
  %1467 = vmatpush1.msra.mxu0 %v1431
  %1468 = vmatprep.subr.mxu0 0.0
  %1469 = vmatpush2.msra.mxu0 0.0
  %1470 = vmatprep.subr.mxu0 0.0
  %1471 = vmatpush2.msra.mxu0 0.0
  %1472 = vmatprep.subr.mxu0 0.0
  %1473 = vmatpush2.msra.mxu0 0.0
  %1474 = vmatprep.subr.mxu0 0.0
  %1475 = vmatpush2.msra.mxu0 0.0
  %1476 = vmatprep.subr.mxu0 0.0
  %1477 = vmatpush2.msra.mxu0 0.0
  %1478 = vmatprep.subr.mxu0 0.0
  %1479 = vmatpush2.msra.mxu0 0.0
  %1480 = vmatprep.subr.mxu0 0.0
  %1481 = vmatpush2.msra.mxu0 0.0
  %1482 = vmatprep.subr.mxu0 0.0
  %1483 = vmatpush2.msra.mxu0 0.0
  %1484 = vmatprep.subr.mxu0 0.0
  %1485 = vmatpush2.msra.mxu0 0.0
  %1486 = vmatprep.subr.mxu0 0.0
  %1487 = vmatpush2.msra.mxu0 0.0
  %1488 = vmatprep.subr.mxu0 0.0
  %1489 = vmatpush2.msra.mxu0 0.0
  %1490 = vmatprep.subr.mxu0 0.0
  %1491 = vmatpush2.msra.mxu0 0.0
  %1492 = vmatprep.subr.mxu0 0.0
  %1493 = vmatpush2.msra.mxu0 0.0
  %1494 = vmatprep.subr.mxu0 0.0
  %1495 = vmatpush2.msra.mxu0 0.0
  %1496 = vmatprep.subr.mxu0 0.0
  %1497 = vmatpush2.msra.mxu0 0.0
  %1498 = vmatprep.subr.mxu0 0.0
  %1499 = vmatpush2.msra.mxu0 0.0
  %1500 = vmatprep.mubr.f32.mxu0 0.0
  %1501 = vmatmul.mubr.f32.gmra.mxu0 %v1434
  %v1502 = vpop.f32.mrf.mxu0
  %v1503 = vadd.f32 0.0, %v1502
  %v1504 = vpop.f32.mrf.mxu0
  %1505 = vdwg.mxu0
  %1507 = vrot.lane.b32.xlu0 %v17, 32
  %v1508 = vpop.permute.xlu0 %1507
  %v1511 = vsel %vm320, %v639, 0
  %1513 = vmatprep.subr.mxu0 0.0
  %1514 = vmatpush1.msra.mxu0 0.0
  %1515 = vmatprep.subr.mxu0 0.0
  %1516 = vmatpush1.msra.mxu0 0.0
  %1517 = vmatprep.subr.mxu0 0.0
  %1518 = vmatpush1.msra.mxu0 0.0
  %1519 = vmatprep.subr.mxu0 0.0
  %1520 = vmatpush1.msra.mxu0 0.0
  %1521 = vmatprep.subr.mxu0 0.0
  %1522 = vmatpush1.msra.mxu0 0.0
  %1523 = vmatprep.subr.mxu0 0.0
  %1524 = vmatpush1.msra.mxu0 0.0
  %1525 = vmatprep.subr.mxu0 0.0
  %1526 = vmatpush1.msra.mxu0 0.0
  %1527 = vmatprep.subr.mxu0 0.0
  %1528 = vmatpush1.msra.mxu0 0.0
  %1529 = vmatprep.subr.mxu0 0.0
  %1530 = vmatpush1.msra.mxu0 0.0
  %1531 = vmatprep.subr.mxu0 0.0
  %1532 = vmatpush1.msra.mxu0 0.0
  %1533 = vmatprep.subr.mxu0 0.0
  %1534 = vmatpush1.msra.mxu0 0.0
  %1535 = vmatprep.subr.mxu0 0.0
  %1536 = vmatpush1.msra.mxu0 0.0
  %1537 = vmatprep.subr.mxu0 0.0
  %1538 = vmatpush1.msra.mxu0 0.0
  %1539 = vmatprep.subr.mxu0 0.0
  %1540 = vmatpush1.msra.mxu0 0.0
  %1541 = vmatprep.subr.mxu0 0.0
  %1542 = vmatpush1.msra.mxu0 0.0
  %1543 = vmatprep.subr.mxu0 0.0
  %1544 = vmatpush1.msra.mxu0 %v1508
  %1545 = vmatprep.subr.mxu0 0.0
  %1546 = vmatpush2.msra.mxu0 0.0
  %1547 = vmatprep.subr.mxu0 0.0
  %1548 = vmatpush2.msra.mxu0 0.0
  %1549 = vmatprep.subr.mxu0 0.0
  %1550 = vmatpush2.msra.mxu0 0.0
  %1551 = vmatprep.subr.mxu0 0.0
  %1552 = vmatpush2.msra.mxu0 0.0
  %1553 = vmatprep.subr.mxu0 0.0
  %1554 = vmatpush2.msra.mxu0 0.0
  %1555 = vmatprep.subr.mxu0 0.0
  %1556 = vmatpush2.msra.mxu0 0.0
  %1557 = vmatprep.subr.mxu0 0.0
  %1558 = vmatpush2.msra.mxu0 0.0
  %1559 = vmatprep.subr.mxu0 0.0
  %1560 = vmatpush2.msra.mxu0 0.0
  %1561 = vmatprep.subr.mxu0 0.0
  %1562 = vmatpush2.msra.mxu0 0.0
  %1563 = vmatprep.subr.mxu0 0.0
  %1564 = vmatpush2.msra.mxu0 0.0
  %1565 = vmatprep.subr.mxu0 0.0
  %1566 = vmatpush2.msra.mxu0 0.0
  %1567 = vmatprep.subr.mxu0 0.0
  %1568 = vmatpush2.msra.mxu0 0.0
  %1569 = vmatprep.subr.mxu0 0.0
  %1570 = vmatpush2.msra.mxu0 0.0
  %1571 = vmatprep.subr.mxu0 0.0
  %1572 = vmatpush2.msra.mxu0 0.0
  %1573 = vmatprep.subr.mxu0 0.0
  %1574 = vmatpush2.msra.mxu0 0.0
  %1575 = vmatprep.subr.mxu0 0.0
  %1576 = vmatpush2.msra.mxu0 0.0
  %1577 = vmatprep.mubr.f32.mxu0 0.0
  %1578 = vmatmul.mubr.f32.gmra.mxu0 %v1511
  %v1579 = vpop.f32.mrf.mxu0
  %v1580 = vadd.f32 %v1503, %v1579
  %v1581 = vpop.f32.mrf.mxu0
  %1582 = vdwg.mxu0
  %v1583 = vadd.f32 %v1272, 1e-06
  %v1584 = vlog2.pop %v1583
  %v1585 = vmul.f32 %v1584, 0.6931472
  %v1586 = vsel %vm475, %v1585, 0.0
  %1587 = vadd.xlane.f32.xlu0 %v1586
  %v1588 = vpop.xlane.xlu0 %1587
  %v1589 = vrot.slane %v1588, 4
  %v1590 = vadd.f32 %v1588, %v1589
  %v1591 = vrot.slane %v1590, 2
  %v1592 = vadd.f32 %v1590, %v1591
  %v1593 = vrot.slane %v1592, 1
  %v1594 = vadd.f32 %v1592, %v1593
  %s1595 = vtos %v1594
  %v1596 = vstv %s1595
  %v1597 = vadd.f32 %v1273, 1e-06
  %v1598 = vlog2.pop %v1597
  %v1599 = vmul.f32 %v1598, 0.6931472
  %v1600 = vsel %vm320, %v1599, 0.0
  %1601 = vadd.xlane.f32.xlu0 %v1600
  %v1602 = vpop.xlane.xlu0 %1601
  %v1603 = vrot.slane %v1602, 4
  %v1604 = vadd.f32 %v1602, %v1603
  %v1605 = vrot.slane %v1604, 2
  %v1606 = vadd.f32 %v1604, %v1605
  %v1607 = vrot.slane %v1606, 1
  %v1608 = vadd.f32 %v1606, %v1607
  %s1609 = vtos %v1608
  %v1610 = vstv %s1609
  %v1611 = vadd.f32 %v1596, %v1610
  %v1612 = vadd.f32 %v1062, %v1611
  %v1613 = vsel %vm475, %v1272, 0.0
  %v1614 = vrot.slane %v1613, 4
  %v1615 = vadd.f32 %v1613, %v1614
  %v1616 = vrot.slane %v1615, 2
  %v1617 = vadd.f32 %v1615, %v1616
  %v1618 = vrot.slane %v1617, 1
  %v1619 = vadd.f32 %v1617, %v1618
  %1620 = vadd.xlane.f32.xlu0 %v1613
  %v1621 = vpop.xlane.xlu0 %1620
  %v1622 = vrot.slane %v1621, 4
  %v1623 = vadd.f32 %v1621, %v1622
  %v1624 = vrot.slane %v1623, 2
  %v1625 = vadd.f32 %v1623, %v1624
  %v1626 = vrot.slane %v1625, 1
  %v1627 = vadd.f32 %v1625, %v1626
  %s1628 = vtos %v1627
  %v1629 = vstv %s1628
  %v1630 = vsel %vm320, %v1273, 0.0
  %1631 = vadd.xlane.f32.xlu0 %v1630
  %v1632 = vpop.xlane.xlu0 %1631
  %v1633 = vrot.slane %v1632, 4
  %v1634 = vadd.f32 %v1632, %v1633
  %v1635 = vrot.slane %v1634, 2
  %v1636 = vadd.f32 %v1634, %v1635
  %v1637 = vrot.slane %v1636, 1
  %v1638 = vadd.f32 %v1636, %v1637
  %s1639 = vtos %v1638
  %v1640 = vstv %s1639
  %v1641 = vadd.f32 %v1629, %v1640
  %v1642 = vmul.f32 %v1641, 0.041666668
  %v1643 = vrcp.pop %v1642
  %v1644 = vmul.f32 %v1619, %v1643
  %v1645 = vsub.f32 %v1644, 1.0
  %v1646 = vsub.f32 %v1645, 0.01
  %vm1647 = vcmp.eq.s32.totalorder %v316, 2
  %v1648 = vsel %vm1647, 1.0, 0.0
  %v1649 = vmul.f32 %v1648, %v1646
  %v1650 = vadd.f32 %v1100, %v1649
  %1651 = vrot.lane.b32.xlu0 %v312, 88
  %v1652 = vpop.permute.xlu0 %1651
  %1655 = vrot.lane.b32.xlu0 %v184, 120
  %v1656 = vpop.permute.xlu0 %1655
  %1657 = vrot.lane.b32.xlu0 %v189, 120
  %v1658 = vpop.permute.xlu0 %1657
  %v1659 = vsel %vm320, %v1652, 0
  %v1661 = vsel %vm320, %v1656, 0
  %v1663 = vsel %vm320, %v1658, 0
  %1665 = vmatprep.subr.mxu0 0.0
  %1666 = vmatpush1.xpose.msra.mxu0 0.0
  %1667 = vmatprep.subr.mxu0 0.0
  %1668 = vmatpush1.xpose.msra.mxu0 0.0
  %1669 = vmatprep.subr.mxu0 0.0
  %1670 = vmatpush1.xpose.msra.mxu0 0.0
  %1671 = vmatprep.subr.mxu0 0.0
  %1672 = vmatpush1.xpose.msra.mxu0 0.0
  %1673 = vmatprep.subr.mxu0 0.0
  %1674 = vmatpush1.xpose.msra.mxu0 0.0
  %1675 = vmatprep.subr.mxu0 0.0
  %1676 = vmatpush1.xpose.msra.mxu0 0.0
  %1677 = vmatprep.subr.mxu0 0.0
  %1678 = vmatpush1.xpose.msra.mxu0 0.0
  %1679 = vmatprep.subr.mxu0 0.0
  %1680 = vmatpush1.xpose.msra.mxu0 0.0
  %1681 = vmatprep.subr.mxu0 0.0
  %1682 = vmatpush1.xpose.msra.mxu0 0.0
  %1683 = vmatprep.subr.mxu0 0.0
  %1684 = vmatpush1.xpose.msra.mxu0 0.0
  %1685 = vmatprep.subr.mxu0 0.0
  %1686 = vmatpush1.xpose.msra.mxu0 0.0
  %1687 = vmatprep.subr.mxu0 0.0
  %1688 = vmatpush1.xpose.msra.mxu0 0.0
  %1689 = vmatprep.subr.mxu0 0.0
  %1690 = vmatpush1.xpose.msra.mxu0 0.0
  %1691 = vmatprep.subr.mxu0 0.0
  %1692 = vmatpush1.xpose.msra.mxu0 0.0
  %1693 = vmatprep.subr.mxu0 0.0
  %1694 = vmatpush1.xpose.msra.mxu0 %v1663
  %1695 = vmatprep.subr.mxu0 0.0
  %1696 = vmatpush1.xpose.msra.mxu0 %v1661
  %1697 = vmatprep.subr.mxu0 0.0
  %1698 = vmatpush2.xpose.msra.mxu0 0.0
  %1699 = vmatprep.subr.mxu0 0.0
  %1700 = vmatpush2.xpose.msra.mxu0 0.0
  %1701 = vmatprep.subr.mxu0 0.0
  %1702 = vmatpush2.xpose.msra.mxu0 0.0
  %1703 = vmatprep.subr.mxu0 0.0
  %1704 = vmatpush2.xpose.msra.mxu0 0.0
  %1705 = vmatprep.subr.mxu0 0.0
  %1706 = vmatpush2.xpose.msra.mxu0 0.0
  %1707 = vmatprep.subr.mxu0 0.0
  %1708 = vmatpush2.xpose.msra.mxu0 0.0
  %1709 = vmatprep.subr.mxu0 0.0
  %1710 = vmatpush2.xpose.msra.mxu0 0.0
  %1711 = vmatprep.subr.mxu0 0.0
  %1712 = vmatpush2.xpose.msra.mxu0 0.0
  %1713 = vmatprep.subr.mxu0 0.0
  %1714 = vmatpush2.xpose.msra.mxu0 0.0
  %1715 = vmatprep.subr.mxu0 0.0
  %1716 = vmatpush2.xpose.msra.mxu0 0.0
  %1717 = vmatprep.subr.mxu0 0.0
  %1718 = vmatpush2.xpose.msra.mxu0 0.0
  %1719 = vmatprep.subr.mxu0 0.0
  %1720 = vmatpush2.xpose.msra.mxu0 0.0
  %1721 = vmatprep.subr.mxu0 0.0
  %1722 = vmatpush2.xpose.msra.mxu0 0.0
  %1723 = vmatprep.subr.mxu0 0.0
  %1724 = vmatpush2.xpose.msra.mxu0 0.0
  %1725 = vmatprep.subr.mxu0 0.0
  %1726 = vmatpush2.xpose.msra.mxu0 0.0
  %1727 = vmatprep.subr.mxu0 0.0
  %1728 = vmatpush2.xpose.msra.mxu0 0.0
  %1729 = vmatprep.mubr.f32.mxu0 0.0
  %1730 = vmatmul.mubr.f32.gmra.mxu0 %v1659
  %v1731 = vpop.f32.mrf.mxu0
  %v1732 = vadd.f32 0.0, %v1731
  %v1733 = vpop.f32.mrf.mxu0
  %1734 = vdwg.mxu0
  %v1735 = vmul.f32 %v1732, 0.20412415
  %1736 = vrot.lane.b32.xlu0 %v312, 120
  %v1737 = vpop.permute.xlu0 %1736
  %v1738 = vsel %vm320, %v1737, 0
  %1740 = vmatprep.subr.mxu0 0.0
  %1741 = vmatpush1.xpose.msra.mxu0 0.0
  %1742 = vmatprep.subr.mxu0 0.0
  %1743 = vmatpush1.xpose.msra.mxu0 0.0
  %1744 = vmatprep.subr.mxu0 0.0
  %1745 = vmatpush1.xpose.msra.mxu0 0.0
  %1746 = vmatprep.subr.mxu0 0.0
  %1747 = vmatpush1.xpose.msra.mxu0 0.0
  %1748 = vmatprep.subr.mxu0 0.0
  %1749 = vmatpush1.xpose.msra.mxu0 0.0
  %1750 = vmatprep.subr.mxu0 0.0
  %1751 = vmatpush1.xpose.msra.mxu0 0.0
  %1752 = vmatprep.subr.mxu0 0.0
  %1753 = vmatpush1.xpose.msra.mxu0 0.0
  %1754 = vmatprep.subr.mxu0 0.0
  %1755 = vmatpush1.xpose.msra.mxu0 0.0
  %1756 = vmatprep.subr.mxu0 0.0
  %1757 = vmatpush1.xpose.msra.mxu0 0.0
  %1758 = vmatprep.subr.mxu0 0.0
  %1759 = vmatpush1.xpose.msra.mxu0 0.0
  %1760 = vmatprep.subr.mxu0 0.0
  %1761 = vmatpush1.xpose.msra.mxu0 0.0
  %1762 = vmatprep.subr.mxu0 0.0
  %1763 = vmatpush1.xpose.msra.mxu0 0.0
  %1764 = vmatprep.subr.mxu0 0.0
  %1765 = vmatpush1.xpose.msra.mxu0 0.0
  %1766 = vmatprep.subr.mxu0 0.0
  %1767 = vmatpush1.xpose.msra.mxu0 0.0
  %1768 = vmatprep.subr.mxu0 0.0
  %1769 = vmatpush1.xpose.msra.mxu0 0.0
  %1770 = vmatprep.subr.mxu0 0.0
  %1771 = vmatpush1.xpose.msra.mxu0 %v1738
  %1772 = vmatprep.subr.mxu0 0.0
  %1773 = vmatpush2.xpose.msra.mxu0 0.0
  %1774 = vmatprep.subr.mxu0 0.0
  %1775 = vmatpush2.xpose.msra.mxu0 0.0
  %1776 = vmatprep.subr.mxu0 0.0
  %1777 = vmatpush2.xpose.msra.mxu0 0.0
  %1778 = vmatprep.subr.mxu0 0.0
  %1779 = vmatpush2.xpose.msra.mxu0 0.0
  %1780 = vmatprep.subr.mxu0 0.0
  %1781 = vmatpush2.xpose.msra.mxu0 0.0
  %1782 = vmatprep.subr.mxu0 0.0
  %1783 = vmatpush2.xpose.msra.mxu0 0.0
  %1784 = vmatprep.subr.mxu0 0.0
  %1785 = vmatpush2.xpose.msra.mxu0 0.0
  %1786 = vmatprep.subr.mxu0 0.0
  %1787 = vmatpush2.xpose.msra.mxu0 0.0
  %1788 = vmatprep.subr.mxu0 0.0
  %1789 = vmatpush2.xpose.msra.mxu0 0.0
  %1790 = vmatprep.subr.mxu0 0.0
  %1791 = vmatpush2.xpose.msra.mxu0 0.0
  %1792 = vmatprep.subr.mxu0 0.0
  %1793 = vmatpush2.xpose.msra.mxu0 0.0
  %1794 = vmatprep.subr.mxu0 0.0
  %1795 = vmatpush2.xpose.msra.mxu0 0.0
  %1796 = vmatprep.subr.mxu0 0.0
  %1797 = vmatpush2.xpose.msra.mxu0 0.0
  %1798 = vmatprep.subr.mxu0 0.0
  %1799 = vmatpush2.xpose.msra.mxu0 0.0
  %1800 = vmatprep.subr.mxu0 0.0
  %1801 = vmatpush2.xpose.msra.mxu0 0.0
  %1802 = vmatprep.subr.mxu0 0.0
  %1803 = vmatpush2.xpose.msra.mxu0 0.0
  %1804 = vmatprep.mubr.f32.mxu0 0.0
  %1805 = vmatmul.mubr.f32.gmra.mxu0 %v1659
  %v1806 = vpop.f32.mrf.mxu0
  %v1807 = vadd.f32 0.0, %v1806
  %v1808 = vpop.f32.mrf.mxu0
  %1809 = vdwg.mxu0
  %v1810 = vmul.f32 %v1807, 0.20412415
  %v1811 = vmul.f32 %v1735, %v1735
  %v1812 = vmul.f32 %v1810, %v1810
  %v1813 = vsel %vm475, %v1811, -inf
  %1814 = vmax.xlane.f32.xlu0 %v1813
  %v1815 = vpop.xlane.xlu0 %1814
  %v1816 = vsel %vm320, %v1812, -inf
  %1817 = vmax.xlane.f32.xlu0 %v1816
  %v1818 = vpop.xlane.xlu0 %1817
  %v1819 = vmax.f32 %v1815, %v1818
  %v1820 = vrcp.pop %v1819
  %v1821 = vmul.f32 1.0, %v1820
  %v1822 = vmul.f32 %v1811, %v1821
  %v1823 = vmul.f32 %v1812, %v1821
  %1824 = vrot.lane.b32.xlu0 %v312, 56
  %v1825 = vpop.permute.xlu0 %1824
  %v1828 = vsel %vm320, %v1823, 0
  %1830 = vmatprep.subr.mxu0 0.0
  %1831 = vmatpush1.msra.mxu0 0.0
  %1832 = vmatprep.subr.mxu0 0.0
  %1833 = vmatpush1.msra.mxu0 0.0
  %1834 = vmatprep.subr.mxu0 0.0
  %1835 = vmatpush1.msra.mxu0 0.0
  %1836 = vmatprep.subr.mxu0 0.0
  %1837 = vmatpush1.msra.mxu0 0.0
  %1838 = vmatprep.subr.mxu0 0.0
  %1839 = vmatpush1.msra.mxu0 0.0
  %1840 = vmatprep.subr.mxu0 0.0
  %1841 = vmatpush1.msra.mxu0 0.0
  %1842 = vmatprep.subr.mxu0 0.0
  %1843 = vmatpush1.msra.mxu0 0.0
  %1844 = vmatprep.subr.mxu0 0.0
  %1845 = vmatpush1.msra.mxu0 0.0
  %1846 = vmatprep.subr.mxu0 0.0
  %1847 = vmatpush1.msra.mxu0 0.0
  %1848 = vmatprep.subr.mxu0 0.0
  %1849 = vmatpush1.msra.mxu0 0.0
  %1850 = vmatprep.subr.mxu0 0.0
  %1851 = vmatpush1.msra.mxu0 0.0
  %1852 = vmatprep.subr.mxu0 0.0
  %1853 = vmatpush1.msra.mxu0 0.0
  %1854 = vmatprep.subr.mxu0 0.0
  %1855 = vmatpush1.msra.mxu0 0.0
  %1856 = vmatprep.subr.mxu0 0.0
  %1857 = vmatpush1.msra.mxu0 0.0
  %1858 = vmatprep.subr.mxu0 0.0
  %1859 = vmatpush1.msra.mxu0 0.0
  %1860 = vmatprep.subr.mxu0 0.0
  %1861 = vmatpush1.msra.mxu0 %v1825
  %1862 = vmatprep.subr.mxu0 0.0
  %1863 = vmatpush2.msra.mxu0 0.0
  %1864 = vmatprep.subr.mxu0 0.0
  %1865 = vmatpush2.msra.mxu0 0.0
  %1866 = vmatprep.subr.mxu0 0.0
  %1867 = vmatpush2.msra.mxu0 0.0
  %1868 = vmatprep.subr.mxu0 0.0
  %1869 = vmatpush2.msra.mxu0 0.0
  %1870 = vmatprep.subr.mxu0 0.0
  %1871 = vmatpush2.msra.mxu0 0.0
  %1872 = vmatprep.subr.mxu0 0.0
  %1873 = vmatpush2.msra.mxu0 0.0
  %1874 = vmatprep.subr.mxu0 0.0
  %1875 = vmatpush2.msra.mxu0 0.0
  %1876 = vmatprep.subr.mxu0 0.0
  %1877 = vmatpush2.msra.mxu0 0.0
  %1878 = vmatprep.subr.mxu0 0.0
  %1879 = vmatpush2.msra.mxu0 0.0
  %1880 = vmatprep.subr.mxu0 0.0
  %1881 = vmatpush2.msra.mxu0 0.0
  %1882 = vmatprep.subr.mxu0 0.0
  %1883 = vmatpush2.msra.mxu0 0.0
  %1884 = vmatprep.subr.mxu0 0.0
  %1885 = vmatpush2.msra.mxu0 0.0
  %1886 = vmatprep.subr.mxu0 0.0
  %1887 = vmatpush2.msra.mxu0 0.0
  %1888 = vmatprep.subr.mxu0 0.0
  %1889 = vmatpush2.msra.mxu0 0.0
  %1890 = vmatprep.subr.mxu0 0.0
  %1891 = vmatpush2.msra.mxu0 0.0
  %1892 = vmatprep.subr.mxu0 0.0
  %1893 = vmatpush2.msra.mxu0 0.0
  %1894 = vmatprep.mubr.f32.mxu0 0.0
  %1895 = vmatmul.mubr.f32.gmra.mxu0 %v1828
  %v1896 = vpop.f32.mrf.mxu0
  %v1897 = vadd.f32 0.0, %v1896
  %v1898 = vpop.f32.mrf.mxu0
  %1899 = vdwg.mxu0
  %1900 = vrot.lane.b32.xlu0 %v184, 56
  %v1901 = vpop.permute.xlu0 %1900
  %1902 = vrot.lane.b32.xlu0 %v189, 56
  %v1903 = vpop.permute.xlu0 %1902
  %v1907 = vsel %vm475, %v1822, 0
  %1909 = vmatprep.subr.mxu0 0.0
  %1910 = vmatpush1.msra.mxu0 0.0
  %1911 = vmatprep.subr.mxu0 0.0
  %1912 = vmatpush1.msra.mxu0 0.0
  %1913 = vmatprep.subr.mxu0 0.0
  %1914 = vmatpush1.msra.mxu0 0.0
  %1915 = vmatprep.subr.mxu0 0.0
  %1916 = vmatpush1.msra.mxu0 0.0
  %1917 = vmatprep.subr.mxu0 0.0
  %1918 = vmatpush1.msra.mxu0 0.0
  %1919 = vmatprep.subr.mxu0 0.0
  %1920 = vmatpush1.msra.mxu0 0.0
  %1921 = vmatprep.subr.mxu0 0.0
  %1922 = vmatpush1.msra.mxu0 0.0
  %1923 = vmatprep.subr.mxu0 0.0
  %1924 = vmatpush1.msra.mxu0 0.0
  %1925 = vmatprep.subr.mxu0 0.0
  %1926 = vmatpush1.msra.mxu0 0.0
  %1927 = vmatprep.subr.mxu0 0.0
  %1928 = vmatpush1.msra.mxu0 0.0
  %1929 = vmatprep.subr.mxu0 0.0
  %1930 = vmatpush1.msra.mxu0 0.0
  %1931 = vmatprep.subr.mxu0 0.0
  %1932 = vmatpush1.msra.mxu0 0.0
  %1933 = vmatprep.subr.mxu0 0.0
  %1934 = vmatpush1.msra.mxu0 0.0
  %1935 = vmatprep.subr.mxu0 0.0
  %1936 = vmatpush1.msra.mxu0 0.0
  %1937 = vmatprep.subr.mxu0 0.0
  %1938 = vmatpush1.msra.mxu0 %v1903
  %1939 = vmatprep.subr.mxu0 0.0
  %1940 = vmatpush1.msra.mxu0 %v1901
  %1941 = vmatprep.subr.mxu0 0.0
  %1942 = vmatpush2.msra.mxu0 0.0
  %1943 = vmatprep.subr.mxu0 0.0
  %1944 = vmatpush2.msra.mxu0 0.0
  %1945 = vmatprep.subr.mxu0 0.0
  %1946 = vmatpush2.msra.mxu0 0.0
  %1947 = vmatprep.subr.mxu0 0.0
  %1948 = vmatpush2.msra.mxu0 0.0
  %1949 = vmatprep.subr.mxu0 0.0
  %1950 = vmatpush2.msra.mxu0 0.0
  %1951 = vmatprep.subr.mxu0 0.0
  %1952 = vmatpush2.msra.mxu0 0.0
  %1953 = vmatprep.subr.mxu0 0.0
  %1954 = vmatpush2.msra.mxu0 0.0
  %1955 = vmatprep.subr.mxu0 0.0
  %1956 = vmatpush2.msra.mxu0 0.0
  %1957 = vmatprep.subr.mxu0 0.0
  %1958 = vmatpush2.msra.mxu0 0.0
  %1959 = vmatprep.subr.mxu0 0.0
  %1960 = vmatpush2.msra.mxu0 0.0
  %1961 = vmatprep.subr.mxu0 0.0
  %1962 = vmatpush2.msra.mxu0 0.0
  %1963 = vmatprep.subr.mxu0 0.0
  %1964 = vmatpush2.msra.mxu0 0.0
  %1965 = vmatprep.subr.mxu0 0.0
  %1966 = vmatpush2.msra.mxu0 0.0
  %1967 = vmatprep.subr.mxu0 0.0
  %1968 = vmatpush2.msra.mxu0 0.0
  %1969 = vmatprep.subr.mxu0 0.0
  %1970 = vmatpush2.msra.mxu0 0.0
  %1971 = vmatprep.subr.mxu0 0.0
  %1972 = vmatpush2.msra.mxu0 0.0
  %1973 = vmatprep.mubr.f32.mxu0 0.0
  %1974 = vmatmul.mubr.f32.gmra.mxu0 %v1907
  %v1975 = vpop.f32.mrf.mxu0
  %v1976 = vadd.f32 %v1897, %v1975
  %v1977 = vpop.f32.mrf.mxu0
  %1978 = vdwg.mxu0
  %v1980 = vsel %vm320, %v1976, 0
  %1982 = vmatprep.subr.mxu0 0.0
  %1983 = vmatpush1.msra.mxu0 0.0
  %1984 = vmatprep.subr.mxu0 0.0
  %1985 = vmatpush1.msra.mxu0 0.0
  %1986 = vmatprep.subr.mxu0 0.0
  %1987 = vmatpush1.msra.mxu0 0.0
  %1988 = vmatprep.subr.mxu0 0.0
  %1989 = vmatpush1.msra.mxu0 0.0
  %1990 = vmatprep.subr.mxu0 0.0
  %1991 = vmatpush1.msra.mxu0 0.0
  %1992 = vmatprep.subr.mxu0 0.0
  %1993 = vmatpush1.msra.mxu0 0.0
  %1994 = vmatprep.subr.mxu0 0.0
  %1995 = vmatpush1.msra.mxu0 0.0
  %1996 = vmatprep.subr.mxu0 0.0
  %1997 = vmatpush1.msra.mxu0 0.0
  %1998 = vmatprep.subr.mxu0 0.0
  %1999 = vmatpush1.msra.mxu0 0.0
  %2000 = vmatprep.subr.mxu0 0.0
  %2001 = vmatpush1.msra.mxu0 0.0
  %2002 = vmatprep.subr.mxu0 0.0
  %2003 = vmatpush1.msra.mxu0 0.0
  %2004 = vmatprep.subr.mxu0 0.0
  %2005 = vmatpush1.msra.mxu0 0.0
  %2006 = vmatprep.subr.mxu0 0.0
  %2007 = vmatpush1.msra.mxu0 0.0
  %2008 = vmatprep.subr.mxu0 0.0
  %2009 = vmatpush1.msra.mxu0 0.0
  %2010 = vmatprep.subr.mxu0 0.0
  %2011 = vmatpush1.msra.mxu0 0.0
  %2012 = vmatprep.subr.mxu0 0.0
  %2013 = vmatpush1.msra.mxu0 %v1431
  %2014 = vmatprep.subr.mxu0 0.0
  %2015 = vmatpush2.msra.mxu0 0.0
  %2016 = vmatprep.subr.mxu0 0.0
  %2017 = vmatpush2.msra.mxu0 0.0
  %2018 = vmatprep.subr.mxu0 0.0
  %2019 = vmatpush2.msra.mxu0 0.0
  %2020 = vmatprep.subr.mxu0 0.0
  %2021 = vmatpush2.msra.mxu0 0.0
  %2022 = vmatprep.subr.mxu0 0.0
  %2023 = vmatpush2.msra.mxu0 0.0
  %2024 = vmatprep.subr.mxu0 0.0
  %2025 = vmatpush2.msra.mxu0 0.0
  %2026 = vmatprep.subr.mxu0 0.0
  %2027 = vmatpush2.msra.mxu0 0.0
  %2028 = vmatprep.subr.mxu0 0.0
  %2029 = vmatpush2.msra.mxu0 0.0
  %2030 = vmatprep.subr.mxu0 0.0
  %2031 = vmatpush2.msra.mxu0 0.0
  %2032 = vmatprep.subr.mxu0 0.0
  %2033 = vmatpush2.msra.mxu0 0.0
  %2034 = vmatprep.subr.mxu0 0.0
  %2035 = vmatpush2.msra.mxu0 0.0
  %2036 = vmatprep.subr.mxu0 0.0
  %2037 = vmatpush2.msra.mxu0 0.0
  %2038 = vmatprep.subr.mxu0 0.0
  %2039 = vmatpush2.msra.mxu0 0.0
  %2040 = vmatprep.subr.mxu0 0.0
  %2041 = vmatpush2.msra.mxu0 0.0
  %2042 = vmatprep.subr.mxu0 0.0
  %2043 = vmatpush2.msra.mxu0 0.0
  %2044 = vmatprep.subr.mxu0 0.0
  %2045 = vmatpush2.msra.mxu0 0.0
  %2046 = vmatprep.mubr.f32.mxu0 0.0
  %2047 = vmatmul.mubr.f32.gmra.mxu0 %v1980
  %v2048 = vpop.f32.mrf.mxu0
  %v2049 = vadd.f32 0.0, %v2048
  %v2050 = vpop.f32.mrf.mxu0
  %2051 = vdwg.mxu0
  %v2053 = vsel %vm320, %v1030, 0
  %2055 = vmatprep.subr.mxu0 0.0
  %2056 = vmatpush1.msra.mxu0 0.0
  %2057 = vmatprep.subr.mxu0 0.0
  %2058 = vmatpush1.msra.mxu0 0.0
  %2059 = vmatprep.subr.mxu0 0.0
  %2060 = vmatpush1.msra.mxu0 0.0
  %2061 = vmatprep.subr.mxu0 0.0
  %2062 = vmatpush1.msra.mxu0 0.0
  %2063 = vmatprep.subr.mxu0 0.0
  %2064 = vmatpush1.msra.mxu0 0.0
  %2065 = vmatprep.subr.mxu0 0.0
  %2066 = vmatpush1.msra.mxu0 0.0
  %2067 = vmatprep.subr.mxu0 0.0
  %2068 = vmatpush1.msra.mxu0 0.0
  %2069 = vmatprep.subr.mxu0 0.0
  %2070 = vmatpush1.msra.mxu0 0.0
  %2071 = vmatprep.subr.mxu0 0.0
  %2072 = vmatpush1.msra.mxu0 0.0
  %2073 = vmatprep.subr.mxu0 0.0
  %2074 = vmatpush1.msra.mxu0 0.0
  %2075 = vmatprep.subr.mxu0 0.0
  %2076 = vmatpush1.msra.mxu0 0.0
  %2077 = vmatprep.subr.mxu0 0.0
  %2078 = vmatpush1.msra.mxu0 0.0
  %2079 = vmatprep.subr.mxu0 0.0
  %2080 = vmatpush1.msra.mxu0 0.0
  %2081 = vmatprep.subr.mxu0 0.0
  %2082 = vmatpush1.msra.mxu0 0.0
  %2083 = vmatprep.subr.mxu0 0.0
  %2084 = vmatpush1.msra.mxu0 0.0
  %2085 = vmatprep.subr.mxu0 0.0
  %2086 = vmatpush1.msra.mxu0 %v1508
  %2087 = vmatprep.subr.mxu0 0.0
  %2088 = vmatpush2.msra.mxu0 0.0
  %2089 = vmatprep.subr.mxu0 0.0
  %2090 = vmatpush2.msra.mxu0 0.0
  %2091 = vmatprep.subr.mxu0 0.0
  %2092 = vmatpush2.msra.mxu0 0.0
  %2093 = vmatprep.subr.mxu0 0.0
  %2094 = vmatpush2.msra.mxu0 0.0
  %2095 = vmatprep.subr.mxu0 0.0
  %2096 = vmatpush2.msra.mxu0 0.0
  %2097 = vmatprep.subr.mxu0 0.0
  %2098 = vmatpush2.msra.mxu0 0.0
  %2099 = vmatprep.subr.mxu0 0.0
  %2100 = vmatpush2.msra.mxu0 0.0
  %2101 = vmatprep.subr.mxu0 0.0
  %2102 = vmatpush2.msra.mxu0 0.0
  %2103 = vmatprep.subr.mxu0 0.0
  %2104 = vmatpush2.msra.mxu0 0.0
  %2105 = vmatprep.subr.mxu0 0.0
  %2106 = vmatpush2.msra.mxu0 0.0
  %2107 = vmatprep.subr.mxu0 0.0
  %2108 = vmatpush2.msra.mxu0 0.0
  %2109 = vmatprep.subr.mxu0 0.0
  %2110 = vmatpush2.msra.mxu0 0.0
  %2111 = vmatprep.subr.mxu0 0.0
  %2112 = vmatpush2.msra.mxu0 0.0
  %2113 = vmatprep.subr.mxu0 0.0
  %2114 = vmatpush2.msra.mxu0 0.0
  %2115 = vmatprep.subr.mxu0 0.0
  %2116 = vmatpush2.msra.mxu0 0.0
  %2117 = vmatprep.subr.mxu0 0.0
  %2118 = vmatpush2.msra.mxu0 0.0
  %2119 = vmatprep.mubr.f32.mxu0 0.0
  %2120 = vmatmul.mubr.f32.gmra.mxu0 %v2053
  %v2121 = vpop.f32.mrf.mxu0
  %v2122 = vadd.f32 %v2049, %v2121
  %v2123 = vpop.f32.mrf.mxu0
  %2124 = vdwg.mxu0
  %v2125 = vadd.f32 %v1822, 1e-06
  %v2126 = vlog2.pop %v2125
  %v2127 = vmul.f32 %v2126, 0.6931472
  %v2128 = vsel %vm475, %v2127, 0.0
  %2129 = vadd.xlane.f32.xlu0 %v2128
  %v2130 = vpop.xlane.xlu0 %2129
  %v2131 = vrot.slane %v2130, 4
  %v2132 = vadd.f32 %v2130, %v2131
  %v2133 = vrot.slane %v2132, 2
  %v2134 = vadd.f32 %v2132, %v2133
  %v2135 = vrot.slane %v2134, 1
  %v2136 = vadd.f32 %v2134, %v2135
  %s2137 = vtos %v2136
  %v2138 = vstv %s2137
  %v2139 = vadd.f32 %v1823, 1e-06
  %v2140 = vlog2.pop %v2139
  %v2141 = vmul.f32 %v2140, 0.6931472
  %v2142 = vsel %vm320, %v2141, 0.0
  %2143 = vadd.xlane.f32.xlu0 %v2142
  %v2144 = vpop.xlane.xlu0 %2143
  %v2145 = vrot.slane %v2144, 4
  %v2146 = vadd.f32 %v2144, %v2145
  %v2147 = vrot.slane %v2146, 2
  %v2148 = vadd.f32 %v2146, %v2147
  %v2149 = vrot.slane %v2148, 1
  %v2150 = vadd.f32 %v2148, %v2149
  %s2151 = vtos %v2150
  %v2152 = vstv %s2151
  %v2153 = vadd.f32 %v2138, %v2152
  %v2154 = vadd.f32 %v1612, %v2153
  %v2155 = vsel %vm475, %v1822, 0.0
  %v2156 = vrot.slane %v2155, 4
  %v2157 = vadd.f32 %v2155, %v2156
  %v2158 = vrot.slane %v2157, 2
  %v2159 = vadd.f32 %v2157, %v2158
  %v2160 = vrot.slane %v2159, 1
  %v2161 = vadd.f32 %v2159, %v2160
  %2162 = vadd.xlane.f32.xlu0 %v2155
  %v2163 = vpop.xlane.xlu0 %2162
  %v2164 = vrot.slane %v2163, 4
  %v2165 = vadd.f32 %v2163, %v2164
  %v2166 = vrot.slane %v2165, 2
  %v2167 = vadd.f32 %v2165, %v2166
  %v2168 = vrot.slane %v2167, 1
  %v2169 = vadd.f32 %v2167, %v2168
  %s2170 = vtos %v2169
  %v2171 = vstv %s2170
  %v2172 = vsel %vm320, %v1823, 0.0
  %2173 = vadd.xlane.f32.xlu0 %v2172
  %v2174 = vpop.xlane.xlu0 %2173
  %v2175 = vrot.slane %v2174, 4
  %v2176 = vadd.f32 %v2174, %v2175
  %v2177 = vrot.slane %v2176, 2
  %v2178 = vadd.f32 %v2176, %v2177
  %v2179 = vrot.slane %v2178, 1
  %v2180 = vadd.f32 %v2178, %v2179
  %s2181 = vtos %v2180
  %v2182 = vstv %s2181
  %v2183 = vadd.f32 %v2171, %v2182
  %v2184 = vmul.f32 %v2183, 0.041666668
  %v2185 = vrcp.pop %v2184
  %v2186 = vmul.f32 %v2161, %v2185
  %v2187 = vsub.f32 %v2186, 1.0
  %v2188 = vsub.f32 %v2187, 0.01
  %vm2189 = vcmp.eq.s32.totalorder %v316, 3
  %v2190 = vsel %vm2189, 1.0, 0.0
  %v2191 = vmul.f32 %v2190, %v2188
  %v2192 = vadd.f32 %v1650, %v2191
  %2193 = vrot.lane.b32.xlu0 %v307, 80
  %v2194 = vpop.permute.xlu0 %2193
  %2197 = vrot.lane.b32.xlu0 %v194, 112
  %v2198 = vpop.permute.xlu0 %2197
  %2199 = vrot.lane.b32.xlu0 %v199, 112
  %v2200 = vpop.permute.xlu0 %2199
  %v2201 = vsel %vm320, %v2194, 0
  %v2203 = vsel %vm320, %v2198, 0
  %v2205 = vsel %vm320, %v2200, 0
  %2207 = vmatprep.subr.mxu0 0.0
  %2208 = vmatpush1.xpose.msra.mxu0 0.0
  %2209 = vmatprep.subr.mxu0 0.0
  %2210 = vmatpush1.xpose.msra.mxu0 0.0
  %2211 = vmatprep.subr.mxu0 0.0
  %2212 = vmatpush1.xpose.msra.mxu0 0.0
  %2213 = vmatprep.subr.mxu0 0.0
  %2214 = vmatpush1.xpose.msra.mxu0 0.0
  %2215 = vmatprep.subr.mxu0 0.0
  %2216 = vmatpush1.xpose.msra.mxu0 0.0
  %2217 = vmatprep.subr.mxu0 0.0
  %2218 = vmatpush1.xpose.msra.mxu0 0.0
  %2219 = vmatprep.subr.mxu0 0.0
  %2220 = vmatpush1.xpose.msra.mxu0 0.0
  %2221 = vmatprep.subr.mxu0 0.0
  %2222 = vmatpush1.xpose.msra.mxu0 0.0
  %2223 = vmatprep.subr.mxu0 0.0
  %2224 = vmatpush1.xpose.msra.mxu0 0.0
  %2225 = vmatprep.subr.mxu0 0.0
  %2226 = vmatpush1.xpose.msra.mxu0 0.0
  %2227 = vmatprep.subr.mxu0 0.0
  %2228 = vmatpush1.xpose.msra.mxu0 0.0
  %2229 = vmatprep.subr.mxu0 0.0
  %2230 = vmatpush1.xpose.msra.mxu0 0.0
  %2231 = vmatprep.subr.mxu0 0.0
  %2232 = vmatpush1.xpose.msra.mxu0 0.0
  %2233 = vmatprep.subr.mxu0 0.0
  %2234 = vmatpush1.xpose.msra.mxu0 0.0
  %2235 = vmatprep.subr.mxu0 0.0
  %2236 = vmatpush1.xpose.msra.mxu0 %v2205
  %2237 = vmatprep.subr.mxu0 0.0
  %2238 = vmatpush1.xpose.msra.mxu0 %v2203
  %2239 = vmatprep.subr.mxu0 0.0
  %2240 = vmatpush2.xpose.msra.mxu0 0.0
  %2241 = vmatprep.subr.mxu0 0.0
  %2242 = vmatpush2.xpose.msra.mxu0 0.0
  %2243 = vmatprep.subr.mxu0 0.0
  %2244 = vmatpush2.xpose.msra.mxu0 0.0
  %2245 = vmatprep.subr.mxu0 0.0
  %2246 = vmatpush2.xpose.msra.mxu0 0.0
  %2247 = vmatprep.subr.mxu0 0.0
  %2248 = vmatpush2.xpose.msra.mxu0 0.0
  %2249 = vmatprep.subr.mxu0 0.0
  %2250 = vmatpush2.xpose.msra.mxu0 0.0
  %2251 = vmatprep.subr.mxu0 0.0
  %2252 = vmatpush2.xpose.msra.mxu0 0.0
  %2253 = vmatprep.subr.mxu0 0.0
  %2254 = vmatpush2.xpose.msra.mxu0 0.0
  %2255 = vmatprep.subr.mxu0 0.0
  %2256 = vmatpush2.xpose.msra.mxu0 0.0
  %2257 = vmatprep.subr.mxu0 0.0
  %2258 = vmatpush2.xpose.msra.mxu0 0.0
  %2259 = vmatprep.subr.mxu0 0.0
  %2260 = vmatpush2.xpose.msra.mxu0 0.0
  %2261 = vmatprep.subr.mxu0 0.0
  %2262 = vmatpush2.xpose.msra.mxu0 0.0
  %2263 = vmatprep.subr.mxu0 0.0
  %2264 = vmatpush2.xpose.msra.mxu0 0.0
  %2265 = vmatprep.subr.mxu0 0.0
  %2266 = vmatpush2.xpose.msra.mxu0 0.0
  %2267 = vmatprep.subr.mxu0 0.0
  %2268 = vmatpush2.xpose.msra.mxu0 0.0
  %2269 = vmatprep.subr.mxu0 0.0
  %2270 = vmatpush2.xpose.msra.mxu0 0.0
  %2271 = vmatprep.mubr.f32.mxu0 0.0
  %2272 = vmatmul.mubr.f32.gmra.mxu0 %v2201
  %v2273 = vpop.f32.mrf.mxu0
  %v2274 = vadd.f32 0.0, %v2273
  %v2275 = vpop.f32.mrf.mxu0
  %2276 = vdwg.mxu0
  %v2277 = vmul.f32 %v2274, 0.20412415
  %2278 = vrot.lane.b32.xlu0 %v307, 112
  %v2279 = vpop.permute.xlu0 %2278
  %v2280 = vsel %vm320, %v2279, 0
  %2282 = vmatprep.subr.mxu0 0.0
  %2283 = vmatpush1.xpose.msra.mxu0 0.0
  %2284 = vmatprep.subr.mxu0 0.0
  %2285 = vmatpush1.xpose.msra.mxu0 0.0
  %2286 = vmatprep.subr.mxu0 0.0
  %2287 = vmatpush1.xpose.msra.mxu0 0.0
  %2288 = vmatprep.subr.mxu0 0.0
  %2289 = vmatpush1.xpose.msra.mxu0 0.0
  %2290 = vmatprep.subr.mxu0 0.0
  %2291 = vmatpush1.xpose.msra.mxu0 0.0
  %2292 = vmatprep.subr.mxu0 0.0
  %2293 = vmatpush1.xpose.msra.mxu0 0.0
  %2294 = vmatprep.subr.mxu0 0.0
  %2295 = vmatpush1.xpose.msra.mxu0 0.0
  %2296 = vmatprep.subr.mxu0 0.0
  %2297 = vmatpush1.xpose.msra.mxu0 0.0
  %2298 = vmatprep.subr.mxu0 0.0
  %2299 = vmatpush1.xpose.msra.mxu0 0.0
  %2300 = vmatprep.subr.mxu0 0.0
  %2301 = vmatpush1.xpose.msra.mxu0 0.0
  %2302 = vmatprep.subr.mxu0 0.0
  %2303 = vmatpush1.xpose.msra.mxu0 0.0
  %2304 = vmatprep.subr.mxu0 0.0
  %2305 = vmatpush1.xpose.msra.mxu0 0.0
  %2306 = vmatprep.subr.mxu0 0.0
  %2307 = vmatpush1.xpose.msra.mxu0 0.0
  %2308 = vmatprep.subr.mxu0 0.0
  %2309 = vmatpush1.xpose.msra.mxu0 0.0
  %2310 = vmatprep.subr.mxu0 0.0
  %2311 = vmatpush1.xpose.msra.mxu0 0.0
  %2312 = vmatprep.subr.mxu0 0.0
  %2313 = vmatpush1.xpose.msra.mxu0 %v2280
  %2314 = vmatprep.subr.mxu0 0.0
  %2315 = vmatpush2.xpose.msra.mxu0 0.0
  %2316 = vmatprep.subr.mxu0 0.0
  %2317 = vmatpush2.xpose.msra.mxu0 0.0
  %2318 = vmatprep.subr.mxu0 0.0
  %2319 = vmatpush2.xpose.msra.mxu0 0.0
  %2320 = vmatprep.subr.mxu0 0.0
  %2321 = vmatpush2.xpose.msra.mxu0 0.0
  %2322 = vmatprep.subr.mxu0 0.0
  %2323 = vmatpush2.xpose.msra.mxu0 0.0
  %2324 = vmatprep.subr.mxu0 0.0
  %2325 = vmatpush2.xpose.msra.mxu0 0.0
  %2326 = vmatprep.subr.mxu0 0.0
  %2327 = vmatpush2.xpose.msra.mxu0 0.0
  %2328 = vmatprep.subr.mxu0 0.0
  %2329 = vmatpush2.xpose.msra.mxu0 0.0
  %2330 = vmatprep.subr.mxu0 0.0
  %2331 = vmatpush2.xpose.msra.mxu0 0.0
  %2332 = vmatprep.subr.mxu0 0.0
  %2333 = vmatpush2.xpose.msra.mxu0 0.0
  %2334 = vmatprep.subr.mxu0 0.0
  %2335 = vmatpush2.xpose.msra.mxu0 0.0
  %2336 = vmatprep.subr.mxu0 0.0
  %2337 = vmatpush2.xpose.msra.mxu0 0.0
  %2338 = vmatprep.subr.mxu0 0.0
  %2339 = vmatpush2.xpose.msra.mxu0 0.0
  %2340 = vmatprep.subr.mxu0 0.0
  %2341 = vmatpush2.xpose.msra.mxu0 0.0
  %2342 = vmatprep.subr.mxu0 0.0
  %2343 = vmatpush2.xpose.msra.mxu0 0.0
  %2344 = vmatprep.subr.mxu0 0.0
  %2345 = vmatpush2.xpose.msra.mxu0 0.0
  %2346 = vmatprep.mubr.f32.mxu0 0.0
  %2347 = vmatmul.mubr.f32.gmra.mxu0 %v2201
  %v2348 = vpop.f32.mrf.mxu0
  %v2349 = vadd.f32 0.0, %v2348
  %v2350 = vpop.f32.mrf.mxu0
  %2351 = vdwg.mxu0
  %v2352 = vmul.f32 %v2349, 0.20412415
  %v2353 = vmul.f32 %v2277, %v2277
  %v2354 = vmul.f32 %v2352, %v2352
  %v2355 = vsel %vm475, %v2353, -inf
  %2356 = vmax.xlane.f32.xlu0 %v2355
  %v2357 = vpop.xlane.xlu0 %2356
  %v2358 = vsel %vm320, %v2354, -inf
  %2359 = vmax.xlane.f32.xlu0 %v2358
  %v2360 = vpop.xlane.xlu0 %2359
  %v2361 = vmax.f32 %v2357, %v2360
  %v2362 = vrcp.pop %v2361
  %v2363 = vmul.f32 1.0, %v2362
  %v2364 = vmul.f32 %v2353, %v2363
  %v2365 = vmul.f32 %v2354, %v2363
  %2366 = vrot.lane.b32.xlu0 %v307, 48
  %v2367 = vpop.permute.xlu0 %2366
  %v2370 = vsel %vm320, %v2365, 0
  %2372 = vmatprep.subr.mxu0 0.0
  %2373 = vmatpush1.msra.mxu0 0.0
  %2374 = vmatprep.subr.mxu0 0.0
  %2375 = vmatpush1.msra.mxu0 0.0
  %2376 = vmatprep.subr.mxu0 0.0
  %2377 = vmatpush1.msra.mxu0 0.0
  %2378 = vmatprep.subr.mxu0 0.0
  %2379 = vmatpush1.msra.mxu0 0.0
  %2380 = vmatprep.subr.mxu0 0.0
  %2381 = vmatpush1.msra.mxu0 0.0
  %2382 = vmatprep.subr.mxu0 0.0
  %2383 = vmatpush1.msra.mxu0 0.0
  %2384 = vmatprep.subr.mxu0 0.0
  %2385 = vmatpush1.msra.mxu0 0.0
  %2386 = vmatprep.subr.mxu0 0.0
  %2387 = vmatpush1.msra.mxu0 0.0
  %2388 = vmatprep.subr.mxu0 0.0
  %2389 = vmatpush1.msra.mxu0 0.0
  %2390 = vmatprep.subr.mxu0 0.0
  %2391 = vmatpush1.msra.mxu0 0.0
  %2392 = vmatprep.subr.mxu0 0.0
  %2393 = vmatpush1.msra.mxu0 0.0
  %2394 = vmatprep.subr.mxu0 0.0
  %2395 = vmatpush1.msra.mxu0 0.0
  %2396 = vmatprep.subr.mxu0 0.0
  %2397 = vmatpush1.msra.mxu0 0.0
  %2398 = vmatprep.subr.mxu0 0.0
  %2399 = vmatpush1.msra.mxu0 0.0
  %2400 = vmatprep.subr.mxu0 0.0
  %2401 = vmatpush1.msra.mxu0 0.0
  %2402 = vmatprep.subr.mxu0 0.0
  %2403 = vmatpush1.msra.mxu0 %v2367
  %2404 = vmatprep.subr.mxu0 0.0
  %2405 = vmatpush2.msra.mxu0 0.0
  %2406 = vmatprep.subr.mxu0 0.0
  %2407 = vmatpush2.msra.mxu0 0.0
  %2408 = vmatprep.subr.mxu0 0.0
  %2409 = vmatpush2.msra.mxu0 0.0
  %2410 = vmatprep.subr.mxu0 0.0
  %2411 = vmatpush2.msra.mxu0 0.0
  %2412 = vmatprep.subr.mxu0 0.0
  %2413 = vmatpush2.msra.mxu0 0.0
  %2414 = vmatprep.subr.mxu0 0.0
  %2415 = vmatpush2.msra.mxu0 0.0
  %2416 = vmatprep.subr.mxu0 0.0
  %2417 = vmatpush2.msra.mxu0 0.0
  %2418 = vmatprep.subr.mxu0 0.0
  %2419 = vmatpush2.msra.mxu0 0.0
  %2420 = vmatprep.subr.mxu0 0.0
  %2421 = vmatpush2.msra.mxu0 0.0
  %2422 = vmatprep.subr.mxu0 0.0
  %2423 = vmatpush2.msra.mxu0 0.0
  %2424 = vmatprep.subr.mxu0 0.0
  %2425 = vmatpush2.msra.mxu0 0.0
  %2426 = vmatprep.subr.mxu0 0.0
  %2427 = vmatpush2.msra.mxu0 0.0
  %2428 = vmatprep.subr.mxu0 0.0
  %2429 = vmatpush2.msra.mxu0 0.0
  %2430 = vmatprep.subr.mxu0 0.0
  %2431 = vmatpush2.msra.mxu0 0.0
  %2432 = vmatprep.subr.mxu0 0.0
  %2433 = vmatpush2.msra.mxu0 0.0
  %2434 = vmatprep.subr.mxu0 0.0
  %2435 = vmatpush2.msra.mxu0 0.0
  %2436 = vmatprep.mubr.f32.mxu0 0.0
  %2437 = vmatmul.mubr.f32.gmra.mxu0 %v2370
  %v2438 = vpop.f32.mrf.mxu0
  %v2439 = vadd.f32 0.0, %v2438
  %v2440 = vpop.f32.mrf.mxu0
  %2441 = vdwg.mxu0
  %2442 = vrot.lane.b32.xlu0 %v194, 48
  %v2443 = vpop.permute.xlu0 %2442
  %2444 = vrot.lane.b32.xlu0 %v199, 48
  %v2445 = vpop.permute.xlu0 %2444
  %v2449 = vsel %vm475, %v2364, 0
  %2451 = vmatprep.subr.mxu0 0.0
  %2452 = vmatpush1.msra.mxu0 0.0
  %2453 = vmatprep.subr.mxu0 0.0
  %2454 = vmatpush1.msra.mxu0 0.0
  %2455 = vmatprep.subr.mxu0 0.0
  %2456 = vmatpush1.msra.mxu0 0.0
  %2457 = vmatprep.subr.mxu0 0.0
  %2458 = vmatpush1.msra.mxu0 0.0
  %2459 = vmatprep.subr.mxu0 0.0
  %2460 = vmatpush1.msra.mxu0 0.0
  %2461 = vmatprep.subr.mxu0 0.0
  %2462 = vmatpush1.msra.mxu0 0.0
  %2463 = vmatprep.subr.mxu0 0.0
  %2464 = vmatpush1.msra.mxu0 0.0
  %2465 = vmatprep.subr.mxu0 0.0
  %2466 = vmatpush1.msra.mxu0 0.0
  %2467 = vmatprep.subr.mxu0 0.0
  %2468 = vmatpush1.msra.mxu0 0.0
  %2469 = vmatprep.subr.mxu0 0.0
  %2470 = vmatpush1.msra.mxu0 0.0
  %2471 = vmatprep.subr.mxu0 0.0
  %2472 = vmatpush1.msra.mxu0 0.0
  %2473 = vmatprep.subr.mxu0 0.0
  %2474 = vmatpush1.msra.mxu0 0.0
  %2475 = vmatprep.subr.mxu0 0.0
  %2476 = vmatpush1.msra.mxu0 0.0
  %2477 = vmatprep.subr.mxu0 0.0
  %2478 = vmatpush1.msra.mxu0 0.0
  %2479 = vmatprep.subr.mxu0 0.0
  %2480 = vmatpush1.msra.mxu0 %v2445
  %2481 = vmatprep.subr.mxu0 0.0
  %2482 = vmatpush1.msra.mxu0 %v2443
  %2483 = vmatprep.subr.mxu0 0.0
  %2484 = vmatpush2.msra.mxu0 0.0
  %2485 = vmatprep.subr.mxu0 0.0
  %2486 = vmatpush2.msra.mxu0 0.0
  %2487 = vmatprep.subr.mxu0 0.0
  %2488 = vmatpush2.msra.mxu0 0.0
  %2489 = vmatprep.subr.mxu0 0.0
  %2490 = vmatpush2.msra.mxu0 0.0
  %2491 = vmatprep.subr.mxu0 0.0
  %2492 = vmatpush2.msra.mxu0 0.0
  %2493 = vmatprep.subr.mxu0 0.0
  %2494 = vmatpush2.msra.mxu0 0.0
  %2495 = vmatprep.subr.mxu0 0.0
  %2496 = vmatpush2.msra.mxu0 0.0
  %2497 = vmatprep.subr.mxu0 0.0
  %2498 = vmatpush2.msra.mxu0 0.0
  %2499 = vmatprep.subr.mxu0 0.0
  %2500 = vmatpush2.msra.mxu0 0.0
  %2501 = vmatprep.subr.mxu0 0.0
  %2502 = vmatpush2.msra.mxu0 0.0
  %2503 = vmatprep.subr.mxu0 0.0
  %2504 = vmatpush2.msra.mxu0 0.0
  %2505 = vmatprep.subr.mxu0 0.0
  %2506 = vmatpush2.msra.mxu0 0.0
  %2507 = vmatprep.subr.mxu0 0.0
  %2508 = vmatpush2.msra.mxu0 0.0
  %2509 = vmatprep.subr.mxu0 0.0
  %2510 = vmatpush2.msra.mxu0 0.0
  %2511 = vmatprep.subr.mxu0 0.0
  %2512 = vmatpush2.msra.mxu0 0.0
  %2513 = vmatprep.subr.mxu0 0.0
  %2514 = vmatpush2.msra.mxu0 0.0
  %2515 = vmatprep.mubr.f32.mxu0 0.0
  %2516 = vmatmul.mubr.f32.gmra.mxu0 %v2449
  %v2517 = vpop.f32.mrf.mxu0
  %v2518 = vadd.f32 %v2439, %v2517
  %v2519 = vpop.f32.mrf.mxu0
  %2520 = vdwg.mxu0
  %2522 = vrot.lane.b32.xlu0 %v19, 32
  %v2523 = vpop.permute.xlu0 %2522
  %v2526 = vsel %vm320, %v2518, 0
  %2528 = vmatprep.subr.mxu0 0.0
  %2529 = vmatpush1.msra.mxu0 0.0
  %2530 = vmatprep.subr.mxu0 0.0
  %2531 = vmatpush1.msra.mxu0 0.0
  %2532 = vmatprep.subr.mxu0 0.0
  %2533 = vmatpush1.msra.mxu0 0.0
  %2534 = vmatprep.subr.mxu0 0.0
  %2535 = vmatpush1.msra.mxu0 0.0
  %2536 = vmatprep.subr.mxu0 0.0
  %2537 = vmatpush1.msra.mxu0 0.0
  %2538 = vmatprep.subr.mxu0 0.0
  %2539 = vmatpush1.msra.mxu0 0.0
  %2540 = vmatprep.subr.mxu0 0.0
  %2541 = vmatpush1.msra.mxu0 0.0
  %2542 = vmatprep.subr.mxu0 0.0
  %2543 = vmatpush1.msra.mxu0 0.0
  %2544 = vmatprep.subr.mxu0 0.0
  %2545 = vmatpush1.msra.mxu0 0.0
  %2546 = vmatprep.subr.mxu0 0.0
  %2547 = vmatpush1.msra.mxu0 0.0
  %2548 = vmatprep.subr.mxu0 0.0
  %2549 = vmatpush1.msra.mxu0 0.0
  %2550 = vmatprep.subr.mxu0 0.0
  %2551 = vmatpush1.msra.mxu0 0.0
  %2552 = vmatprep.subr.mxu0 0.0
  %2553 = vmatpush1.msra.mxu0 0.0
  %2554 = vmatprep.subr.mxu0 0.0
  %2555 = vmatpush1.msra.mxu0 0.0
  %2556 = vmatprep.subr.mxu0 0.0
  %2557 = vmatpush1.msra.mxu0 0.0
  %2558 = vmatprep.subr.mxu0 0.0
  %2559 = vmatpush1.msra.mxu0 %v2523
  %2560 = vmatprep.subr.mxu0 0.0
  %2561 = vmatpush2.msra.mxu0 0.0
  %2562 = vmatprep.subr.mxu0 0.0
  %2563 = vmatpush2.msra.mxu0 0.0
  %2564 = vmatprep.subr.mxu0 0.0
  %2565 = vmatpush2.msra.mxu0 0.0
  %2566 = vmatprep.subr.mxu0 0.0
  %2567 = vmatpush2.msra.mxu0 0.0
  %2568 = vmatprep.subr.mxu0 0.0
  %2569 = vmatpush2.msra.mxu0 0.0
  %2570 = vmatprep.subr.mxu0 0.0
  %2571 = vmatpush2.msra.mxu0 0.0
  %2572 = vmatprep.subr.mxu0 0.0
  %2573 = vmatpush2.msra.mxu0 0.0
  %2574 = vmatprep.subr.mxu0 0.0
  %2575 = vmatpush2.msra.mxu0 0.0
  %2576 = vmatprep.subr.mxu0 0.0
  %2577 = vmatpush2.msra.mxu0 0.0
  %2578 = vmatprep.subr.mxu0 0.0
  %2579 = vmatpush2.msra.mxu0 0.0
  %2580 = vmatprep.subr.mxu0 0.0
  %2581 = vmatpush2.msra.mxu0 0.0
  %2582 = vmatprep.subr.mxu0 0.0
  %2583 = vmatpush2.msra.mxu0 0.0
  %2584 = vmatprep.subr.mxu0 0.0
  %2585 = vmatpush2.msra.mxu0 0.0
  %2586 = vmatprep.subr.mxu0 0.0
  %2587 = vmatpush2.msra.mxu0 0.0
  %2588 = vmatprep.subr.mxu0 0.0
  %2589 = vmatpush2.msra.mxu0 0.0
  %2590 = vmatprep.subr.mxu0 0.0
  %2591 = vmatpush2.msra.mxu0 0.0
  %2592 = vmatprep.mubr.f32.mxu0 0.0
  %2593 = vmatmul.mubr.f32.gmra.mxu0 %v2526
  %v2594 = vpop.f32.mrf.mxu0
  %v2595 = vadd.f32 0.0, %v2594
  %v2596 = vpop.f32.mrf.mxu0
  %2597 = vdwg.mxu0
  %v2598 = vadd.f32 %v1580, %v2595
  %v2599 = vadd.f32 %v2364, 1e-06
  %v2600 = vlog2.pop %v2599
  %v2601 = vmul.f32 %v2600, 0.6931472
  %v2602 = vsel %vm475, %v2601, 0.0
  %2603 = vadd.xlane.f32.xlu0 %v2602
  %v2604 = vpop.xlane.xlu0 %2603
  %v2605 = vrot.slane %v2604, 4
  %v2606 = vadd.f32 %v2604, %v2605
  %v2607 = vrot.slane %v2606, 2
  %v2608 = vadd.f32 %v2606, %v2607
  %v2609 = vrot.slane %v2608, 1
  %v2610 = vadd.f32 %v2608, %v2609
  %s2611 = vtos %v2610
  %v2612 = vstv %s2611
  %v2613 = vadd.f32 %v2365, 1e-06
  %v2614 = vlog2.pop %v2613
  %v2615 = vmul.f32 %v2614, 0.6931472
  %v2616 = vsel %vm320, %v2615, 0.0
  %2617 = vadd.xlane.f32.xlu0 %v2616
  %v2618 = vpop.xlane.xlu0 %2617
  %v2619 = vrot.slane %v2618, 4
  %v2620 = vadd.f32 %v2618, %v2619
  %v2621 = vrot.slane %v2620, 2
  %v2622 = vadd.f32 %v2620, %v2621
  %v2623 = vrot.slane %v2622, 1
  %v2624 = vadd.f32 %v2622, %v2623
  %s2625 = vtos %v2624
  %v2626 = vstv %s2625
  %v2627 = vadd.f32 %v2612, %v2626
  %v2628 = vadd.f32 %v2154, %v2627
  %v2629 = vsel %vm475, %v2364, 0.0
  %v2630 = vrot.slane %v2629, 4
  %v2631 = vadd.f32 %v2629, %v2630
  %v2632 = vrot.slane %v2631, 2
  %v2633 = vadd.f32 %v2631, %v2632
  %v2634 = vrot.slane %v2633, 1
  %v2635 = vadd.f32 %v2633, %v2634
  %2636 = vadd.xlane.f32.xlu0 %v2629
  %v2637 = vpop.xlane.xlu0 %2636
  %v2638 = vrot.slane %v2637, 4
  %v2639 = vadd.f32 %v2637, %v2638
  %v2640 = vrot.slane %v2639, 2
  %v2641 = vadd.f32 %v2639, %v2640
  %v2642 = vrot.slane %v2641, 1
  %v2643 = vadd.f32 %v2641, %v2642
  %s2644 = vtos %v2643
  %v2645 = vstv %s2644
  %v2646 = vsel %vm320, %v2365, 0.0
  %2647 = vadd.xlane.f32.xlu0 %v2646
  %v2648 = vpop.xlane.xlu0 %2647
  %v2649 = vrot.slane %v2648, 4
  %v2650 = vadd.f32 %v2648, %v2649
  %v2651 = vrot.slane %v2650, 2
  %v2652 = vadd.f32 %v2650, %v2651
  %v2653 = vrot.slane %v2652, 1
  %v2654 = vadd.f32 %v2652, %v2653
  %s2655 = vtos %v2654
  %v2656 = vstv %s2655
  %v2657 = vadd.f32 %v2645, %v2656
  %v2658 = vmul.f32 %v2657, 0.041666668
  %v2659 = vrcp.pop %v2658
  %v2660 = vmul.f32 %v2635, %v2659
  %v2661 = vsub.f32 %v2660, 1.0
  %v2662 = vsub.f32 %v2661, 0.01
  %vm2663 = vcmp.eq.s32.totalorder %v316, 4
  %v2664 = vsel %vm2663, 1.0, 0.0
  %v2665 = vmul.f32 %v2664, %v2662
  %v2666 = vadd.f32 %v2192, %v2665
  %2667 = vrot.lane.b32.xlu0 %v312, 80
  %v2668 = vpop.permute.xlu0 %2667
  %2671 = vrot.lane.b32.xlu0 %v204, 112
  %v2672 = vpop.permute.xlu0 %2671
  %2673 = vrot.lane.b32.xlu0 %v209, 112
  %v2674 = vpop.permute.xlu0 %2673
  %v2675 = vsel %vm320, %v2668, 0
  %v2677 = vsel %vm320, %v2672, 0
  %v2679 = vsel %vm320, %v2674, 0
  %2681 = vmatprep.subr.mxu0 0.0
  %2682 = vmatpush1.xpose.msra.mxu0 0.0
  %2683 = vmatprep.subr.mxu0 0.0
  %2684 = vmatpush1.xpose.msra.mxu0 0.0
  %2685 = vmatprep.subr.mxu0 0.0
  %2686 = vmatpush1.xpose.msra.mxu0 0.0
  %2687 = vmatprep.subr.mxu0 0.0
  %2688 = vmatpush1.xpose.msra.mxu0 0.0
  %2689 = vmatprep.subr.mxu0 0.0
  %2690 = vmatpush1.xpose.msra.mxu0 0.0
  %2691 = vmatprep.subr.mxu0 0.0
  %2692 = vmatpush1.xpose.msra.mxu0 0.0
  %2693 = vmatprep.subr.mxu0 0.0
  %2694 = vmatpush1.xpose.msra.mxu0 0.0
  %2695 = vmatprep.subr.mxu0 0.0
  %2696 = vmatpush1.xpose.msra.mxu0 0.0
  %2697 = vmatprep.subr.mxu0 0.0
  %2698 = vmatpush1.xpose.msra.mxu0 0.0
  %2699 = vmatprep.subr.mxu0 0.0
  %2700 = vmatpush1.xpose.msra.mxu0 0.0
  %2701 = vmatprep.subr.mxu0 0.0
  %2702 = vmatpush1.xpose.msra.mxu0 0.0
  %2703 = vmatprep.subr.mxu0 0.0
  %2704 = vmatpush1.xpose.msra.mxu0 0.0
  %2705 = vmatprep.subr.mxu0 0.0
  %2706 = vmatpush1.xpose.msra.mxu0 0.0
  %2707 = vmatprep.subr.mxu0 0.0
  %2708 = vmatpush1.xpose.msra.mxu0 0.0
  %2709 = vmatprep.subr.mxu0 0.0
  %2710 = vmatpush1.xpose.msra.mxu0 %v2679
  %2711 = vmatprep.subr.mxu0 0.0
  %2712 = vmatpush1.xpose.msra.mxu0 %v2677
  %2713 = vmatprep.subr.mxu0 0.0
  %2714 = vmatpush2.xpose.msra.mxu0 0.0
  %2715 = vmatprep.subr.mxu0 0.0
  %2716 = vmatpush2.xpose.msra.mxu0 0.0
  %2717 = vmatprep.subr.mxu0 0.0
  %2718 = vmatpush2.xpose.msra.mxu0 0.0
  %2719 = vmatprep.subr.mxu0 0.0
  %2720 = vmatpush2.xpose.msra.mxu0 0.0
  %2721 = vmatprep.subr.mxu0 0.0
  %2722 = vmatpush2.xpose.msra.mxu0 0.0
  %2723 = vmatprep.subr.mxu0 0.0
  %2724 = vmatpush2.xpose.msra.mxu0 0.0
  %2725 = vmatprep.subr.mxu0 0.0
  %2726 = vmatpush2.xpose.msra.mxu0 0.0
  %2727 = vmatprep.subr.mxu0 0.0
  %2728 = vmatpush2.xpose.msra.mxu0 0.0
  %2729 = vmatprep.subr.mxu0 0.0
  %2730 = vmatpush2.xpose.msra.mxu0 0.0
  %2731 = vmatprep.subr.mxu0 0.0
  %2732 = vmatpush2.xpose.msra.mxu0 0.0
  %2733 = vmatprep.subr.mxu0 0.0
  %2734 = vmatpush2.xpose.msra.mxu0 0.0
  %2735 = vmatprep.subr.mxu0 0.0
  %2736 = vmatpush2.xpose.msra.mxu0 0.0
  %2737 = vmatprep.subr.mxu0 0.0
  %2738 = vmatpush2.xpose.msra.mxu0 0.0
  %2739 = vmatprep.subr.mxu0 0.0
  %2740 = vmatpush2.xpose.msra.mxu0 0.0
  %2741 = vmatprep.subr.mxu0 0.0
  %2742 = vmatpush2.xpose.msra.mxu0 0.0
  %2743 = vmatprep.subr.mxu0 0.0
  %2744 = vmatpush2.xpose.msra.mxu0 0.0
  %2745 = vmatprep.mubr.f32.mxu0 0.0
  %2746 = vmatmul.mubr.f32.gmra.mxu0 %v2675
  %v2747 = vpop.f32.mrf.mxu0
  %v2748 = vadd.f32 0.0, %v2747
  %v2749 = vpop.f32.mrf.mxu0
  %2750 = vdwg.mxu0
  %v2751 = vmul.f32 %v2748, 0.20412415
  %2752 = vrot.lane.b32.xlu0 %v312, 112
  %v2753 = vpop.permute.xlu0 %2752
  %v2754 = vsel %vm320, %v2753, 0
  %2756 = vmatprep.subr.mxu0 0.0
  %2757 = vmatpush1.xpose.msra.mxu0 0.0
  %2758 = vmatprep.subr.mxu0 0.0
  %2759 = vmatpush1.xpose.msra.mxu0 0.0
  %2760 = vmatprep.subr.mxu0 0.0
  %2761 = vmatpush1.xpose.msra.mxu0 0.0
  %2762 = vmatprep.subr.mxu0 0.0
  %2763 = vmatpush1.xpose.msra.mxu0 0.0
  %2764 = vmatprep.subr.mxu0 0.0
  %2765 = vmatpush1.xpose.msra.mxu0 0.0
  %2766 = vmatprep.subr.mxu0 0.0
  %2767 = vmatpush1.xpose.msra.mxu0 0.0
  %2768 = vmatprep.subr.mxu0 0.0
  %2769 = vmatpush1.xpose.msra.mxu0 0.0
  %2770 = vmatprep.subr.mxu0 0.0
  %2771 = vmatpush1.xpose.msra.mxu0 0.0
  %2772 = vmatprep.subr.mxu0 0.0
  %2773 = vmatpush1.xpose.msra.mxu0 0.0
  %2774 = vmatprep.subr.mxu0 0.0
  %2775 = vmatpush1.xpose.msra.mxu0 0.0
  %2776 = vmatprep.subr.mxu0 0.0
  %2777 = vmatpush1.xpose.msra.mxu0 0.0
  %2778 = vmatprep.subr.mxu0 0.0
  %2779 = vmatpush1.xpose.msra.mxu0 0.0
  %2780 = vmatprep.subr.mxu0 0.0
  %2781 = vmatpush1.xpose.msra.mxu0 0.0
  %2782 = vmatprep.subr.mxu0 0.0
  %2783 = vmatpush1.xpose.msra.mxu0 0.0
  %2784 = vmatprep.subr.mxu0 0.0
  %2785 = vmatpush1.xpose.msra.mxu0 0.0
  %2786 = vmatprep.subr.mxu0 0.0
  %2787 = vmatpush1.xpose.msra.mxu0 %v2754
  %2788 = vmatprep.subr.mxu0 0.0
  %2789 = vmatpush2.xpose.msra.mxu0 0.0
  %2790 = vmatprep.subr.mxu0 0.0
  %2791 = vmatpush2.xpose.msra.mxu0 0.0
  %2792 = vmatprep.subr.mxu0 0.0
  %2793 = vmatpush2.xpose.msra.mxu0 0.0
  %2794 = vmatprep.subr.mxu0 0.0
  %2795 = vmatpush2.xpose.msra.mxu0 0.0
  %2796 = vmatprep.subr.mxu0 0.0
  %2797 = vmatpush2.xpose.msra.mxu0 0.0
  %2798 = vmatprep.subr.mxu0 0.0
  %2799 = vmatpush2.xpose.msra.mxu0 0.0
  %2800 = vmatprep.subr.mxu0 0.0
  %2801 = vmatpush2.xpose.msra.mxu0 0.0
  %2802 = vmatprep.subr.mxu0 0.0
  %2803 = vmatpush2.xpose.msra.mxu0 0.0
  %2804 = vmatprep.subr.mxu0 0.0
  %2805 = vmatpush2.xpose.msra.mxu0 0.0
  %2806 = vmatprep.subr.mxu0 0.0
  %2807 = vmatpush2.xpose.msra.mxu0 0.0
  %2808 = vmatprep.subr.mxu0 0.0
  %2809 = vmatpush2.xpose.msra.mxu0 0.0
  %2810 = vmatprep.subr.mxu0 0.0
  %2811 = vmatpush2.xpose.msra.mxu0 0.0
  %2812 = vmatprep.subr.mxu0 0.0
  %2813 = vmatpush2.xpose.msra.mxu0 0.0
  %2814 = vmatprep.subr.mxu0 0.0
  %2815 = vmatpush2.xpose.msra.mxu0 0.0
  %2816 = vmatprep.subr.mxu0 0.0
  %2817 = vmatpush2.xpose.msra.mxu0 0.0
  %2818 = vmatprep.subr.mxu0 0.0
  %2819 = vmatpush2.xpose.msra.mxu0 0.0
  %2820 = vmatprep.mubr.f32.mxu0 0.0
  %2821 = vmatmul.mubr.f32.gmra.mxu0 %v2675
  %v2822 = vpop.f32.mrf.mxu0
  %v2823 = vadd.f32 0.0, %v2822
  %v2824 = vpop.f32.mrf.mxu0
  %2825 = vdwg.mxu0
  %v2826 = vmul.f32 %v2823, 0.20412415
  %v2827 = vmul.f32 %v2751, %v2751
  %v2828 = vmul.f32 %v2826, %v2826
  %v2829 = vsel %vm475, %v2827, -inf
  %2830 = vmax.xlane.f32.xlu0 %v2829
  %v2831 = vpop.xlane.xlu0 %2830
  %v2832 = vsel %vm320, %v2828, -inf
  %2833 = vmax.xlane.f32.xlu0 %v2832
  %v2834 = vpop.xlane.xlu0 %2833
  %v2835 = vmax.f32 %v2831, %v2834
  %v2836 = vrcp.pop %v2835
  %v2837 = vmul.f32 1.0, %v2836
  %v2838 = vmul.f32 %v2827, %v2837
  %v2839 = vmul.f32 %v2828, %v2837
  %2840 = vrot.lane.b32.xlu0 %v312, 48
  %v2841 = vpop.permute.xlu0 %2840
  %v2844 = vsel %vm320, %v2839, 0
  %2846 = vmatprep.subr.mxu0 0.0
  %2847 = vmatpush1.msra.mxu0 0.0
  %2848 = vmatprep.subr.mxu0 0.0
  %2849 = vmatpush1.msra.mxu0 0.0
  %2850 = vmatprep.subr.mxu0 0.0
  %2851 = vmatpush1.msra.mxu0 0.0
  %2852 = vmatprep.subr.mxu0 0.0
  %2853 = vmatpush1.msra.mxu0 0.0
  %2854 = vmatprep.subr.mxu0 0.0
  %2855 = vmatpush1.msra.mxu0 0.0
  %2856 = vmatprep.subr.mxu0 0.0
  %2857 = vmatpush1.msra.mxu0 0.0
  %2858 = vmatprep.subr.mxu0 0.0
  %2859 = vmatpush1.msra.mxu0 0.0
  %2860 = vmatprep.subr.mxu0 0.0
  %2861 = vmatpush1.msra.mxu0 0.0
  %2862 = vmatprep.subr.mxu0 0.0
  %2863 = vmatpush1.msra.mxu0 0.0
  %2864 = vmatprep.subr.mxu0 0.0
  %2865 = vmatpush1.msra.mxu0 0.0
  %2866 = vmatprep.subr.mxu0 0.0
  %2867 = vmatpush1.msra.mxu0 0.0
  %2868 = vmatprep.subr.mxu0 0.0
  %2869 = vmatpush1.msra.mxu0 0.0
  %2870 = vmatprep.subr.mxu0 0.0
  %2871 = vmatpush1.msra.mxu0 0.0
  %2872 = vmatprep.subr.mxu0 0.0
  %2873 = vmatpush1.msra.mxu0 0.0
  %2874 = vmatprep.subr.mxu0 0.0
  %2875 = vmatpush1.msra.mxu0 0.0
  %2876 = vmatprep.subr.mxu0 0.0
  %2877 = vmatpush1.msra.mxu0 %v2841
  %2878 = vmatprep.subr.mxu0 0.0
  %2879 = vmatpush2.msra.mxu0 0.0
  %2880 = vmatprep.subr.mxu0 0.0
  %2881 = vmatpush2.msra.mxu0 0.0
  %2882 = vmatprep.subr.mxu0 0.0
  %2883 = vmatpush2.msra.mxu0 0.0
  %2884 = vmatprep.subr.mxu0 0.0
  %2885 = vmatpush2.msra.mxu0 0.0
  %2886 = vmatprep.subr.mxu0 0.0
  %2887 = vmatpush2.msra.mxu0 0.0
  %2888 = vmatprep.subr.mxu0 0.0
  %2889 = vmatpush2.msra.mxu0 0.0
  %2890 = vmatprep.subr.mxu0 0.0
  %2891 = vmatpush2.msra.mxu0 0.0
  %2892 = vmatprep.subr.mxu0 0.0
  %2893 = vmatpush2.msra.mxu0 0.0
  %2894 = vmatprep.subr.mxu0 0.0
  %2895 = vmatpush2.msra.mxu0 0.0
  %2896 = vmatprep.subr.mxu0 0.0
  %2897 = vmatpush2.msra.mxu0 0.0
  %2898 = vmatprep.subr.mxu0 0.0
  %2899 = vmatpush2.msra.mxu0 0.0
  %2900 = vmatprep.subr.mxu0 0.0
  %2901 = vmatpush2.msra.mxu0 0.0
  %2902 = vmatprep.subr.mxu0 0.0
  %2903 = vmatpush2.msra.mxu0 0.0
  %2904 = vmatprep.subr.mxu0 0.0
  %2905 = vmatpush2.msra.mxu0 0.0
  %2906 = vmatprep.subr.mxu0 0.0
  %2907 = vmatpush2.msra.mxu0 0.0
  %2908 = vmatprep.subr.mxu0 0.0
  %2909 = vmatpush2.msra.mxu0 0.0
  %2910 = vmatprep.mubr.f32.mxu0 0.0
  %2911 = vmatmul.mubr.f32.gmra.mxu0 %v2844
  %v2912 = vpop.f32.mrf.mxu0
  %v2913 = vadd.f32 0.0, %v2912
  %v2914 = vpop.f32.mrf.mxu0
  %2915 = vdwg.mxu0
  %2916 = vrot.lane.b32.xlu0 %v204, 48
  %v2917 = vpop.permute.xlu0 %2916
  %2918 = vrot.lane.b32.xlu0 %v209, 48
  %v2919 = vpop.permute.xlu0 %2918
  %v2923 = vsel %vm475, %v2838, 0
  %2925 = vmatprep.subr.mxu0 0.0
  %2926 = vmatpush1.msra.mxu0 0.0
  %2927 = vmatprep.subr.mxu0 0.0
  %2928 = vmatpush1.msra.mxu0 0.0
  %2929 = vmatprep.subr.mxu0 0.0
  %2930 = vmatpush1.msra.mxu0 0.0
  %2931 = vmatprep.subr.mxu0 0.0
  %2932 = vmatpush1.msra.mxu0 0.0
  %2933 = vmatprep.subr.mxu0 0.0
  %2934 = vmatpush1.msra.mxu0 0.0
  %2935 = vmatprep.subr.mxu0 0.0
  %2936 = vmatpush1.msra.mxu0 0.0
  %2937 = vmatprep.subr.mxu0 0.0
  %2938 = vmatpush1.msra.mxu0 0.0
  %2939 = vmatprep.subr.mxu0 0.0
  %2940 = vmatpush1.msra.mxu0 0.0
  %2941 = vmatprep.subr.mxu0 0.0
  %2942 = vmatpush1.msra.mxu0 0.0
  %2943 = vmatprep.subr.mxu0 0.0
  %2944 = vmatpush1.msra.mxu0 0.0
  %2945 = vmatprep.subr.mxu0 0.0
  %2946 = vmatpush1.msra.mxu0 0.0
  %2947 = vmatprep.subr.mxu0 0.0
  %2948 = vmatpush1.msra.mxu0 0.0
  %2949 = vmatprep.subr.mxu0 0.0
  %2950 = vmatpush1.msra.mxu0 0.0
  %2951 = vmatprep.subr.mxu0 0.0
  %2952 = vmatpush1.msra.mxu0 0.0
  %2953 = vmatprep.subr.mxu0 0.0
  %2954 = vmatpush1.msra.mxu0 %v2919
  %2955 = vmatprep.subr.mxu0 0.0
  %2956 = vmatpush1.msra.mxu0 %v2917
  %2957 = vmatprep.subr.mxu0 0.0
  %2958 = vmatpush2.msra.mxu0 0.0
  %2959 = vmatprep.subr.mxu0 0.0
  %2960 = vmatpush2.msra.mxu0 0.0
  %2961 = vmatprep.subr.mxu0 0.0
  %2962 = vmatpush2.msra.mxu0 0.0
  %2963 = vmatprep.subr.mxu0 0.0
  %2964 = vmatpush2.msra.mxu0 0.0
  %2965 = vmatprep.subr.mxu0 0.0
  %2966 = vmatpush2.msra.mxu0 0.0
  %2967 = vmatprep.subr.mxu0 0.0
  %2968 = vmatpush2.msra.mxu0 0.0
  %2969 = vmatprep.subr.mxu0 0.0
  %2970 = vmatpush2.msra.mxu0 0.0
  %2971 = vmatprep.subr.mxu0 0.0
  %2972 = vmatpush2.msra.mxu0 0.0
  %2973 = vmatprep.subr.mxu0 0.0
  %2974 = vmatpush2.msra.mxu0 0.0
  %2975 = vmatprep.subr.mxu0 0.0
  %2976 = vmatpush2.msra.mxu0 0.0
  %2977 = vmatprep.subr.mxu0 0.0
  %2978 = vmatpush2.msra.mxu0 0.0
  %2979 = vmatprep.subr.mxu0 0.0
  %2980 = vmatpush2.msra.mxu0 0.0
  %2981 = vmatprep.subr.mxu0 0.0
  %2982 = vmatpush2.msra.mxu0 0.0
  %2983 = vmatprep.subr.mxu0 0.0
  %2984 = vmatpush2.msra.mxu0 0.0
  %2985 = vmatprep.subr.mxu0 0.0
  %2986 = vmatpush2.msra.mxu0 0.0
  %2987 = vmatprep.subr.mxu0 0.0
  %2988 = vmatpush2.msra.mxu0 0.0
  %2989 = vmatprep.mubr.f32.mxu0 0.0
  %2990 = vmatmul.mubr.f32.gmra.mxu0 %v2923
  %v2991 = vpop.f32.mrf.mxu0
  %v2992 = vadd.f32 %v2913, %v2991
  %v2993 = vpop.f32.mrf.mxu0
  %2994 = vdwg.mxu0
  %v2996 = vsel %vm320, %v2992, 0
  %2998 = vmatprep.subr.mxu0 0.0
  %2999 = vmatpush1.msra.mxu0 0.0
  %3000 = vmatprep.subr.mxu0 0.0
  %3001 = vmatpush1.msra.mxu0 0.0
  %3002 = vmatprep.subr.mxu0 0.0
  %3003 = vmatpush1.msra.mxu0 0.0
  %3004 = vmatprep.subr.mxu0 0.0
  %3005 = vmatpush1.msra.mxu0 0.0
  %3006 = vmatprep.subr.mxu0 0.0
  %3007 = vmatpush1.msra.mxu0 0.0
  %3008 = vmatprep.subr.mxu0 0.0
  %3009 = vmatpush1.msra.mxu0 0.0
  %3010 = vmatprep.subr.mxu0 0.0
  %3011 = vmatpush1.msra.mxu0 0.0
  %3012 = vmatprep.subr.mxu0 0.0
  %3013 = vmatpush1.msra.mxu0 0.0
  %3014 = vmatprep.subr.mxu0 0.0
  %3015 = vmatpush1.msra.mxu0 0.0
  %3016 = vmatprep.subr.mxu0 0.0
  %3017 = vmatpush1.msra.mxu0 0.0
  %3018 = vmatprep.subr.mxu0 0.0
  %3019 = vmatpush1.msra.mxu0 0.0
  %3020 = vmatprep.subr.mxu0 0.0
  %3021 = vmatpush1.msra.mxu0 0.0
  %3022 = vmatprep.subr.mxu0 0.0
  %3023 = vmatpush1.msra.mxu0 0.0
  %3024 = vmatprep.subr.mxu0 0.0
  %3025 = vmatpush1.msra.mxu0 0.0
  %3026 = vmatprep.subr.mxu0 0.0
  %3027 = vmatpush1.msra.mxu0 0.0
  %3028 = vmatprep.subr.mxu0 0.0
  %3029 = vmatpush1.msra.mxu0 %v2523
  %3030 = vmatprep.subr.mxu0 0.0
  %3031 = vmatpush2.msra.mxu0 0.0
  %3032 = vmatprep.subr.mxu0 0.0
  %3033 = vmatpush2.msra.mxu0 0.0
  %3034 = vmatprep.subr.mxu0 0.0
  %3035 = vmatpush2.msra.mxu0 0.0
  %3036 = vmatprep.subr.mxu0 0.0
  %3037 = vmatpush2.msra.mxu0 0.0
  %3038 = vmatprep.subr.mxu0 0.0
  %3039 = vmatpush2.msra.mxu0 0.0
  %3040 = vmatprep.subr.mxu0 0.0
  %3041 = vmatpush2.msra.mxu0 0.0
  %3042 = vmatprep.subr.mxu0 0.0
  %3043 = vmatpush2.msra.mxu0 0.0
  %3044 = vmatprep.subr.mxu0 0.0
  %3045 = vmatpush2.msra.mxu0 0.0
  %3046 = vmatprep.subr.mxu0 0.0
  %3047 = vmatpush2.msra.mxu0 0.0
  %3048 = vmatprep.subr.mxu0 0.0
  %3049 = vmatpush2.msra.mxu0 0.0
  %3050 = vmatprep.subr.mxu0 0.0
  %3051 = vmatpush2.msra.mxu0 0.0
  %3052 = vmatprep.subr.mxu0 0.0
  %3053 = vmatpush2.msra.mxu0 0.0
  %3054 = vmatprep.subr.mxu0 0.0
  %3055 = vmatpush2.msra.mxu0 0.0
  %3056 = vmatprep.subr.mxu0 0.0
  %3057 = vmatpush2.msra.mxu0 0.0
  %3058 = vmatprep.subr.mxu0 0.0
  %3059 = vmatpush2.msra.mxu0 0.0
  %3060 = vmatprep.subr.mxu0 0.0
  %3061 = vmatpush2.msra.mxu0 0.0
  %3062 = vmatprep.mubr.f32.mxu0 0.0
  %3063 = vmatmul.mubr.f32.gmra.mxu0 %v2996
  %v3064 = vpop.f32.mrf.mxu0
  %v3065 = vadd.f32 0.0, %v3064
  %v3066 = vpop.f32.mrf.mxu0
  %3067 = vdwg.mxu0
  %v3068 = vadd.f32 %v2122, %v3065
  %v3069 = vadd.f32 %v2838, 1e-06
  %v3070 = vlog2.pop %v3069
  %v3071 = vmul.f32 %v3070, 0.6931472
  %v3072 = vsel %vm475, %v3071, 0.0
  %3073 = vadd.xlane.f32.xlu0 %v3072
  %v3074 = vpop.xlane.xlu0 %3073
  %v3075 = vrot.slane %v3074, 4
  %v3076 = vadd.f32 %v3074, %v3075
  %v3077 = vrot.slane %v3076, 2
  %v3078 = vadd.f32 %v3076, %v3077
  %v3079 = vrot.slane %v3078, 1
  %v3080 = vadd.f32 %v3078, %v3079
  %s3081 = vtos %v3080
  %v3082 = vstv %s3081
  %v3083 = vadd.f32 %v2839, 1e-06
  %v3084 = vlog2.pop %v3083
  %v3085 = vmul.f32 %v3084, 0.6931472
  %v3086 = vsel %vm320, %v3085, 0.0
  %3087 = vadd.xlane.f32.xlu0 %v3086
  %v3088 = vpop.xlane.xlu0 %3087
  %v3089 = vrot.slane %v3088, 4
  %v3090 = vadd.f32 %v3088, %v3089
  %v3091 = vrot.slane %v3090, 2
  %v3092 = vadd.f32 %v3090, %v3091
  %v3093 = vrot.slane %v3092, 1
  %v3094 = vadd.f32 %v3092, %v3093
  %s3095 = vtos %v3094
  %v3096 = vstv %s3095
  %v3097 = vadd.f32 %v3082, %v3096
  %v3098 = vadd.f32 %v2628, %v3097
  %v3099 = vsel %vm475, %v2838, 0.0
  %v3100 = vrot.slane %v3099, 4
  %v3101 = vadd.f32 %v3099, %v3100
  %v3102 = vrot.slane %v3101, 2
  %v3103 = vadd.f32 %v3101, %v3102
  %v3104 = vrot.slane %v3103, 1
  %v3105 = vadd.f32 %v3103, %v3104
  %3106 = vadd.xlane.f32.xlu0 %v3099
  %v3107 = vpop.xlane.xlu0 %3106
  %v3108 = vrot.slane %v3107, 4
  %v3109 = vadd.f32 %v3107, %v3108
  %v3110 = vrot.slane %v3109, 2
  %v3111 = vadd.f32 %v3109, %v3110
  %v3112 = vrot.slane %v3111, 1
  %v3113 = vadd.f32 %v3111, %v3112
  %s3114 = vtos %v3113
  %v3115 = vstv %s3114
  %v3116 = vsel %vm320, %v2839, 0.0
  %3117 = vadd.xlane.f32.xlu0 %v3116
  %v3118 = vpop.xlane.xlu0 %3117
  %v3119 = vrot.slane %v3118, 4
  %v3120 = vadd.f32 %v3118, %v3119
  %v3121 = vrot.slane %v3120, 2
  %v3122 = vadd.f32 %v3120, %v3121
  %v3123 = vrot.slane %v3122, 1
  %v3124 = vadd.f32 %v3122, %v3123
  %s3125 = vtos %v3124
  %v3126 = vstv %s3125
  %v3127 = vadd.f32 %v3115, %v3126
  %v3128 = vmul.f32 %v3127, 0.041666668
  %v3129 = vrcp.pop %v3128
  %v3130 = vmul.f32 %v3105, %v3129
  %v3131 = vsub.f32 %v3130, 1.0
  %v3132 = vsub.f32 %v3131, 0.01
  %vm3133 = vcmp.eq.s32.totalorder %v316, 5
  %v3134 = vsel %vm3133, 1.0, 0.0
  %v3135 = vmul.f32 %v3134, %v3132
  %v3136 = vadd.f32 %v2666, %v3135
  %3137 = vrot.lane.b32.xlu0 %v307, 72
  %v3138 = vpop.permute.xlu0 %3137
  %3141 = vrot.lane.b32.xlu0 %v214, 104
  %v3142 = vpop.permute.xlu0 %3141
  %3143 = vrot.lane.b32.xlu0 %v219, 104
  %v3144 = vpop.permute.xlu0 %3143
  %v3145 = vsel %vm320, %v3138, 0
  %v3147 = vsel %vm320, %v3142, 0
  %v3149 = vsel %vm320, %v3144, 0
  %3151 = vmatprep.subr.mxu0 0.0
  %3152 = vmatpush1.xpose.msra.mxu0 0.0
  %3153 = vmatprep.subr.mxu0 0.0
  %3154 = vmatpush1.xpose.msra.mxu0 0.0
  %3155 = vmatprep.subr.mxu0 0.0
  %3156 = vmatpush1.xpose.msra.mxu0 0.0
  %3157 = vmatprep.subr.mxu0 0.0
  %3158 = vmatpush1.xpose.msra.mxu0 0.0
  %3159 = vmatprep.subr.mxu0 0.0
  %3160 = vmatpush1.xpose.msra.mxu0 0.0
  %3161 = vmatprep.subr.mxu0 0.0
  %3162 = vmatpush1.xpose.msra.mxu0 0.0
  %3163 = vmatprep.subr.mxu0 0.0
  %3164 = vmatpush1.xpose.msra.mxu0 0.0
  %3165 = vmatprep.subr.mxu0 0.0
  %3166 = vmatpush1.xpose.msra.mxu0 0.0
  %3167 = vmatprep.subr.mxu0 0.0
  %3168 = vmatpush1.xpose.msra.mxu0 0.0
  %3169 = vmatprep.subr.mxu0 0.0
  %3170 = vmatpush1.xpose.msra.mxu0 0.0
  %3171 = vmatprep.subr.mxu0 0.0
  %3172 = vmatpush1.xpose.msra.mxu0 0.0
  %3173 = vmatprep.subr.mxu0 0.0
  %3174 = vmatpush1.xpose.msra.mxu0 0.0
  %3175 = vmatprep.subr.mxu0 0.0
  %3176 = vmatpush1.xpose.msra.mxu0 0.0
  %3177 = vmatprep.subr.mxu0 0.0
  %3178 = vmatpush1.xpose.msra.mxu0 0.0
  %3179 = vmatprep.subr.mxu0 0.0
  %3180 = vmatpush1.xpose.msra.mxu0 %v3149
  %3181 = vmatprep.subr.mxu0 0.0
  %3182 = vmatpush1.xpose.msra.mxu0 %v3147
  %3183 = vmatprep.subr.mxu0 0.0
  %3184 = vmatpush2.xpose.msra.mxu0 0.0
  %3185 = vmatprep.subr.mxu0 0.0
  %3186 = vmatpush2.xpose.msra.mxu0 0.0
  %3187 = vmatprep.subr.mxu0 0.0
  %3188 = vmatpush2.xpose.msra.mxu0 0.0
  %3189 = vmatprep.subr.mxu0 0.0
  %3190 = vmatpush2.xpose.msra.mxu0 0.0
  %3191 = vmatprep.subr.mxu0 0.0
  %3192 = vmatpush2.xpose.msra.mxu0 0.0
  %3193 = vmatprep.subr.mxu0 0.0
  %3194 = vmatpush2.xpose.msra.mxu0 0.0
  %3195 = vmatprep.subr.mxu0 0.0
  %3196 = vmatpush2.xpose.msra.mxu0 0.0
  %3197 = vmatprep.subr.mxu0 0.0
  %3198 = vmatpush2.xpose.msra.mxu0 0.0
  %3199 = vmatprep.subr.mxu0 0.0
  %3200 = vmatpush2.xpose.msra.mxu0 0.0
  %3201 = vmatprep.subr.mxu0 0.0
  %3202 = vmatpush2.xpose.msra.mxu0 0.0
  %3203 = vmatprep.subr.mxu0 0.0
  %3204 = vmatpush2.xpose.msra.mxu0 0.0
  %3205 = vmatprep.subr.mxu0 0.0
  %3206 = vmatpush2.xpose.msra.mxu0 0.0
  %3207 = vmatprep.subr.mxu0 0.0
  %3208 = vmatpush2.xpose.msra.mxu0 0.0
  %3209 = vmatprep.subr.mxu0 0.0
  %3210 = vmatpush2.xpose.msra.mxu0 0.0
  %3211 = vmatprep.subr.mxu0 0.0
  %3212 = vmatpush2.xpose.msra.mxu0 0.0
  %3213 = vmatprep.subr.mxu0 0.0
  %3214 = vmatpush2.xpose.msra.mxu0 0.0
  %3215 = vmatprep.mubr.f32.mxu0 0.0
  %3216 = vmatmul.mubr.f32.gmra.mxu0 %v3145
  %v3217 = vpop.f32.mrf.mxu0
  %v3218 = vadd.f32 0.0, %v3217
  %v3219 = vpop.f32.mrf.mxu0
  %3220 = vdwg.mxu0
  %v3221 = vmul.f32 %v3218, 0.20412415
  %3222 = vrot.lane.b32.xlu0 %v307, 104
  %v3223 = vpop.permute.xlu0 %3222
  %v3224 = vsel %vm320, %v3223, 0
  %3226 = vmatprep.subr.mxu0 0.0
  %3227 = vmatpush1.xpose.msra.mxu0 0.0
  %3228 = vmatprep.subr.mxu0 0.0
  %3229 = vmatpush1.xpose.msra.mxu0 0.0
  %3230 = vmatprep.subr.mxu0 0.0
  %3231 = vmatpush1.xpose.msra.mxu0 0.0
  %3232 = vmatprep.subr.mxu0 0.0
  %3233 = vmatpush1.xpose.msra.mxu0 0.0
  %3234 = vmatprep.subr.mxu0 0.0
  %3235 = vmatpush1.xpose.msra.mxu0 0.0
  %3236 = vmatprep.subr.mxu0 0.0
  %3237 = vmatpush1.xpose.msra.mxu0 0.0
  %3238 = vmatprep.subr.mxu0 0.0
  %3239 = vmatpush1.xpose.msra.mxu0 0.0
  %3240 = vmatprep.subr.mxu0 0.0
  %3241 = vmatpush1.xpose.msra.mxu0 0.0
  %3242 = vmatprep.subr.mxu0 0.0
  %3243 = vmatpush1.xpose.msra.mxu0 0.0
  %3244 = vmatprep.subr.mxu0 0.0
  %3245 = vmatpush1.xpose.msra.mxu0 0.0
  %3246 = vmatprep.subr.mxu0 0.0
  %3247 = vmatpush1.xpose.msra.mxu0 0.0
  %3248 = vmatprep.subr.mxu0 0.0
  %3249 = vmatpush1.xpose.msra.mxu0 0.0
  %3250 = vmatprep.subr.mxu0 0.0
  %3251 = vmatpush1.xpose.msra.mxu0 0.0
  %3252 = vmatprep.subr.mxu0 0.0
  %3253 = vmatpush1.xpose.msra.mxu0 0.0
  %3254 = vmatprep.subr.mxu0 0.0
  %3255 = vmatpush1.xpose.msra.mxu0 0.0
  %3256 = vmatprep.subr.mxu0 0.0
  %3257 = vmatpush1.xpose.msra.mxu0 %v3224
  %3258 = vmatprep.subr.mxu0 0.0
  %3259 = vmatpush2.xpose.msra.mxu0 0.0
  %3260 = vmatprep.subr.mxu0 0.0
  %3261 = vmatpush2.xpose.msra.mxu0 0.0
  %3262 = vmatprep.subr.mxu0 0.0
  %3263 = vmatpush2.xpose.msra.mxu0 0.0
  %3264 = vmatprep.subr.mxu0 0.0
  %3265 = vmatpush2.xpose.msra.mxu0 0.0
  %3266 = vmatprep.subr.mxu0 0.0
  %3267 = vmatpush2.xpose.msra.mxu0 0.0
  %3268 = vmatprep.subr.mxu0 0.0
  %3269 = vmatpush2.xpose.msra.mxu0 0.0
  %3270 = vmatprep.subr.mxu0 0.0
  %3271 = vmatpush2.xpose.msra.mxu0 0.0
  %3272 = vmatprep.subr.mxu0 0.0
  %3273 = vmatpush2.xpose.msra.mxu0 0.0
  %3274 = vmatprep.subr.mxu0 0.0
  %3275 = vmatpush2.xpose.msra.mxu0 0.0
  %3276 = vmatprep.subr.mxu0 0.0
  %3277 = vmatpush2.xpose.msra.mxu0 0.0
  %3278 = vmatprep.subr.mxu0 0.0
  %3279 = vmatpush2.xpose.msra.mxu0 0.0
  %3280 = vmatprep.subr.mxu0 0.0
  %3281 = vmatpush2.xpose.msra.mxu0 0.0
  %3282 = vmatprep.subr.mxu0 0.0
  %3283 = vmatpush2.xpose.msra.mxu0 0.0
  %3284 = vmatprep.subr.mxu0 0.0
  %3285 = vmatpush2.xpose.msra.mxu0 0.0
  %3286 = vmatprep.subr.mxu0 0.0
  %3287 = vmatpush2.xpose.msra.mxu0 0.0
  %3288 = vmatprep.subr.mxu0 0.0
  %3289 = vmatpush2.xpose.msra.mxu0 0.0
  %3290 = vmatprep.mubr.f32.mxu0 0.0
  %3291 = vmatmul.mubr.f32.gmra.mxu0 %v3145
  %v3292 = vpop.f32.mrf.mxu0
  %v3293 = vadd.f32 0.0, %v3292
  %v3294 = vpop.f32.mrf.mxu0
  %3295 = vdwg.mxu0
  %v3296 = vmul.f32 %v3293, 0.20412415
  %v3297 = vmul.f32 %v3221, %v3221
  %v3298 = vmul.f32 %v3296, %v3296
  %v3299 = vsel %vm475, %v3297, -inf
  %3300 = vmax.xlane.f32.xlu0 %v3299
  %v3301 = vpop.xlane.xlu0 %3300
  %v3302 = vsel %vm320, %v3298, -inf
  %3303 = vmax.xlane.f32.xlu0 %v3302
  %v3304 = vpop.xlane.xlu0 %3303
  %v3305 = vmax.f32 %v3301, %v3304
  %v3306 = vrcp.pop %v3305
  %v3307 = vmul.f32 1.0, %v3306
  %v3308 = vmul.f32 %v3297, %v3307
  %v3309 = vmul.f32 %v3298, %v3307
  %3310 = vrot.lane.b32.xlu0 %v307, 40
  %v3311 = vpop.permute.xlu0 %3310
  %v3314 = vsel %vm320, %v3309, 0
  %3316 = vmatprep.subr.mxu0 0.0
  %3317 = vmatpush1.msra.mxu0 0.0
  %3318 = vmatprep.subr.mxu0 0.0
  %3319 = vmatpush1.msra.mxu0 0.0
  %3320 = vmatprep.subr.mxu0 0.0
  %3321 = vmatpush1.msra.mxu0 0.0
  %3322 = vmatprep.subr.mxu0 0.0
  %3323 = vmatpush1.msra.mxu0 0.0
  %3324 = vmatprep.subr.mxu0 0.0
  %3325 = vmatpush1.msra.mxu0 0.0
  %3326 = vmatprep.subr.mxu0 0.0
  %3327 = vmatpush1.msra.mxu0 0.0
  %3328 = vmatprep.subr.mxu0 0.0
  %3329 = vmatpush1.msra.mxu0 0.0
  %3330 = vmatprep.subr.mxu0 0.0
  %3331 = vmatpush1.msra.mxu0 0.0
  %3332 = vmatprep.subr.mxu0 0.0
  %3333 = vmatpush1.msra.mxu0 0.0
  %3334 = vmatprep.subr.mxu0 0.0
  %3335 = vmatpush1.msra.mxu0 0.0
  %3336 = vmatprep.subr.mxu0 0.0
  %3337 = vmatpush1.msra.mxu0 0.0
  %3338 = vmatprep.subr.mxu0 0.0
  %3339 = vmatpush1.msra.mxu0 0.0
  %3340 = vmatprep.subr.mxu0 0.0
  %3341 = vmatpush1.msra.mxu0 0.0
  %3342 = vmatprep.subr.mxu0 0.0
  %3343 = vmatpush1.msra.mxu0 0.0
  %3344 = vmatprep.subr.mxu0 0.0
  %3345 = vmatpush1.msra.mxu0 0.0
  %3346 = vmatprep.subr.mxu0 0.0
  %3347 = vmatpush1.msra.mxu0 %v3311
  %3348 = vmatprep.subr.mxu0 0.0
  %3349 = vmatpush2.msra.mxu0 0.0
  %3350 = vmatprep.subr.mxu0 0.0
  %3351 = vmatpush2.msra.mxu0 0.0
  %3352 = vmatprep.subr.mxu0 0.0
  %3353 = vmatpush2.msra.mxu0 0.0
  %3354 = vmatprep.subr.mxu0 0.0
  %3355 = vmatpush2.msra.mxu0 0.0
  %3356 = vmatprep.subr.mxu0 0.0
  %3357 = vmatpush2.msra.mxu0 0.0
  %3358 = vmatprep.subr.mxu0 0.0
  %3359 = vmatpush2.msra.mxu0 0.0
  %3360 = vmatprep.subr.mxu0 0.0
  %3361 = vmatpush2.msra.mxu0 0.0
  %3362 = vmatprep.subr.mxu0 0.0
  %3363 = vmatpush2.msra.mxu0 0.0
  %3364 = vmatprep.subr.mxu0 0.0
  %3365 = vmatpush2.msra.mxu0 0.0
  %3366 = vmatprep.subr.mxu0 0.0
  %3367 = vmatpush2.msra.mxu0 0.0
  %3368 = vmatprep.subr.mxu0 0.0
  %3369 = vmatpush2.msra.mxu0 0.0
  %3370 = vmatprep.subr.mxu0 0.0
  %3371 = vmatpush2.msra.mxu0 0.0
  %3372 = vmatprep.subr.mxu0 0.0
  %3373 = vmatpush2.msra.mxu0 0.0
  %3374 = vmatprep.subr.mxu0 0.0
  %3375 = vmatpush2.msra.mxu0 0.0
  %3376 = vmatprep.subr.mxu0 0.0
  %3377 = vmatpush2.msra.mxu0 0.0
  %3378 = vmatprep.subr.mxu0 0.0
  %3379 = vmatpush2.msra.mxu0 0.0
  %3380 = vmatprep.mubr.f32.mxu0 0.0
  %3381 = vmatmul.mubr.f32.gmra.mxu0 %v3314
  %v3382 = vpop.f32.mrf.mxu0
  %v3383 = vadd.f32 0.0, %v3382
  %v3384 = vpop.f32.mrf.mxu0
  %3385 = vdwg.mxu0
  %3386 = vrot.lane.b32.xlu0 %v214, 40
  %v3387 = vpop.permute.xlu0 %3386
  %3388 = vrot.lane.b32.xlu0 %v219, 40
  %v3389 = vpop.permute.xlu0 %3388
  %v3393 = vsel %vm475, %v3308, 0
  %3395 = vmatprep.subr.mxu0 0.0
  %3396 = vmatpush1.msra.mxu0 0.0
  %3397 = vmatprep.subr.mxu0 0.0
  %3398 = vmatpush1.msra.mxu0 0.0
  %3399 = vmatprep.subr.mxu0 0.0
  %3400 = vmatpush1.msra.mxu0 0.0
  %3401 = vmatprep.subr.mxu0 0.0
  %3402 = vmatpush1.msra.mxu0 0.0
  %3403 = vmatprep.subr.mxu0 0.0
  %3404 = vmatpush1.msra.mxu0 0.0
  %3405 = vmatprep.subr.mxu0 0.0
  %3406 = vmatpush1.msra.mxu0 0.0
  %3407 = vmatprep.subr.mxu0 0.0
  %3408 = vmatpush1.msra.mxu0 0.0
  %3409 = vmatprep.subr.mxu0 0.0
  %3410 = vmatpush1.msra.mxu0 0.0
  %3411 = vmatprep.subr.mxu0 0.0
  %3412 = vmatpush1.msra.mxu0 0.0
  %3413 = vmatprep.subr.mxu0 0.0
  %3414 = vmatpush1.msra.mxu0 0.0
  %3415 = vmatprep.subr.mxu0 0.0
  %3416 = vmatpush1.msra.mxu0 0.0
  %3417 = vmatprep.subr.mxu0 0.0
  %3418 = vmatpush1.msra.mxu0 0.0
  %3419 = vmatprep.subr.mxu0 0.0
  %3420 = vmatpush1.msra.mxu0 0.0
  %3421 = vmatprep.subr.mxu0 0.0
  %3422 = vmatpush1.msra.mxu0 0.0
  %3423 = vmatprep.subr.mxu0 0.0
  %3424 = vmatpush1.msra.mxu0 %v3389
  %3425 = vmatprep.subr.mxu0 0.0
  %3426 = vmatpush1.msra.mxu0 %v3387
  %3427 = vmatprep.subr.mxu0 0.0
  %3428 = vmatpush2.msra.mxu0 0.0
  %3429 = vmatprep.subr.mxu0 0.0
  %3430 = vmatpush2.msra.mxu0 0.0
  %3431 = vmatprep.subr.mxu0 0.0
  %3432 = vmatpush2.msra.mxu0 0.0
  %3433 = vmatprep.subr.mxu0 0.0
  %3434 = vmatpush2.msra.mxu0 0.0
  %3435 = vmatprep.subr.mxu0 0.0
  %3436 = vmatpush2.msra.mxu0 0.0
  %3437 = vmatprep.subr.mxu0 0.0
  %3438 = vmatpush2.msra.mxu0 0.0
  %3439 = vmatprep.subr.mxu0 0.0
  %3440 = vmatpush2.msra.mxu0 0.0
  %3441 = vmatprep.subr.mxu0 0.0
  %3442 = vmatpush2.msra.mxu0 0.0
  %3443 = vmatprep.subr.mxu0 0.0
  %3444 = vmatpush2.msra.mxu0 0.0
  %3445 = vmatprep.subr.mxu0 0.0
  %3446 = vmatpush2.msra.mxu0 0.0
  %3447 = vmatprep.subr.mxu0 0.0
  %3448 = vmatpush2.msra.mxu0 0.0
  %3449 = vmatprep.subr.mxu0 0.0
  %3450 = vmatpush2.msra.mxu0 0.0
  %3451 = vmatprep.subr.mxu0 0.0
  %3452 = vmatpush2.msra.mxu0 0.0
  %3453 = vmatprep.subr.mxu0 0.0
  %3454 = vmatpush2.msra.mxu0 0.0
  %3455 = vmatprep.subr.mxu0 0.0
  %3456 = vmatpush2.msra.mxu0 0.0
  %3457 = vmatprep.subr.mxu0 0.0
  %3458 = vmatpush2.msra.mxu0 0.0
  %3459 = vmatprep.mubr.f32.mxu0 0.0
  %3460 = vmatmul.mubr.f32.gmra.mxu0 %v3393
  %v3461 = vpop.f32.mrf.mxu0
  %v3462 = vadd.f32 %v3383, %v3461
  %v3463 = vpop.f32.mrf.mxu0
  %3464 = vdwg.mxu0
  %3466 = vrot.lane.b32.xlu0 %v20, 32
  %v3467 = vpop.permute.xlu0 %3466
  %v3470 = vsel %vm320, %v3462, 0
  %3472 = vmatprep.subr.mxu0 0.0
  %3473 = vmatpush1.msra.mxu0 0.0
  %3474 = vmatprep.subr.mxu0 0.0
  %3475 = vmatpush1.msra.mxu0 0.0
  %3476 = vmatprep.subr.mxu0 0.0
  %3477 = vmatpush1.msra.mxu0 0.0
  %3478 = vmatprep.subr.mxu0 0.0
  %3479 = vmatpush1.msra.mxu0 0.0
  %3480 = vmatprep.subr.mxu0 0.0
  %3481 = vmatpush1.msra.mxu0 0.0
  %3482 = vmatprep.subr.mxu0 0.0
  %3483 = vmatpush1.msra.mxu0 0.0
  %3484 = vmatprep.subr.mxu0 0.0
  %3485 = vmatpush1.msra.mxu0 0.0
  %3486 = vmatprep.subr.mxu0 0.0
  %3487 = vmatpush1.msra.mxu0 0.0
  %3488 = vmatprep.subr.mxu0 0.0
  %3489 = vmatpush1.msra.mxu0 0.0
  %3490 = vmatprep.subr.mxu0 0.0
  %3491 = vmatpush1.msra.mxu0 0.0
  %3492 = vmatprep.subr.mxu0 0.0
  %3493 = vmatpush1.msra.mxu0 0.0
  %3494 = vmatprep.subr.mxu0 0.0
  %3495 = vmatpush1.msra.mxu0 0.0
  %3496 = vmatprep.subr.mxu0 0.0
  %3497 = vmatpush1.msra.mxu0 0.0
  %3498 = vmatprep.subr.mxu0 0.0
  %3499 = vmatpush1.msra.mxu0 0.0
  %3500 = vmatprep.subr.mxu0 0.0
  %3501 = vmatpush1.msra.mxu0 0.0
  %3502 = vmatprep.subr.mxu0 0.0
  %3503 = vmatpush1.msra.mxu0 %v3467
  %3504 = vmatprep.subr.mxu0 0.0
  %3505 = vmatpush2.msra.mxu0 0.0
  %3506 = vmatprep.subr.mxu0 0.0
  %3507 = vmatpush2.msra.mxu0 0.0
  %3508 = vmatprep.subr.mxu0 0.0
  %3509 = vmatpush2.msra.mxu0 0.0
  %3510 = vmatprep.subr.mxu0 0.0
  %3511 = vmatpush2.msra.mxu0 0.0
  %3512 = vmatprep.subr.mxu0 0.0
  %3513 = vmatpush2.msra.mxu0 0.0
  %3514 = vmatprep.subr.mxu0 0.0
  %3515 = vmatpush2.msra.mxu0 0.0
  %3516 = vmatprep.subr.mxu0 0.0
  %3517 = vmatpush2.msra.mxu0 0.0
  %3518 = vmatprep.subr.mxu0 0.0
  %3519 = vmatpush2.msra.mxu0 0.0
  %3520 = vmatprep.subr.mxu0 0.0
  %3521 = vmatpush2.msra.mxu0 0.0
  %3522 = vmatprep.subr.mxu0 0.0
  %3523 = vmatpush2.msra.mxu0 0.0
  %3524 = vmatprep.subr.mxu0 0.0
  %3525 = vmatpush2.msra.mxu0 0.0
  %3526 = vmatprep.subr.mxu0 0.0
  %3527 = vmatpush2.msra.mxu0 0.0
  %3528 = vmatprep.subr.mxu0 0.0
  %3529 = vmatpush2.msra.mxu0 0.0
  %3530 = vmatprep.subr.mxu0 0.0
  %3531 = vmatpush2.msra.mxu0 0.0
  %3532 = vmatprep.subr.mxu0 0.0
  %3533 = vmatpush2.msra.mxu0 0.0
  %3534 = vmatprep.subr.mxu0 0.0
  %3535 = vmatpush2.msra.mxu0 0.0
  %3536 = vmatprep.mubr.f32.mxu0 0.0
  %3537 = vmatmul.mubr.f32.gmra.mxu0 %v3470
  %v3538 = vpop.f32.mrf.mxu0
  %v3539 = vadd.f32 0.0, %v3538
  %v3540 = vpop.f32.mrf.mxu0
  %3541 = vdwg.mxu0
  %v3542 = vadd.f32 %v2598, %v3539
  %v3543 = vadd.f32 %v3308, 1e-06
  %v3544 = vlog2.pop %v3543
  %v3545 = vmul.f32 %v3544, 0.6931472
  %v3546 = vsel %vm475, %v3545, 0.0
  %3547 = vadd.xlane.f32.xlu0 %v3546
  %v3548 = vpop.xlane.xlu0 %3547
  %v3549 = vrot.slane %v3548, 4
  %v3550 = vadd.f32 %v3548, %v3549
  %v3551 = vrot.slane %v3550, 2
  %v3552 = vadd.f32 %v3550, %v3551
  %v3553 = vrot.slane %v3552, 1
  %v3554 = vadd.f32 %v3552, %v3553
  %s3555 = vtos %v3554
  %v3556 = vstv %s3555
  %v3557 = vadd.f32 %v3309, 1e-06
  %v3558 = vlog2.pop %v3557
  %v3559 = vmul.f32 %v3558, 0.6931472
  %v3560 = vsel %vm320, %v3559, 0.0
  %3561 = vadd.xlane.f32.xlu0 %v3560
  %v3562 = vpop.xlane.xlu0 %3561
  %v3563 = vrot.slane %v3562, 4
  %v3564 = vadd.f32 %v3562, %v3563
  %v3565 = vrot.slane %v3564, 2
  %v3566 = vadd.f32 %v3564, %v3565
  %v3567 = vrot.slane %v3566, 1
  %v3568 = vadd.f32 %v3566, %v3567
  %s3569 = vtos %v3568
  %v3570 = vstv %s3569
  %v3571 = vadd.f32 %v3556, %v3570
  %v3572 = vadd.f32 %v3098, %v3571
  %v3573 = vsel %vm475, %v3308, 0.0
  %v3574 = vrot.slane %v3573, 4
  %v3575 = vadd.f32 %v3573, %v3574
  %v3576 = vrot.slane %v3575, 2
  %v3577 = vadd.f32 %v3575, %v3576
  %v3578 = vrot.slane %v3577, 1
  %v3579 = vadd.f32 %v3577, %v3578
  %3580 = vadd.xlane.f32.xlu0 %v3573
  %v3581 = vpop.xlane.xlu0 %3580
  %v3582 = vrot.slane %v3581, 4
  %v3583 = vadd.f32 %v3581, %v3582
  %v3584 = vrot.slane %v3583, 2
  %v3585 = vadd.f32 %v3583, %v3584
  %v3586 = vrot.slane %v3585, 1
  %v3587 = vadd.f32 %v3585, %v3586
  %s3588 = vtos %v3587
  %v3589 = vstv %s3588
  %v3590 = vsel %vm320, %v3309, 0.0
  %3591 = vadd.xlane.f32.xlu0 %v3590
  %v3592 = vpop.xlane.xlu0 %3591
  %v3593 = vrot.slane %v3592, 4
  %v3594 = vadd.f32 %v3592, %v3593
  %v3595 = vrot.slane %v3594, 2
  %v3596 = vadd.f32 %v3594, %v3595
  %v3597 = vrot.slane %v3596, 1
  %v3598 = vadd.f32 %v3596, %v3597
  %s3599 = vtos %v3598
  %v3600 = vstv %s3599
  %v3601 = vadd.f32 %v3589, %v3600
  %v3602 = vmul.f32 %v3601, 0.041666668
  %v3603 = vrcp.pop %v3602
  %v3604 = vmul.f32 %v3579, %v3603
  %v3605 = vsub.f32 %v3604, 1.0
  %v3606 = vsub.f32 %v3605, 0.01
  %vm3607 = vcmp.eq.s32.totalorder %v316, 6
  %v3608 = vsel %vm3607, 1.0, 0.0
  %v3609 = vmul.f32 %v3608, %v3606
  %v3610 = vadd.f32 %v3136, %v3609
  %3611 = vrot.lane.b32.xlu0 %v312, 72
  %v3612 = vpop.permute.xlu0 %3611
  %3615 = vrot.lane.b32.xlu0 %v224, 104
  %v3616 = vpop.permute.xlu0 %3615
  %3617 = vrot.lane.b32.xlu0 %v229, 104
  %v3618 = vpop.permute.xlu0 %3617
  %v3619 = vsel %vm320, %v3612, 0
  %v3621 = vsel %vm320, %v3616, 0
  %v3623 = vsel %vm320, %v3618, 0
  %3625 = vmatprep.subr.mxu0 0.0
  %3626 = vmatpush1.xpose.msra.mxu0 0.0
  %3627 = vmatprep.subr.mxu0 0.0
  %3628 = vmatpush1.xpose.msra.mxu0 0.0
  %3629 = vmatprep.subr.mxu0 0.0
  %3630 = vmatpush1.xpose.msra.mxu0 0.0
  %3631 = vmatprep.subr.mxu0 0.0
  %3632 = vmatpush1.xpose.msra.mxu0 0.0
  %3633 = vmatprep.subr.mxu0 0.0
  %3634 = vmatpush1.xpose.msra.mxu0 0.0
  %3635 = vmatprep.subr.mxu0 0.0
  %3636 = vmatpush1.xpose.msra.mxu0 0.0
  %3637 = vmatprep.subr.mxu0 0.0
  %3638 = vmatpush1.xpose.msra.mxu0 0.0
  %3639 = vmatprep.subr.mxu0 0.0
  %3640 = vmatpush1.xpose.msra.mxu0 0.0
  %3641 = vmatprep.subr.mxu0 0.0
  %3642 = vmatpush1.xpose.msra.mxu0 0.0
  %3643 = vmatprep.subr.mxu0 0.0
  %3644 = vmatpush1.xpose.msra.mxu0 0.0
  %3645 = vmatprep.subr.mxu0 0.0
  %3646 = vmatpush1.xpose.msra.mxu0 0.0
  %3647 = vmatprep.subr.mxu0 0.0
  %3648 = vmatpush1.xpose.msra.mxu0 0.0
  %3649 = vmatprep.subr.mxu0 0.0
  %3650 = vmatpush1.xpose.msra.mxu0 0.0
  %3651 = vmatprep.subr.mxu0 0.0
  %3652 = vmatpush1.xpose.msra.mxu0 0.0
  %3653 = vmatprep.subr.mxu0 0.0
  %3654 = vmatpush1.xpose.msra.mxu0 %v3623
  %3655 = vmatprep.subr.mxu0 0.0
  %3656 = vmatpush1.xpose.msra.mxu0 %v3621
  %3657 = vmatprep.subr.mxu0 0.0
  %3658 = vmatpush2.xpose.msra.mxu0 0.0
  %3659 = vmatprep.subr.mxu0 0.0
  %3660 = vmatpush2.xpose.msra.mxu0 0.0
  %3661 = vmatprep.subr.mxu0 0.0
  %3662 = vmatpush2.xpose.msra.mxu0 0.0
  %3663 = vmatprep.subr.mxu0 0.0
  %3664 = vmatpush2.xpose.msra.mxu0 0.0
  %3665 = vmatprep.subr.mxu0 0.0
  %3666 = vmatpush2.xpose.msra.mxu0 0.0
  %3667 = vmatprep.subr.mxu0 0.0
  %3668 = vmatpush2.xpose.msra.mxu0 0.0
  %3669 = vmatprep.subr.mxu0 0.0
  %3670 = vmatpush2.xpose.msra.mxu0 0.0
  %3671 = vmatprep.subr.mxu0 0.0
  %3672 = vmatpush2.xpose.msra.mxu0 0.0
  %3673 = vmatprep.subr.mxu0 0.0
  %3674 = vmatpush2.xpose.msra.mxu0 0.0
  %3675 = vmatprep.subr.mxu0 0.0
  %3676 = vmatpush2.xpose.msra.mxu0 0.0
  %3677 = vmatprep.subr.mxu0 0.0
  %3678 = vmatpush2.xpose.msra.mxu0 0.0
  %3679 = vmatprep.subr.mxu0 0.0
  %3680 = vmatpush2.xpose.msra.mxu0 0.0
  %3681 = vmatprep.subr.mxu0 0.0
  %3682 = vmatpush2.xpose.msra.mxu0 0.0
  %3683 = vmatprep.subr.mxu0 0.0
  %3684 = vmatpush2.xpose.msra.mxu0 0.0
  %3685 = vmatprep.subr.mxu0 0.0
  %3686 = vmatpush2.xpose.msra.mxu0 0.0
  %3687 = vmatprep.subr.mxu0 0.0
  %3688 = vmatpush2.xpose.msra.mxu0 0.0
  %3689 = vmatprep.mubr.f32.mxu0 0.0
  %3690 = vmatmul.mubr.f32.gmra.mxu0 %v3619
  %v3691 = vpop.f32.mrf.mxu0
  %v3692 = vadd.f32 0.0, %v3691
  %v3693 = vpop.f32.mrf.mxu0
  %3694 = vdwg.mxu0
  %v3695 = vmul.f32 %v3692, 0.20412415
  %3696 = vrot.lane.b32.xlu0 %v312, 104
  %v3697 = vpop.permute.xlu0 %3696
  %v3698 = vsel %vm320, %v3697, 0
  %3700 = vmatprep.subr.mxu0 0.0
  %3701 = vmatpush1.xpose.msra.mxu0 0.0
  %3702 = vmatprep.subr.mxu0 0.0
  %3703 = vmatpush1.xpose.msra.mxu0 0.0
  %3704 = vmatprep.subr.mxu0 0.0
  %3705 = vmatpush1.xpose.msra.mxu0 0.0
  %3706 = vmatprep.subr.mxu0 0.0
  %3707 = vmatpush1.xpose.msra.mxu0 0.0
  %3708 = vmatprep.subr.mxu0 0.0
  %3709 = vmatpush1.xpose.msra.mxu0 0.0
  %3710 = vmatprep.subr.mxu0 0.0
  %3711 = vmatpush1.xpose.msra.mxu0 0.0
  %3712 = vmatprep.subr.mxu0 0.0
  %3713 = vmatpush1.xpose.msra.mxu0 0.0
  %3714 = vmatprep.subr.mxu0 0.0
  %3715 = vmatpush1.xpose.msra.mxu0 0.0
  %3716 = vmatprep.subr.mxu0 0.0
  %3717 = vmatpush1.xpose.msra.mxu0 0.0
  %3718 = vmatprep.subr.mxu0 0.0
  %3719 = vmatpush1.xpose.msra.mxu0 0.0
  %3720 = vmatprep.subr.mxu0 0.0
  %3721 = vmatpush1.xpose.msra.mxu0 0.0
  %3722 = vmatprep.subr.mxu0 0.0
  %3723 = vmatpush1.xpose.msra.mxu0 0.0
  %3724 = vmatprep.subr.mxu0 0.0
  %3725 = vmatpush1.xpose.msra.mxu0 0.0
  %3726 = vmatprep.subr.mxu0 0.0
  %3727 = vmatpush1.xpose.msra.mxu0 0.0
  %3728 = vmatprep.subr.mxu0 0.0
  %3729 = vmatpush1.xpose.msra.mxu0 0.0
  %3730 = vmatprep.subr.mxu0 0.0
  %3731 = vmatpush1.xpose.msra.mxu0 %v3698
  %3732 = vmatprep.subr.mxu0 0.0
  %3733 = vmatpush2.xpose.msra.mxu0 0.0
  %3734 = vmatprep.subr.mxu0 0.0
  %3735 = vmatpush2.xpose.msra.mxu0 0.0
  %3736 = vmatprep.subr.mxu0 0.0
  %3737 = vmatpush2.xpose.msra.mxu0 0.0
  %3738 = vmatprep.subr.mxu0 0.0
  %3739 = vmatpush2.xpose.msra.mxu0 0.0
  %3740 = vmatprep.subr.mxu0 0.0
  %3741 = vmatpush2.xpose.msra.mxu0 0.0
  %3742 = vmatprep.subr.mxu0 0.0
  %3743 = vmatpush2.xpose.msra.mxu0 0.0
  %3744 = vmatprep.subr.mxu0 0.0
  %3745 = vmatpush2.xpose.msra.mxu0 0.0
  %3746 = vmatprep.subr.mxu0 0.0
  %3747 = vmatpush2.xpose.msra.mxu0 0.0
  %3748 = vmatprep.subr.mxu0 0.0
  %3749 = vmatpush2.xpose.msra.mxu0 0.0
  %3750 = vmatprep.subr.mxu0 0.0
  %3751 = vmatpush2.xpose.msra.mxu0 0.0
  %3752 = vmatprep.subr.mxu0 0.0
  %3753 = vmatpush2.xpose.msra.mxu0 0.0
  %3754 = vmatprep.subr.mxu0 0.0
  %3755 = vmatpush2.xpose.msra.mxu0 0.0
  %3756 = vmatprep.subr.mxu0 0.0
  %3757 = vmatpush2.xpose.msra.mxu0 0.0
  %3758 = vmatprep.subr.mxu0 0.0
  %3759 = vmatpush2.xpose.msra.mxu0 0.0
  %3760 = vmatprep.subr.mxu0 0.0
  %3761 = vmatpush2.xpose.msra.mxu0 0.0
  %3762 = vmatprep.subr.mxu0 0.0
  %3763 = vmatpush2.xpose.msra.mxu0 0.0
  %3764 = vmatprep.mubr.f32.mxu0 0.0
  %3765 = vmatmul.mubr.f32.gmra.mxu0 %v3619
  %v3766 = vpop.f32.mrf.mxu0
  %v3767 = vadd.f32 0.0, %v3766
  %v3768 = vpop.f32.mrf.mxu0
  %3769 = vdwg.mxu0
  %v3770 = vmul.f32 %v3767, 0.20412415
  %v3771 = vmul.f32 %v3695, %v3695
  %v3772 = vmul.f32 %v3770, %v3770
  %v3773 = vsel %vm475, %v3771, -inf
  %3774 = vmax.xlane.f32.xlu0 %v3773
  %v3775 = vpop.xlane.xlu0 %3774
  %v3776 = vsel %vm320, %v3772, -inf
  %3777 = vmax.xlane.f32.xlu0 %v3776
  %v3778 = vpop.xlane.xlu0 %3777
  %v3779 = vmax.f32 %v3775, %v3778
  %v3780 = vrcp.pop %v3779
  %v3781 = vmul.f32 1.0, %v3780
  %v3782 = vmul.f32 %v3771, %v3781
  %v3783 = vmul.f32 %v3772, %v3781
  %3784 = vrot.lane.b32.xlu0 %v312, 40
  %v3785 = vpop.permute.xlu0 %3784
  %v3788 = vsel %vm320, %v3783, 0
  %3790 = vmatprep.subr.mxu0 0.0
  %3791 = vmatpush1.msra.mxu0 0.0
  %3792 = vmatprep.subr.mxu0 0.0
  %3793 = vmatpush1.msra.mxu0 0.0
  %3794 = vmatprep.subr.mxu0 0.0
  %3795 = vmatpush1.msra.mxu0 0.0
  %3796 = vmatprep.subr.mxu0 0.0
  %3797 = vmatpush1.msra.mxu0 0.0
  %3798 = vmatprep.subr.mxu0 0.0
  %3799 = vmatpush1.msra.mxu0 0.0
  %3800 = vmatprep.subr.mxu0 0.0
  %3801 = vmatpush1.msra.mxu0 0.0
  %3802 = vmatprep.subr.mxu0 0.0
  %3803 = vmatpush1.msra.mxu0 0.0
  %3804 = vmatprep.subr.mxu0 0.0
  %3805 = vmatpush1.msra.mxu0 0.0
  %3806 = vmatprep.subr.mxu0 0.0
  %3807 = vmatpush1.msra.mxu0 0.0
  %3808 = vmatprep.subr.mxu0 0.0
  %3809 = vmatpush1.msra.mxu0 0.0
  %3810 = vmatprep.subr.mxu0 0.0
  %3811 = vmatpush1.msra.mxu0 0.0
  %3812 = vmatprep.subr.mxu0 0.0
  %3813 = vmatpush1.msra.mxu0 0.0
  %3814 = vmatprep.subr.mxu0 0.0
  %3815 = vmatpush1.msra.mxu0 0.0
  %3816 = vmatprep.subr.mxu0 0.0
  %3817 = vmatpush1.msra.mxu0 0.0
  %3818 = vmatprep.subr.mxu0 0.0
  %3819 = vmatpush1.msra.mxu0 0.0
  %3820 = vmatprep.subr.mxu0 0.0
  %3821 = vmatpush1.msra.mxu0 %v3785
  %3822 = vmatprep.subr.mxu0 0.0
  %3823 = vmatpush2.msra.mxu0 0.0
  %3824 = vmatprep.subr.mxu0 0.0
  %3825 = vmatpush2.msra.mxu0 0.0
  %3826 = vmatprep.subr.mxu0 0.0
  %3827 = vmatpush2.msra.mxu0 0.0
  %3828 = vmatprep.subr.mxu0 0.0
  %3829 = vmatpush2.msra.mxu0 0.0
  %3830 = vmatprep.subr.mxu0 0.0
  %3831 = vmatpush2.msra.mxu0 0.0
  %3832 = vmatprep.subr.mxu0 0.0
  %3833 = vmatpush2.msra.mxu0 0.0
  %3834 = vmatprep.subr.mxu0 0.0
  %3835 = vmatpush2.msra.mxu0 0.0
  %3836 = vmatprep.subr.mxu0 0.0
  %3837 = vmatpush2.msra.mxu0 0.0
  %3838 = vmatprep.subr.mxu0 0.0
  %3839 = vmatpush2.msra.mxu0 0.0
  %3840 = vmatprep.subr.mxu0 0.0
  %3841 = vmatpush2.msra.mxu0 0.0
  %3842 = vmatprep.subr.mxu0 0.0
  %3843 = vmatpush2.msra.mxu0 0.0
  %3844 = vmatprep.subr.mxu0 0.0
  %3845 = vmatpush2.msra.mxu0 0.0
  %3846 = vmatprep.subr.mxu0 0.0
  %3847 = vmatpush2.msra.mxu0 0.0
  %3848 = vmatprep.subr.mxu0 0.0
  %3849 = vmatpush2.msra.mxu0 0.0
  %3850 = vmatprep.subr.mxu0 0.0
  %3851 = vmatpush2.msra.mxu0 0.0
  %3852 = vmatprep.subr.mxu0 0.0
  %3853 = vmatpush2.msra.mxu0 0.0
  %3854 = vmatprep.mubr.f32.mxu0 0.0
  %3855 = vmatmul.mubr.f32.gmra.mxu0 %v3788
  %v3856 = vpop.f32.mrf.mxu0
  %v3857 = vadd.f32 0.0, %v3856
  %v3858 = vpop.f32.mrf.mxu0
  %3859 = vdwg.mxu0
  %3860 = vrot.lane.b32.xlu0 %v224, 40
  %v3861 = vpop.permute.xlu0 %3860
  %3862 = vrot.lane.b32.xlu0 %v229, 40
  %v3863 = vpop.permute.xlu0 %3862
  %v3867 = vsel %vm475, %v3782, 0
  %3869 = vmatprep.subr.mxu0 0.0
  %3870 = vmatpush1.msra.mxu0 0.0
  %3871 = vmatprep.subr.mxu0 0.0
  %3872 = vmatpush1.msra.mxu0 0.0
  %3873 = vmatprep.subr.mxu0 0.0
  %3874 = vmatpush1.msra.mxu0 0.0
  %3875 = vmatprep.subr.mxu0 0.0
  %3876 = vmatpush1.msra.mxu0 0.0
  %3877 = vmatprep.subr.mxu0 0.0
  %3878 = vmatpush1.msra.mxu0 0.0
  %3879 = vmatprep.subr.mxu0 0.0
  %3880 = vmatpush1.msra.mxu0 0.0
  %3881 = vmatprep.subr.mxu0 0.0
  %3882 = vmatpush1.msra.mxu0 0.0
  %3883 = vmatprep.subr.mxu0 0.0
  %3884 = vmatpush1.msra.mxu0 0.0
  %3885 = vmatprep.subr.mxu0 0.0
  %3886 = vmatpush1.msra.mxu0 0.0
  %3887 = vmatprep.subr.mxu0 0.0
  %3888 = vmatpush1.msra.mxu0 0.0
  %3889 = vmatprep.subr.mxu0 0.0
  %3890 = vmatpush1.msra.mxu0 0.0
  %3891 = vmatprep.subr.mxu0 0.0
  %3892 = vmatpush1.msra.mxu0 0.0
  %3893 = vmatprep.subr.mxu0 0.0
  %3894 = vmatpush1.msra.mxu0 0.0
  %3895 = vmatprep.subr.mxu0 0.0
  %3896 = vmatpush1.msra.mxu0 0.0
  %3897 = vmatprep.subr.mxu0 0.0
  %3898 = vmatpush1.msra.mxu0 %v3863
  %3899 = vmatprep.subr.mxu0 0.0
  %3900 = vmatpush1.msra.mxu0 %v3861
  %3901 = vmatprep.subr.mxu0 0.0
  %3902 = vmatpush2.msra.mxu0 0.0
  %3903 = vmatprep.subr.mxu0 0.0
  %3904 = vmatpush2.msra.mxu0 0.0
  %3905 = vmatprep.subr.mxu0 0.0
  %3906 = vmatpush2.msra.mxu0 0.0
  %3907 = vmatprep.subr.mxu0 0.0
  %3908 = vmatpush2.msra.mxu0 0.0
  %3909 = vmatprep.subr.mxu0 0.0
  %3910 = vmatpush2.msra.mxu0 0.0
  %3911 = vmatprep.subr.mxu0 0.0
  %3912 = vmatpush2.msra.mxu0 0.0
  %3913 = vmatprep.subr.mxu0 0.0
  %3914 = vmatpush2.msra.mxu0 0.0
  %3915 = vmatprep.subr.mxu0 0.0
  %3916 = vmatpush2.msra.mxu0 0.0
  %3917 = vmatprep.subr.mxu0 0.0
  %3918 = vmatpush2.msra.mxu0 0.0
  %3919 = vmatprep.subr.mxu0 0.0
  %3920 = vmatpush2.msra.mxu0 0.0
  %3921 = vmatprep.subr.mxu0 0.0
  %3922 = vmatpush2.msra.mxu0 0.0
  %3923 = vmatprep.subr.mxu0 0.0
  %3924 = vmatpush2.msra.mxu0 0.0
  %3925 = vmatprep.subr.mxu0 0.0
  %3926 = vmatpush2.msra.mxu0 0.0
  %3927 = vmatprep.subr.mxu0 0.0
  %3928 = vmatpush2.msra.mxu0 0.0
  %3929 = vmatprep.subr.mxu0 0.0
  %3930 = vmatpush2.msra.mxu0 0.0
  %3931 = vmatprep.subr.mxu0 0.0
  %3932 = vmatpush2.msra.mxu0 0.0
  %3933 = vmatprep.mubr.f32.mxu0 0.0
  %3934 = vmatmul.mubr.f32.gmra.mxu0 %v3867
  %v3935 = vpop.f32.mrf.mxu0
  %v3936 = vadd.f32 %v3857, %v3935
  %v3937 = vpop.f32.mrf.mxu0
  %3938 = vdwg.mxu0
  %v3940 = vsel %vm320, %v3936, 0
  %3942 = vmatprep.subr.mxu0 0.0
  %3943 = vmatpush1.msra.mxu0 0.0
  %3944 = vmatprep.subr.mxu0 0.0
  %3945 = vmatpush1.msra.mxu0 0.0
  %3946 = vmatprep.subr.mxu0 0.0
  %3947 = vmatpush1.msra.mxu0 0.0
  %3948 = vmatprep.subr.mxu0 0.0
  %3949 = vmatpush1.msra.mxu0 0.0
  %3950 = vmatprep.subr.mxu0 0.0
  %3951 = vmatpush1.msra.mxu0 0.0
  %3952 = vmatprep.subr.mxu0 0.0
  %3953 = vmatpush1.msra.mxu0 0.0
  %3954 = vmatprep.subr.mxu0 0.0
  %3955 = vmatpush1.msra.mxu0 0.0
  %3956 = vmatprep.subr.mxu0 0.0
  %3957 = vmatpush1.msra.mxu0 0.0
  %3958 = vmatprep.subr.mxu0 0.0
  %3959 = vmatpush1.msra.mxu0 0.0
  %3960 = vmatprep.subr.mxu0 0.0
  %3961 = vmatpush1.msra.mxu0 0.0
  %3962 = vmatprep.subr.mxu0 0.0
  %3963 = vmatpush1.msra.mxu0 0.0
  %3964 = vmatprep.subr.mxu0 0.0
  %3965 = vmatpush1.msra.mxu0 0.0
  %3966 = vmatprep.subr.mxu0 0.0
  %3967 = vmatpush1.msra.mxu0 0.0
  %3968 = vmatprep.subr.mxu0 0.0
  %3969 = vmatpush1.msra.mxu0 0.0
  %3970 = vmatprep.subr.mxu0 0.0
  %3971 = vmatpush1.msra.mxu0 0.0
  %3972 = vmatprep.subr.mxu0 0.0
  %3973 = vmatpush1.msra.mxu0 %v3467
  %3974 = vmatprep.subr.mxu0 0.0
  %3975 = vmatpush2.msra.mxu0 0.0
  %3976 = vmatprep.subr.mxu0 0.0
  %3977 = vmatpush2.msra.mxu0 0.0
  %3978 = vmatprep.subr.mxu0 0.0
  %3979 = vmatpush2.msra.mxu0 0.0
  %3980 = vmatprep.subr.mxu0 0.0
  %3981 = vmatpush2.msra.mxu0 0.0
  %3982 = vmatprep.subr.mxu0 0.0
  %3983 = vmatpush2.msra.mxu0 0.0
  %3984 = vmatprep.subr.mxu0 0.0
  %3985 = vmatpush2.msra.mxu0 0.0
  %3986 = vmatprep.subr.mxu0 0.0
  %3987 = vmatpush2.msra.mxu0 0.0
  %3988 = vmatprep.subr.mxu0 0.0
  %3989 = vmatpush2.msra.mxu0 0.0
  %3990 = vmatprep.subr.mxu0 0.0
  %3991 = vmatpush2.msra.mxu0 0.0
  %3992 = vmatprep.subr.mxu0 0.0
  %3993 = vmatpush2.msra.mxu0 0.0
  %3994 = vmatprep.subr.mxu0 0.0
  %3995 = vmatpush2.msra.mxu0 0.0
  %3996 = vmatprep.subr.mxu0 0.0
  %3997 = vmatpush2.msra.mxu0 0.0
  %3998 = vmatprep.subr.mxu0 0.0
  %3999 = vmatpush2.msra.mxu0 0.0
  %4000 = vmatprep.subr.mxu0 0.0
  %4001 = vmatpush2.msra.mxu0 0.0
  %4002 = vmatprep.subr.mxu0 0.0
  %4003 = vmatpush2.msra.mxu0 0.0
  %4004 = vmatprep.subr.mxu0 0.0
  %4005 = vmatpush2.msra.mxu0 0.0
  %4006 = vmatprep.mubr.f32.mxu0 0.0
  %4007 = vmatmul.mubr.f32.gmra.mxu0 %v3940
  %v4008 = vpop.f32.mrf.mxu0
  %v4009 = vadd.f32 0.0, %v4008
  %v4010 = vpop.f32.mrf.mxu0
  %4011 = vdwg.mxu0
  %v4012 = vadd.f32 %v3068, %v4009
  %v4013 = vadd.f32 %v3782, 1e-06
  %v4014 = vlog2.pop %v4013
  %v4015 = vmul.f32 %v4014, 0.6931472
  %v4016 = vsel %vm475, %v4015, 0.0
  %4017 = vadd.xlane.f32.xlu0 %v4016
  %v4018 = vpop.xlane.xlu0 %4017
  %v4019 = vrot.slane %v4018, 4
  %v4020 = vadd.f32 %v4018, %v4019
  %v4021 = vrot.slane %v4020, 2
  %v4022 = vadd.f32 %v4020, %v4021
  %v4023 = vrot.slane %v4022, 1
  %v4024 = vadd.f32 %v4022, %v4023
  %s4025 = vtos %v4024
  %v4026 = vstv %s4025
  %v4027 = vadd.f32 %v3783, 1e-06
  %v4028 = vlog2.pop %v4027
  %v4029 = vmul.f32 %v4028, 0.6931472
  %v4030 = vsel %vm320, %v4029, 0.0
  %4031 = vadd.xlane.f32.xlu0 %v4030
  %v4032 = vpop.xlane.xlu0 %4031
  %v4033 = vrot.slane %v4032, 4
  %v4034 = vadd.f32 %v4032, %v4033
  %v4035 = vrot.slane %v4034, 2
  %v4036 = vadd.f32 %v4034, %v4035
  %v4037 = vrot.slane %v4036, 1
  %v4038 = vadd.f32 %v4036, %v4037
  %s4039 = vtos %v4038
  %v4040 = vstv %s4039
  %v4041 = vadd.f32 %v4026, %v4040
  %v4042 = vadd.f32 %v3572, %v4041
  %v4043 = vsel %vm475, %v3782, 0.0
  %v4044 = vrot.slane %v4043, 4
  %v4045 = vadd.f32 %v4043, %v4044
  %v4046 = vrot.slane %v4045, 2
  %v4047 = vadd.f32 %v4045, %v4046
  %v4048 = vrot.slane %v4047, 1
  %v4049 = vadd.f32 %v4047, %v4048
  %4050 = vadd.xlane.f32.xlu0 %v4043
  %v4051 = vpop.xlane.xlu0 %4050
  %v4052 = vrot.slane %v4051, 4
  %v4053 = vadd.f32 %v4051, %v4052
  %v4054 = vrot.slane %v4053, 2
  %v4055 = vadd.f32 %v4053, %v4054
  %v4056 = vrot.slane %v4055, 1
  %v4057 = vadd.f32 %v4055, %v4056
  %s4058 = vtos %v4057
  %v4059 = vstv %s4058
  %v4060 = vsel %vm320, %v3783, 0.0
  %4061 = vadd.xlane.f32.xlu0 %v4060
  %v4062 = vpop.xlane.xlu0 %4061
  %v4063 = vrot.slane %v4062, 4
  %v4064 = vadd.f32 %v4062, %v4063
  %v4065 = vrot.slane %v4064, 2
  %v4066 = vadd.f32 %v4064, %v4065
  %v4067 = vrot.slane %v4066, 1
  %v4068 = vadd.f32 %v4066, %v4067
  %s4069 = vtos %v4068
  %v4070 = vstv %s4069
  %v4071 = vadd.f32 %v4059, %v4070
  %v4072 = vmul.f32 %v4071, 0.041666668
  %v4073 = vrcp.pop %v4072
  %v4074 = vmul.f32 %v4049, %v4073
  %v4075 = vsub.f32 %v4074, 1.0
  %v4076 = vsub.f32 %v4075, 0.01
  %vm4077 = vcmp.eq.s32.totalorder %v316, 7
  %v4078 = vsel %vm4077, 1.0, 0.0
  %v4079 = vmul.f32 %v4078, %v4076
  %v4080 = vadd.f32 %v3610, %v4079
  %v4081 = vlaneseq
  %v4082 = vshrl.u32 %v4081, 7
  %v4083 = vsub.s32 0, %v4082
  %v4084 = vrot.slane %v21, %v4083
  %v4085 = vadd.f32 %v3542, %v4084
  %v4086 = vadd.f32 %v4012, %v4084
  %4087 = vst.msk [vmem:[%s4] sm:$0xff] %vm38, %v4085
  %4088 = vst.msk [vmem:[%s4 + $0x8] sm:$0xff] %vm38, %v4086
  %v4089 = vld [vmem:[%s3] sm:$0xff]
  %v4090 = vadd.f32 %v4089, %v4080
  %4091 = vst.msk [vmem:[%s4 + $0x10] sm:$0xff] %vm475, %v4090
  %vm4092 = vcmask 262400
  %4093 = vst.msk [vmem:[%s4] sm:$0x1] %vm4092, %v4042
  // Predicated region
  $region18: #{ltm_multihead_forward.1} parent=0 // pred_check
    _
  $region19: #{ltm_multihead_forward.1} parent=0 // pred_check_branch
    %4095 = sbr.rel (0) target = $region21
  $region20: #{ltm_multihead_forward.1} parent=0 // pred_region
    _
  $region21: #{ltm_multihead_forward.1} parent=0 // pred_fallthru
    _
  // Predicated region
  $region22: #{ltm_multihead_forward.1} parent=0 // pred_check
    _
  $region23: #{ltm_multihead_forward.1} parent=0 // pred_check_branch
    %4097 = sbr.rel (0) target = $region25
  $region24: #{ltm_multihead_forward.1} parent=0 // pred_region
    _
  $region25: #{ltm_multihead_forward.1} parent=0 // pred_fallthru
    _

</llo_original>
